<compile_context>
chip_gen: v7x
topology: tpu7x:2x2x1
jax: 0.10.0
libtpu: 0.0.40
codegen_flags: <defaults>
</compile_context>

<pallas_src>
import functools

import jax
import jax.numpy as jnp
from jax.experimental import pallas as pl
from jax.experimental.pallas import tpu as pltpu


# ----------------------------- small helpers -------------------------------

_VSPEC = pl.BlockSpec(memory_space=pltpu.MemorySpace.VMEM)


def _loop(n, body, carry):
    """Fully unroll short static loops (best LLO visibility); fall back to
    lax.fori_loop for long trip counts."""
    if n <= 32:
        for t in range(n):
            carry = body(t, carry)
        return carry
    return jax.lax.fori_loop(0, n, body, carry)


# ----------------------------- Pallas kernels ------------------------------

def _linear_kernel(x_ref, wt_ref, b_ref, o_ref):
    o_ref[...] = (jnp.dot(x_ref[...], wt_ref[...],
                          preferred_element_type=jnp.float32) + b_ref[...])


def pallas_linear(x, wt, b, block_rows=512):
    """x @ wt + b (wt already (in, out)).  Row-tiled when M is large."""
    m, k = x.shape
    n = wt.shape[1]
    b2 = b.reshape(1, -1)
    if m <= block_rows or m % block_rows != 0:
        return pl.pallas_call(
            _linear_kernel,
            out_shape=jax.ShapeDtypeStruct((m, n), jnp.float32),
            in_specs=[_VSPEC, _VSPEC, _VSPEC],
            out_specs=_VSPEC,
        )(x, wt, b2)
    return pl.pallas_call(
        _linear_kernel,
        grid=(m // block_rows,),
        out_shape=jax.ShapeDtypeStruct((m, n), jnp.float32),
        in_specs=[pl.BlockSpec((block_rows, k), lambda i: (i, 0)),
                  pl.BlockSpec((k, n), lambda i: (0, 0)),
                  pl.BlockSpec((1, n), lambda i: (0, 0))],
        out_specs=pl.BlockSpec((block_rows, n), lambda i: (i, 0)),
        compiler_params=pltpu.CompilerParams(
            dimension_semantics=("parallel",)),
    )(x, wt, b2)


def _bienc_kernel(xg_ref, whh_ref, hf_ref, hb_ref, *, hidden, length):
    """Whole bidirectional-LSTM encoder scan in one invocation.

    xg_ref: (L, B, 8H) precomputed x@W_ih + b for [fwd 4H | bwd 4H].
    whh_ref: (2H, 8H) block-diagonal hidden-to-hidden weight, so both
    directions share a single MXU push per step.
    """
    H = hidden
    B = xg_ref.shape[1]
    whh = whh_ref[...]

    def half(g4, c_half):
        i = jax.nn.sigmoid(g4[:, 0 * H:1 * H])
        f = jax.nn.sigmoid(g4[:, 1 * H:2 * H])
        g = jnp.tanh(g4[:, 2 * H:3 * H])
        o = jax.nn.sigmoid(g4[:, 3 * H:4 * H])
        c_new = f * c_half + i * g
        return o * jnp.tanh(c_new), c_new

    def step(t, carry):
        h, c = carry                                   # (B,2H), (B,2H)
        xf = xg_ref[t]                                 # fwd gates of time t
        xb = xg_ref[length - 1 - t]                    # bwd gates of time L-1-t
        gates = (jnp.concatenate([xf[:, :4 * H], xb[:, 4 * H:]], axis=1)
                 + jnp.dot(h, whh, preferred_element_type=jnp.float32))
        hf_new, cf_new = half(gates[:, :4 * H], c[:, :H])
        hb_new, cb_new = half(gates[:, 4 * H:], c[:, H:])
        hf_ref[t] = hf_new
        hb_ref[length - 1 - t] = hb_new
        return (jnp.concatenate([hf_new, hb_new], axis=1),
                jnp.concatenate([cf_new, cb_new], axis=1))

    z = jnp.zeros((B, 2 * H), jnp.float32)
    _loop(length, step, (z, z))


def _dec_rec_kernel(xg_ref, enc_ref, whh_ref, whv_ref, wsv_ref, msel_ref,
                    cat_ref, attn_ref, covloss_ref, *, hidden, steps):
    """Serial decoder recurrence: LSTM cell + attention + coverage + context.

    Vocab-sized work is deferred; per-step outputs are cat=[state|context]
    (B,3H) and attn (B,L).  Coverage loss accumulates in the loop carry.
    """
    H = hidden
    B, L, _ = enc_ref.shape
    enc = enc_ref[...]                                  # (B, L, 2H)
    whh = whh_ref[...]                                  # (H, 4H)
    wsv = wsv_ref[...]                                  # (1, H)
    msel = msel_ref[...]                                # (B, B, L) one-hot sel

    # Loop-invariant attention term: whscore[b,l] = enc[b,l,:] . (Wh^T v^T).
    # (The constant bias v.Wh_b + v.Ws_b + v_b cancels inside the softmax.)
    whscore = jnp.sum(enc * whv_ref[...][None, :, :], axis=-1)   # (B, L)

    def step(t, carry):
        h, c, cov, loss = carry
        gates = xg_ref[t] + jnp.dot(h, whh, preferred_element_type=jnp.float32)
        i = jax.nn.sigmoid(gates[:, 0 * H:1 * H])
        f = jax.nn.sigmoid(gates[:, 1 * H:2 * H])
        g = jnp.tanh(gates[:, 2 * H:3 * H])
        o = jax.nn.sigmoid(gates[:, 3 * H:4 * H])
        c_new = f * c + i * g
        h_new = o * jnp.tanh(c_new)                     # (B, H) decoder state

        # (Ws(state)).v as VPU multiply + lane reduce (no N=1 MXU push);
        # replicate the reference's (b*L+l)%B row alignment via the selector.
        ws_v = jnp.sum(h_new * wsv, axis=1, keepdims=True)          # (B, 1)
        ws_mix = jnp.sum(msel * ws_v[None, :, :], axis=1)           # (B, L)
        scores = whscore + ws_mix
        m = jnp.max(scores, axis=1, keepdims=True)
        e = jnp.exp(scores - m)
        attn = e / jnp.sum(e, axis=1, keepdims=True)                # exact

        loss_new = loss + jnp.sum(jnp.minimum(attn, cov))           # pre-update
        cov_new = cov + attn

        context = jnp.einsum('bql,blh->bqh', attn[:, None, :], enc,
                             preferred_element_type=jnp.float32)[:, 0, :]
        cat_ref[t] = jnp.concatenate([h_new, context], axis=1)      # (B, 3H)
        attn_ref[t] = attn
        return (h_new, c_new, cov_new, loss_new)

    h0 = jnp.zeros((B, H), jnp.float32)
    cov0 = jnp.zeros((B, L), jnp.float32)
    loss0 = jnp.zeros((1, 1), jnp.float32)
    _, _, _, loss = _loop(steps, step, (h0, h0, cov0, loss0))
    covloss_ref[...] = loss


def _vocab_kernel(cat_ref, emb_ref, attn_ref, oh_ref, w1p_ref, b1p_ref,
                  v2wt_ref, v2b_ref, out_ref, *, hidden, vocab):
    """Deferred, batch-parallel vocab pass for ALL decoder steps of one batch
    element: V1/V2 (+p_gen column), vocab softmax, copy dist, pointer mixture.
    Output block (1, steps, V) lands directly in the final (B, T-1, V) layout.
    """
    H3 = 3 * hidden
    aug = jnp.concatenate([cat_ref[0], emb_ref[0]], axis=1)     # (steps, 3H+E)
    z = jnp.dot(aug, w1p_ref[...],
                preferred_element_type=jnp.float32) + b1p_ref[...]
    v1 = z[:, :H3]
    pgen_logit = z[:, H3:H3 + 1]                                # (steps, 1)

    v2 = jnp.dot(v1, v2wt_ref[...],
                 preferred_element_type=jnp.float32) + v2b_ref[...]
    mv = jnp.max(v2, axis=1, keepdims=True)
    ev = jnp.exp(v2 - mv)
    p_vocab = ev / jnp.sum(ev, axis=1, keepdims=True)           # (steps, V)

    copy = jnp.dot(attn_ref[0], oh_ref[0],
                   preferred_element_type=jnp.float32)          # (steps, V)
    p_gen = jax.nn.sigmoid(pgen_logit)
    out_ref[0] = p_gen * p_vocab + (1.0 - p_gen) * copy + (1.0 / vocab)


# ------------------------------ parameters ---------------------------------

def init_params(key, vocab, emb, hidden):
    keys = iter(jax.random.split(key, 32))

    def p(shape, scale=0.1):
        return jax.random.normal(next(keys), shape, jnp.float32) * scale

    return {
        'embed': p((vocab, emb)),
        # bidirectional encoder LSTM
        'enc_w_ih_f': p((4 * hidden, emb)), 'enc_w_hh_f': p((4 * hidden, hidden)),
        'enc_b_ih_f': p((4 * hidden,)),     'enc_b_hh_f': p((4 * hidden,)),
        'enc_w_ih_b': p((4 * hidden, emb)), 'enc_w_hh_b': p((4 * hidden, hidden)),
        'enc_b_ih_b': p((4 * hidden,)),     'enc_b_hh_b': p((4 * hidden,)),
        # decoder LSTM
        'dec_w_ih': p((4 * hidden, emb)),   'dec_w_hh': p((4 * hidden, hidden)),
        'dec_b_ih': p((4 * hidden,)),       'dec_b_hh': p((4 * hidden,)),
        # attention / pointer linears (PyTorch (out, in) layout)
        'Wh_w': p((hidden, 2 * hidden)), 'Wh_b': p((hidden,)),
        'Ws_w': p((hidden, hidden)),     'Ws_b': p((hidden,)),
        'v_w':  p((1, hidden)),          'v_b':  p((1,)),
        'wh_w': p((1, 2 * hidden)),      'wh_b': p((1,)),
        'ws_w': p((1, hidden)),          'ws_b': p((1,)),
        'wx_w': p((1, emb)),             'wx_b': p((1,)),
        'V1_w': p((3 * hidden, 3 * hidden)), 'V1_b': p((3 * hidden,)),
        'V2_w': p((vocab, 3 * hidden)),      'V2_b': p((vocab,)),
    }


def prepare_params(params, emb_dim, hidden_dim):
    """One-time weight transposes / bias folds / casts (outside forward)."""
    H, E = hidden_dim, emb_dim
    f32 = jnp.float32
    p = {k: v.astype(f32) for k, v in params.items()}

    # Encoder: fused fwd+bwd input projection and block-diagonal W_hh.
    enc_wih = jnp.concatenate([p['enc_w_ih_f'].T, p['enc_w_ih_b'].T], axis=1)
    enc_bih = jnp.concatenate([p['enc_b_ih_f'] + p['enc_b_hh_f'],
                               p['enc_b_ih_b'] + p['enc_b_hh_b']])
    whh_bd = jnp.zeros((2 * H, 8 * H), f32)
    whh_bd = whh_bd.at[:H, :4 * H].set(p['enc_w_hh_f'].T)
    whh_bd = whh_bd.at[H:, 4 * H:].set(p['enc_w_hh_b'].T)

    # Attention folds: scores are linear in enc/state (no tanh in the
    # reference), so v can be folded into Wh/Ws; the constant bias cancels
    # in the softmax and is dropped exactly.
    whv_row = (p['Wh_w'].T @ p['v_w'].T).T            # (1, 2H)
    wsv_row = (p['Ws_w'].T @ p['v_w'].T).T            # (1, H)

    # Augmented V1 | p_gen projection applied to [state | context | emb].
    H3 = 3 * H
    w1p = jnp.zeros((H3 + E, H3 + 1), f32)
    w1p = w1p.at[:H3, :H3].set(p['V1_w'].T)
    w1p = w1p.at[:H3, H3:].set(
        jnp.concatenate([p['ws_w'], p['wh_w']], axis=1).T)
    w1p = w1p.at[H3:, H3:].set(p['wx_w'].T)
    b1p = jnp.concatenate(
        [p['V1_b'], p['ws_b'] + p['wh_b'] + p['wx_b']]).reshape(1, -1)

    return {
        'embed': p['embed'],
        'enc_wih': enc_wih, 'enc_bih': enc_bih, 'enc_whh_bd': whh_bd,
        'dec_wih_t': p['dec_w_ih'].T,
        'dec_bih': p['dec_b_ih'] + p['dec_b_hh'],
        'dec_whh_t': p['dec_w_hh'].T,
        'whv': whv_row, 'wsv': wsv_row,
        'W1p': w1p, 'b1p': b1p,
        'v2_wt': p['V2_w'].T, 'v2_b': p['V2_b'].reshape(1, -1),
    }


# -------------------------------- forward ----------------------------------

def forward(prep, inputs, target, *, emb_dim, hidden_dim, word_count,
            train=True):
    if not train:
        # TODO(synk): eval-mode greedy decoding (argmax fed back as next input)
        # needs the vocab pass inside the serial loop plus an in-kernel
        # embedding gather; only the teacher-forced path is implemented.
        raise NotImplementedError("only train=True is supported")

    B, L = inputs.shape
    T = target.shape[1]
    steps = T - 1
    H, V, E = hidden_dim, word_count, emb_dim
    H3 = 3 * H
    f32 = jnp.float32

    emb = prep['embed']
    # get_unked: all ids here are in-vocab, so it is the identity.
    embedded_inputs = jnp.take(emb, inputs, axis=0)               # (B, L, E)

    # ---- encoder: one fat input-projection matmul + one fused bi-LSTM scan ----
    emb_in_tm = jnp.transpose(embedded_inputs, (1, 0, 2)).reshape(L * B, E)
    xg_enc = pallas_linear(emb_in_tm, prep['enc_wih'],
                           prep['enc_bih']).reshape(L, B, 8 * H)

    hf_all, hb_all = pl.pallas_call(
        functools.partial(_bienc_kernel, hidden=H, length=L),
        out_shape=(jax.ShapeDtypeStruct((L, B, H), f32),
                   jax.ShapeDtypeStruct((L, B, H), f32)),
        in_specs=[_VSPEC, _VSPEC],
        out_specs=(_VSPEC, _VSPEC),
        compiler_params=pltpu.CompilerParams(
            vmem_limit_bytes=32 * 1024 * 1024),
    )(xg_enc, prep['enc_whh_bd'])

    encoded = jnp.transpose(jnp.concatenate([hf_all, hb_all], axis=-1),
                            (1, 0, 2))                            # (B, L, 2H)

    # one-hot copy matrix (ids constant over steps) and the batch-mixing
    # selector msel[b,k,l] = [(b*L+l) % B == k] (reference row alignment).
    onehot = (inputs[:, :, None] == jnp.arange(V)[None, None, :]).astype(f32)
    rows = jnp.arange(B)[:, None, None] * L + jnp.arange(L)[None, None, :]
    msel = ((rows % B) == jnp.arange(B)[None, :, None]).astype(f32)

    # ---- decoder recurrence (no vocab work inside) ----
    dec_in = target[:, :steps]
    emb_tgt = jnp.take(emb, dec_in, axis=0)                       # (B, steps, E)
    emb_tgt_tm = jnp.transpose(emb_tgt, (1, 0, 2)).reshape(steps * B, E)
    xg_dec = pallas_linear(emb_tgt_tm, prep['dec_wih_t'],
                           prep['dec_bih']).reshape(steps, B, 4 * H)

    cat_all, attn_all, cov_loss = pl.pallas_call(
        functools.partial(_dec_rec_kernel, hidden=H, steps=steps),
        out_shape=(jax.ShapeDtypeStruct((steps, B, H3), f32),
                   jax.ShapeDtypeStruct((steps, B, L), f32),
                   jax.ShapeDtypeStruct((1, 1), f32)),
        in_specs=[_VSPEC] * 6,
        out_specs=(_VSPEC, _VSPEC, _VSPEC),
        compiler_params=pltpu.CompilerParams(
            vmem_limit_bytes=32 * 1024 * 1024),
    )(xg_dec, encoded, prep['dec_whh_t'], prep['whv'], prep['wsv'], msel)

    # ---- deferred vocab-sized post-pass, parallel over batch ----
    cat_bm = jnp.transpose(cat_all, (1, 0, 2))                    # (B, steps, 3H)
    attn_bm = jnp.transpose(attn_all, (1, 0, 2))                  # (B, steps, L)

    out = pl.pallas_call(
        functools.partial(_vocab_kernel, hidden=H, vocab=V),
        grid=(B,),
        out_shape=jax.ShapeDtypeStruct((B, steps, V), f32),
        in_specs=[
            pl.BlockSpec((1, steps, H3), lambda b: (b, 0, 0)),    # cat
            pl.BlockSpec((1, steps, E), lambda b: (b, 0, 0)),     # emb_tgt
            pl.BlockSpec((1, steps, L), lambda b: (b, 0, 0)),     # attn
            pl.BlockSpec((1, L, V), lambda b: (b, 0, 0)),         # onehot (per b)
            pl.BlockSpec((H3 + E, H3 + 1), lambda b: (0, 0)),     # W1p
            pl.BlockSpec((1, H3 + 1), lambda b: (0, 0)),          # b1p
            pl.BlockSpec((H3, V), lambda b: (0, 0)),              # V2^T
            pl.BlockSpec((1, V), lambda b: (0, 0)),               # V2 bias
        ],
        out_specs=pl.BlockSpec((1, steps, V), lambda b: (b, 0, 0)),
        compiler_params=pltpu.CompilerParams(
            dimension_semantics=("parallel",),
            vmem_limit_bytes=32 * 1024 * 1024),
    )(cat_bm, emb_tgt, attn_bm, onehot, prep['W1p'], prep['b1p'],
      prep['v2_wt'], prep['v2_b'])

    return out, cov_loss[0, 0]


# ---------------------------------- main ------------------------------------

if __name__ == "__main__":
    B, L_IN, L_OUT = 2, 8, 6
    EMB, HID, VOCAB = 16, 32, 64

    key = jax.random.PRNGKey(0)
    k_param, k_in, k_tgt = jax.random.split(key, 3)

    params = init_params(k_param, VOCAB, EMB, HID)
    prep = prepare_params(params, EMB, HID)
    inputs = jax.random.randint(k_in, (B, L_IN), 0, VOCAB, dtype=jnp.int32)
    target = jax.random.randint(k_tgt, (B, L_OUT), 0, VOCAB, dtype=jnp.int32)

    fwd = jax.jit(functools.partial(forward, emb_dim=EMB, hidden_dim=HID,
                                    word_count=VOCAB, train=True))
    out, cov_loss = fwd(prep, inputs, target)
    jax.block_until_ready(out)
    jax.block_until_ready(cov_loss)
    assert out.shape == (B, L_OUT - 1, VOCAB)
    assert cov_loss.shape == ()
    print("KERNEL_OK")
</pallas_src>

<mosaic_0001>
module attributes {stable_mosaic.version = 11 : i64} {
  func.func @_linear_kernel(%arg0: memref<10x16xf32, #tpu.memory_space<vmem>>, %arg1: memref<16x128xf32, #tpu.memory_space<vmem>>, %arg2: memref<1x128xf32, #tpu.memory_space<vmem>>, %arg3: memref<10x128xf32, #tpu.memory_space<vmem>>) attributes {dimension_semantics = [], scalar_prefetch = 0 : i64, scratch_operands = 0 : i64, tpu.core_type = #tpu.core_type<tc>} {
    %c0 = arith.constant 0 : index
    %c0_0 = arith.constant 0 : index
    %0 = vector.load %arg0[%c0, %c0_0] : memref<10x16xf32, #tpu.memory_space<vmem>>, vector<10x16xf32>
    %c0_1 = arith.constant 0 : index
    %c0_2 = arith.constant 0 : index
    %1 = vector.load %arg1[%c0_1, %c0_2] : memref<16x128xf32, #tpu.memory_space<vmem>>, vector<16x128xf32>
    %cst = arith.constant dense<0.000000e+00> : vector<10x128xf32>
    %2 = tpu.matmul %0, %1, %cst {dimension_numbers = #tpu.dot_dimension_numbers<[1], [0], [0], [1], [0, 0, 1, 1], [], []>} : vector<10x16xf32>, vector<16x128xf32>, vector<10x128xf32> -> vector<10x128xf32>
    %c0_3 = arith.constant 0 : index
    %c0_4 = arith.constant 0 : index
    %3 = vector.load %arg2[%c0_3, %c0_4] : memref<1x128xf32, #tpu.memory_space<vmem>>, vector<1x128xf32>
    %4 = vector.broadcast %3 : vector<1x128xf32> to vector<10x128xf32>
    %5 = arith.addf %2, %4 : vector<10x128xf32>
    %c0_5 = arith.constant 0 : index
    %c0_6 = arith.constant 0 : index
    %6 = vector.load %arg3[%c0_5, %c0_6] : memref<10x128xf32, #tpu.memory_space<vmem>>, vector<10x128xf32>
    tpu.vector_store %arg3[%c0_5, %c0_6], %5 {strides = array<i32>} : memref<10x128xf32, #tpu.memory_space<vmem>>, vector<10x128xf32>,
    return
  }
}

module attributes {stable_mosaic.version = 11 : i64} {
  func.func @_linear_kernel(%arg0: memref<16x16xf32, #tpu.memory_space<vmem>>, %arg1: memref<16x256xf32, #tpu.memory_space<vmem>>, %arg2: memref<1x256xf32, #tpu.memory_space<vmem>>, %arg3: memref<16x256xf32, #tpu.memory_space<vmem>>) attributes {dimension_semantics = [], scalar_prefetch = 0 : i64, scratch_operands = 0 : i64, tpu.core_type = #tpu.core_type<tc>} {
    %c0 = arith.constant 0 : index
    %c0_0 = arith.constant 0 : index
    %0 = vector.load %arg0[%c0, %c0_0] : memref<16x16xf32, #tpu.memory_space<vmem>>, vector<16x16xf32>
    %c0_1 = arith.constant 0 : index
    %c0_2 = arith.constant 0 : index
    %1 = vector.load %arg1[%c0_1, %c0_2] : memref<16x256xf32, #tpu.memory_space<vmem>>, vector<16x256xf32>
    %cst = arith.constant dense<0.000000e+00> : vector<16x256xf32>
    %2 = tpu.matmul %0, %1, %cst {dimension_numbers = #tpu.dot_dimension_numbers<[1], [0], [0], [1], [0, 0, 1, 1], [], []>} : vector<16x16xf32>, vector<16x256xf32>, vector<16x256xf32> -> vector<16x256xf32>
    %c0_3 = arith.constant 0 : index
    %c0_4 = arith.constant 0 : index
    %3 = vector.load %arg2[%c0_3, %c0_4] : memref<1x256xf32, #tpu.memory_space<vmem>>, vector<1x256xf32>
    %4 = vector.broadcast %3 : vector<1x256xf32> to vector<16x256xf32>
    %5 = arith.addf %2, %4 : vector<16x256xf32>
    %c0_5 = arith.constant 0 : index
    %c0_6 = arith.constant 0 : index
    %6 = vector.load %arg3[%c0_5, %c0_6] : memref<16x256xf32, #tpu.memory_space<vmem>>, vector<16x256xf32>
    tpu.vector_store %arg3[%c0_5, %c0_6], %5 {strides = array<i32>} : memref<16x256xf32, #tpu.memory_space<vmem>>, vector<16x256xf32>,
    return
  }
}

module attributes {stable_mosaic.version = 11 : i64} {
  func.func @_bienc_kernel(%arg0: memref<8x2x256xf32, #tpu.memory_space<vmem>>, %arg1: memref<64x256xf32, #tpu.memory_space<vmem>>, %arg2: memref<8x2x32xf32, #tpu.memory_space<vmem>>, %arg3: memref<8x2x32xf32, #tpu.memory_space<vmem>>) attributes {dimension_semantics = [], scalar_prefetch = 0 : i64, scratch_operands = 0 : i64, tpu.core_type = #tpu.core_type<tc>} {
    %c0 = arith.constant 0 : index
    %c0_0 = arith.constant 0 : index
    %0 = vector.load %arg1[%c0, %c0_0] : memref<64x256xf32, #tpu.memory_space<vmem>>, vector<64x256xf32>
    %cst = arith.constant 0.000000e+00 : f32
    %1 = vector.broadcast %cst : f32 to vector<2x64xf32>
    %c0_1 = arith.constant 0 : index
    %c0_2 = arith.constant 0 : index
    %c0_3 = arith.constant 0 : index
    %2 = vector.load %arg0[%c0_1, %c0_2, %c0_3] : memref<8x2x256xf32, #tpu.memory_space<vmem>>, vector<1x2x256xf32>
    %3 = vector.shape_cast %2 : vector<1x2x256xf32> to vector<2x256xf32>
    %c7 = arith.constant 7 : index
    %c0_4 = arith.constant 0 : index
    %c0_5 = arith.constant 0 : index
    %4 = vector.load %arg0[%c7, %c0_4, %c0_5] : memref<8x2x256xf32, #tpu.memory_space<vmem>>, vector<1x2x256xf32>
    %5 = vector.shape_cast %4 : vector<1x2x256xf32> to vector<2x256xf32>
    %6 = vector.extract_strided_slice %3 {offsets = [0, 0], sizes = [2, 128], strides = [1, 1]} : vector<2x256xf32> to vector<2x128xf32>
    %7 = vector.extract_strided_slice %5 {offsets = [0, 128], sizes = [2, 128], strides = [1, 1]} : vector<2x256xf32> to vector<2x128xf32>
    %8 = tpu.concatenate %6, %7 in 1 : vector<2x128xf32>, vector<2x128xf32> -> vector<2x256xf32>
    %cst_6 = arith.constant dense<0.000000e+00> : vector<2x256xf32>
    %9 = tpu.matmul %1, %0, %cst_6 {dimension_numbers = #tpu.dot_dimension_numbers<[1], [0], [0], [1], [0, 0, 1, 1], [], []>} : vector<2x64xf32>, vector<64x256xf32>, vector<2x256xf32> -> vector<2x256xf32>
    %10 = arith.addf %8, %9 : vector<2x256xf32>
    %11 = vector.extract_strided_slice %10 {offsets = [0, 0], sizes = [2, 128], strides = [1, 1]} : vector<2x256xf32> to vector<2x128xf32>
    %12 = vector.extract_strided_slice %1 {offsets = [0, 0], sizes = [2, 32], strides = [1, 1]} : vector<2x64xf32> to vector<2x32xf32>
    %13 = vector.extract_strided_slice %11 {offsets = [0, 0], sizes = [2, 32], strides = [1, 1]} : vector<2x128xf32> to vector<2x32xf32>
    %14 = arith.negf %13 : vector<2x32xf32>
    %15 = math.exp %14 : vector<2x32xf32>
    %cst_7 = arith.constant 1.000000e+00 : f32
    %16 = vector.broadcast %cst_7 : f32 to vector<2x32xf32>
    %17 = arith.addf %16, %15 : vector<2x32xf32>
    %18 = arith.divf %16, %17 : vector<2x32xf32>
    %19 = vector.extract_strided_slice %11 {offsets = [0, 32], sizes = [2, 32], strides = [1, 1]} : vector<2x128xf32> to vector<2x32xf32>
    %20 = arith.negf %19 : vector<2x32xf32>
    %21 = math.exp %20 : vector<2x32xf32>
    %cst_8 = arith.constant 1.000000e+00 : f32
    %22 = vector.broadcast %cst_8 : f32 to vector<2x32xf32>
    %23 = arith.addf %22, %21 : vector<2x32xf32>
    %24 = arith.divf %22, %23 : vector<2x32xf32>
    %25 = vector.extract_strided_slice %11 {offsets = [0, 64], sizes = [2, 32], strides = [1, 1]} : vector<2x128xf32> to vector<2x32xf32>
    %26 = math.tanh %25 : vector<2x32xf32>
    %27 = vector.extract_strided_slice %11 {offsets = [0, 96], sizes = [2, 32], strides = [1, 1]} : vector<2x128xf32> to vector<2x32xf32>
    %28 = arith.negf %27 : vector<2x32xf32>
    %29 = math.exp %28 : vector<2x32xf32>
    %cst_9 = arith.constant 1.000000e+00 : f32
    %30 = vector.broadcast %cst_9 : f32 to vector<2x32xf32>
    %31 = arith.addf %30, %29 : vector<2x32xf32>
    %32 = arith.divf %30, %31 : vector<2x32xf32>
    %33 = arith.mulf %24, %12 : vector<2x32xf32>
    %34 = arith.mulf %18, %26 : vector<2x32xf32>
    %35 = arith.addf %33, %34 : vector<2x32xf32>
    %36 = math.tanh %35 : vector<2x32xf32>
    %37 = arith.mulf %32, %36 : vector<2x32xf32>
    %38 = vector.extract_strided_slice %10 {offsets = [0, 128], sizes = [2, 128], strides = [1, 1]} : vector<2x256xf32> to vector<2x128xf32>
    %39 = vector.extract_strided_slice %1 {offsets = [0, 32], sizes = [2, 32], strides = [1, 1]} : vector<2x64xf32> to vector<2x32xf32>
    %40 = vector.extract_strided_slice %38 {offsets = [0, 0], sizes = [2, 32], strides = [1, 1]} : vector<2x128xf32> to vector<2x32xf32>
    %41 = arith.negf %40 : vector<2x32xf32>
    %42 = math.exp %41 : vector<2x32xf32>
    %cst_10 = arith.constant 1.000000e+00 : f32
    %43 = vector.broadcast %cst_10 : f32 to vector<2x32xf32>
    %44 = arith.addf %43, %42 : vector<2x32xf32>
    %45 = arith.divf %43, %44 : vector<2x32xf32>
    %46 = vector.extract_strided_slice %38 {offsets = [0, 32], sizes = [2, 32], strides = [1, 1]} : vector<2x128xf32> to vector<2x32xf32>
    %47 = arith.negf %46 : vector<2x32xf32>
    %48 = math.exp %47 : vector<2x32xf32>
    %cst_11 = arith.constant 1.000000e+00 : f32
    %49 = vector.broadcast %cst_11 : f32 to vector<2x32xf32>
    %50 = arith.addf %49, %48 : vector<2x32xf32>
    %51 = arith.divf %49, %50 : vector<2x32xf32>
    %52 = vector.extract_strided_slice %38 {offsets = [0, 64], sizes = [2, 32], strides = [1, 1]} : vector<2x128xf32> to vector<2x32xf32>
    %53 = math.tanh %52 : vector<2x32xf32>
    %54 = vector.extract_strided_slice %38 {offsets = [0, 96], sizes = [2, 32], strides = [1, 1]} : vector<2x128xf32> to vector<2x32xf32>
    %55 = arith.negf %54 : vector<2x32xf32>
    %56 = math.exp %55 : vector<2x32xf32>
    %cst_12 = arith.constant 1.000000e+00 : f32
    %57 = vector.broadcast %cst_12 : f32 to vector<2x32xf32>
    %58 = arith.addf %57, %56 : vector<2x32xf32>
    %59 = arith.divf %57, %58 : vector<2x32xf32>
    %60 = arith.mulf %51, %39 : vector<2x32xf32>
    %61 = arith.mulf %45, %53 : vector<2x32xf32>
    %62 = arith.addf %60, %61 : vector<2x32xf32>
    %63 = math.tanh %62 : vector<2x32xf32>
    %64 = arith.mulf %59, %63 : vector<2x32xf32>
    %c0_13 = arith.constant 0 : index
    %c0_14 = arith.constant 0 : index
    %c0_15 = arith.constant 0 : index
    %65 = vector.load %arg2[%c0_13, %c0_14, %c0_15] : memref<8x2x32xf32, #tpu.memory_space<vmem>>, vector<1x2x32xf32>
    %66 = vector.shape_cast %65 : vector<1x2x32xf32> to vector<2x32xf32>
    %67 = vector.shape_cast %37 : vector<2x32xf32> to vector<1x2x32xf32>
    tpu.vector_store %arg2[%c0_13, %c0_14, %c0_15], %67 {strides = array<i32>} : memref<8x2x32xf32, #tpu.memory_space<vmem>>, vector<1x2x32xf32>,
    %c7_16 = arith.constant 7 : index
    %c0_17 = arith.constant 0 : index
    %c0_18 = arith.constant 0 : index
    %68 = vector.load %arg3[%c7_16, %c0_17, %c0_18] : memref<8x2x32xf32, #tpu.memory_space<vmem>>, vector<1x2x32xf32>
    %69 = vector.shape_cast %68 : vector<1x2x32xf32> to vector<2x32xf32>
    %70 = vector.shape_cast %64 : vector<2x32xf32> to vector<1x2x32xf32>
    tpu.vector_store %arg3[%c7_16, %c0_17, %c0_18], %70 {strides = array<i32>} : memref<8x2x32xf32, #tpu.memory_space<vmem>>, vector<1x2x32xf32>,
    %71 = tpu.concatenate %37, %64 in 1 : vector<2x32xf32>, vector<2x32xf32> -> vector<2x64xf32>
    %72 = tpu.concatenate %35, %62 in 1 : vector<2x32xf32>, vector<2x32xf32> -> vector<2x64xf32>
    %c1 = arith.constant 1 : index
    %c0_19 = arith.constant 0 : index
    %c0_20 = arith.constant 0 : index
    %73 = vector.load %arg0[%c1, %c0_19, %c0_20] : memref<8x2x256xf32, #tpu.memory_space<vmem>>, vector<1x2x256xf32>
    %74 = vector.shape_cast %73 : vector<1x2x256xf32> to vector<2x256xf32>
    %c6 = arith.constant 6 : index
    %c0_21 = arith.constant 0 : index
    %c0_22 = arith.constant 0 : index
    %75 = vector.load %arg0[%c6, %c0_21, %c0_22] : memref<8x2x256xf32, #tpu.memory_space<vmem>>, vector<1x2x256xf32>
    %76 = vector.shape_cast %75 : vector<1x2x256xf32> to vector<2x256xf32>
    %77 = vector.extract_strided_slice %74 {offsets = [0, 0], sizes = [2, 128], strides = [1, 1]} : vector<2x256xf32> to vector<2x128xf32>
    %78 = vector.extract_strided_slice %76 {offsets = [0, 128], sizes = [2, 128], strides = [1, 1]} : vector<2x256xf32> to vector<2x128xf32>
    %79 = tpu.concatenate %77, %78 in 1 : vector<2x128xf32>, vector<2x128xf32> -> vector<2x256xf32>
    %cst_23 = arith.constant dense<0.000000e+00> : vector<2x256xf32>
    %80 = tpu.matmul %71, %0, %cst_23 {dimension_numbers = #tpu.dot_dimension_numbers<[1], [0], [0], [1], [0, 0, 1, 1], [], []>} : vector<2x64xf32>, vector<64x256xf32>, vector<2x256xf32> -> vector<2x256xf32>
    %81 = arith.addf %79, %80 : vector<2x256xf32>
    %82 = vector.extract_strided_slice %81 {offsets = [0, 0], sizes = [2, 128], strides = [1, 1]} : vector<2x256xf32> to vector<2x128xf32>
    %83 = vector.extract_strided_slice %72 {offsets = [0, 0], sizes = [2, 32], strides = [1, 1]} : vector<2x64xf32> to vector<2x32xf32>
    %84 = vector.extract_strided_slice %82 {offsets = [0, 0], sizes = [2, 32], strides = [1, 1]} : vector<2x128xf32> to vector<2x32xf32>
    %85 = arith.negf %84 : vector<2x32xf32>
    %86 = math.exp %85 : vector<2x32xf32>
    %cst_24 = arith.constant 1.000000e+00 : f32
    %87 = vector.broadcast %cst_24 : f32 to vector<2x32xf32>
    %88 = arith.addf %87, %86 : vector<2x32xf32>
    %89 = arith.divf %87, %88 : vector<2x32xf32>
    %90 = vector.extract_strided_slice %82 {offsets = [0, 32], sizes = [2, 32], strides = [1, 1]} : vector<2x128xf32> to vector<2x32xf32>
    %91 = arith.negf %90 : vector<2x32xf32>
    %92 = math.exp %91 : vector<2x32xf32>
    %cst_25 = arith.constant 1.000000e+00 : f32
    %93 = vector.broadcast %cst_25 : f32 to vector<2x32xf32>
    %94 = arith.addf %93, %92 : vector<2x32xf32>
    %95 = arith.divf %93, %94 : vector<2x32xf32>
    %96 = vector.extract_strided_slice %82 {offsets = [0, 64], sizes = [2, 32], strides = [1, 1]} : vector<2x128xf32> to vector<2x32xf32>
    %97 = math.tanh %96 : vector<2x32xf32>
    %98 = vector.extract_strided_slice %82 {offsets = [0, 96], sizes = [2, 32], strides = [1, 1]} : vector<2x128xf32> to vector<2x32xf32>
    %99 = arith.negf %98 : vector<2x32xf32>
    %100 = math.exp %99 : vector<2x32xf32>
    %cst_26 = arith.constant 1.000000e+00 : f32
    %101 = vector.broadcast %cst_26 : f32 to vector<2x32xf32>
    %102 = arith.addf %101, %100 : vector<2x32xf32>
    %103 = arith.divf %101, %102 : vector<2x32xf32>
    %104 = arith.mulf %95, %83 : vector<2x32xf32>
    %105 = arith.mulf %89, %97 : vector<2x32xf32>
    %106 = arith.addf %104, %105 : vector<2x32xf32>
    %107 = math.tanh %106 : vector<2x32xf32>
    %108 = arith.mulf %103, %107 : vector<2x32xf32>
    %109 = vector.extract_strided_slice %81 {offsets = [0, 128], sizes = [2, 128], strides = [1, 1]} : vector<2x256xf32> to vector<2x128xf32>
    %110 = vector.extract_strided_slice %72 {offsets = [0, 32], sizes = [2, 32], strides = [1, 1]} : vector<2x64xf32> to vector<2x32xf32>
    %111 = vector.extract_strided_slice %109 {offsets = [0, 0], sizes = [2, 32], strides = [1, 1]} : vector<2x128xf32> to vector<2x32xf32>
    %112 = arith.negf %111 : vector<2x32xf32>
    %113 = math.exp %112 : vector<2x32xf32>
    %cst_27 = arith.constant 1.000000e+00 : f32
    %114 = vector.broadcast %cst_27 : f32 to vector<2x32xf32>
    %115 = arith.addf %114, %113 : vector<2x32xf32>
    %116 = arith.divf %114, %115 : vector<2x32xf32>
    %117 = vector.extract_strided_slice %109 {offsets = [0, 32], sizes = [2, 32], strides = [1, 1]} : vector<2x128xf32> to vector<2x32xf32>
    %118 = arith.negf %117 : vector<2x32xf32>
    %119 = math.exp %118 : vector<2x32xf32>
    %cst_28 = arith.constant 1.000000e+00 : f32
    %120 = vector.broadcast %cst_28 : f32 to vector<2x32xf32>
    %121 = arith.addf %120, %119 : vector<2x32xf32>
    %122 = arith.divf %120, %121 : vector<2x32xf32>
    %123 = vector.extract_strided_slice %109 {offsets = [0, 64], sizes = [2, 32], strides = [1, 1]} : vector<2x128xf32> to vector<2x32xf32>
    %124 = math.tanh %123 : vector<2x32xf32>
    %125 = vector.extract_strided_slice %109 {offsets = [0, 96], sizes = [2, 32], strides = [1, 1]} : vector<2x128xf32> to vector<2x32xf32>
    %126 = arith.negf %125 : vector<2x32xf32>
    %127 = math.exp %126 : vector<2x32xf32>
    %cst_29 = arith.constant 1.000000e+00 : f32
    %128 = vector.broadcast %cst_29 : f32 to vector<2x32xf32>
    %129 = arith.addf %128, %127 : vector<2x32xf32>
    %130 = arith.divf %128, %129 : vector<2x32xf32>
    %131 = arith.mulf %122, %110 : vector<2x32xf32>
    %132 = arith.mulf %116, %124 : vector<2x32xf32>
    %133 = arith.addf %131, %132 : vector<2x32xf32>
    %134 = math.tanh %133 : vector<2x32xf32>
    %135 = arith.mulf %130, %134 : vector<2x32xf32>
    %c1_30 = arith.constant 1 : index
    %c0_31 = arith.constant 0 : index
    %c0_32 = arith.constant 0 : index
    %136 = vector.load %arg2[%c1_30, %c0_31, %c0_32] : memref<8x2x32xf32, #tpu.memory_space<vmem>>, vector<1x2x32xf32>
    %137 = vector.shape_cast %136 : vector<1x2x32xf32> to vector<2x32xf32>
    %138 = vector.shape_cast %108 : vector<2x32xf32> to vector<1x2x32xf32>
    tpu.vector_store %arg2[%c1_30, %c0_31, %c0_32], %138 {strides = array<i32>} : memref<8x2x32xf32, #tpu.memory_space<vmem>>, vector<1x2x32xf32>,
    %c6_33 = arith.constant 6 : index
    %c0_34 = arith.constant 0 : index
    %c0_35 = arith.constant 0 : index
    %139 = vector.load %arg3[%c6_33, %c0_34, %c0_35] : memref<8x2x32xf32, #tpu.memory_space<vmem>>, vector<1x2x32xf32>
    %140 = vector.shape_cast %139 : vector<1x2x32xf32> to vector<2x32xf32>
    %141 = vector.shape_cast %135 : vector<2x32xf32> to vector<1x2x32xf32>
    tpu.vector_store %arg3[%c6_33, %c0_34, %c0_35], %141 {strides = array<i32>} : memref<8x2x32xf32, #tpu.memory_space<vmem>>, vector<1x2x32xf32>,
    %142 = tpu.concatenate %108, %135 in 1 : vector<2x32xf32>, vector<2x32xf32> -> vector<2x64xf32>
    %143 = tpu.concatenate %106, %133 in 1 : vector<2x32xf32>, vector<2x32xf32> -> vector<2x64xf32>
    %c2 = arith.constant 2 : index
    %c0_36 = arith.constant 0 : index
    %c0_37 = arith.constant 0 : index
    %144 = vector.load %arg0[%c2, %c0_36, %c0_37] : memref<8x2x256xf32, #tpu.memory_space<vmem>>, vector<1x2x256xf32>
    %145 = vector.shape_cast %144 : vector<1x2x256xf32> to vector<2x256xf32>
    %c5 = arith.constant 5 : index
    %c0_38 = arith.constant 0 : index
    %c0_39 = arith.constant 0 : index
    %146 = vector.load %arg0[%c5, %c0_38, %c0_39] : memref<8x2x256xf32, #tpu.memory_space<vmem>>, vector<1x2x256xf32>
    %147 = vector.shape_cast %146 : vector<1x2x256xf32> to vector<2x256xf32>
    %148 = vector.extract_strided_slice %145 {offsets = [0, 0], sizes = [2, 128], strides = [1, 1]} : vector<2x256xf32> to vector<2x128xf32>
    %149 = vector.extract_strided_slice %147 {offsets = [0, 128], sizes = [2, 128], strides = [1, 1]} : vector<2x256xf32> to vector<2x128xf32>
    %150 = tpu.concatenate %148, %149 in 1 : vector<2x128xf32>, vector<2x128xf32> -> vector<2x256xf32>
    %cst_40 = arith.constant dense<0.000000e+00> : vector<2x256xf32>
    %151 = tpu.matmul %142, %0, %cst_40 {dimension_numbers = #tpu.dot_dimension_numbers<[1], [0], [0], [1], [0, 0, 1, 1], [], []>} : vector<2x64xf32>, vector<64x256xf32>, vector<2x256xf32> -> vector<2x256xf32>
    %152 = arith.addf %150, %151 : vector<2x256xf32>
    %153 = vector.extract_strided_slice %152 {offsets = [0, 0], sizes = [2, 128], strides = [1, 1]} : vector<2x256xf32> to vector<2x128xf32>
    %154 = vector.extract_strided_slice %143 {offsets = [0, 0], sizes = [2, 32], strides = [1, 1]} : vector<2x64xf32> to vector<2x32xf32>
    %155 = vector.extract_strided_slice %153 {offsets = [0, 0], sizes = [2, 32], strides = [1, 1]} : vector<2x128xf32> to vector<2x32xf32>
    %156 = arith.negf %155 : vector<2x32xf32>
    %157 = math.exp %156 : vector<2x32xf32>
    %cst_41 = arith.constant 1.000000e+00 : f32
    %158 = vector.broadcast %cst_41 : f32 to vector<2x32xf32>
    %159 = arith.addf %158, %157 : vector<2x32xf32>
    %160 = arith.divf %158, %159 : vector<2x32xf32>
    %161 = vector.extract_strided_slice %153 {offsets = [0, 32], sizes = [2, 32], strides = [1, 1]} : vector<2x128xf32> to vector<2x32xf32>
    %162 = arith.negf %161 : vector<2x32xf32>
    %163 = math.exp %162 : vector<2x32xf32>
    %cst_42 = arith.constant 1.000000e+00 : f32
    %164 = vector.broadcast %cst_42 : f32 to vector<2x32xf32>
    %165 = arith.addf %164, %163 : vector<2x32xf32>
    %166 = arith.divf %164, %165 : vector<2x32xf32>
    %167 = vector.extract_strided_slice %153 {offsets = [0, 64], sizes = [2, 32], strides = [1, 1]} : vector<2x128xf32> to vector<2x32xf32>
    %168 = math.tanh %167 : vector<2x32xf32>
    %169 = vector.extract_strided_slice %153 {offsets = [0, 96], sizes = [2, 32], strides = [1, 1]} : vector<2x128xf32> to vector<2x32xf32>
    %170 = arith.negf %169 : vector<2x32xf32>
    %171 = math.exp %170 : vector<2x32xf32>
    %cst_43 = arith.constant 1.000000e+00 : f32
    %172 = vector.broadcast %cst_43 : f32 to vector<2x32xf32>
    %173 = arith.addf %172, %171 : vector<2x32xf32>
    %174 = arith.divf %172, %173 : vector<2x32xf32>
    %175 = arith.mulf %166, %154 : vector<2x32xf32>
    %176 = arith.mulf %160, %168 : vector<2x32xf32>
    %177 = arith.addf %175, %176 : vector<2x32xf32>
    %178 = math.tanh %177 : vector<2x32xf32>
    %179 = arith.mulf %174, %178 : vector<2x32xf32>
    %180 = vector.extract_strided_slice %152 {offsets = [0, 128], sizes = [2, 128], strides = [1, 1]} : vector<2x256xf32> to vector<2x128xf32>
    %181 = vector.extract_strided_slice %143 {offsets = [0, 32], sizes = [2, 32], strides = [1, 1]} : vector<2x64xf32> to vector<2x32xf32>
    %182 = vector.extract_strided_slice %180 {offsets = [0, 0], sizes = [2, 32], strides = [1, 1]} : vector<2x128xf32> to vector<2x32xf32>
    %183 = arith.negf %182 : vector<2x32xf32>
    %184 = math.exp %183 : vector<2x32xf32>
    %cst_44 = arith.constant 1.000000e+00 : f32
    %185 = vector.broadcast %cst_44 : f32 to vector<2x32xf32>
    %186 = arith.addf %185, %184 : vector<2x32xf32>
    %187 = arith.divf %185, %186 : vector<2x32xf32>
    %188 = vector.extract_strided_slice %180 {offsets = [0, 32], sizes = [2, 32], strides = [1, 1]} : vector<2x128xf32> to vector<2x32xf32>
    %189 = arith.negf %188 : vector<2x32xf32>
    %190 = math.exp %189 : vector<2x32xf32>
    %cst_45 = arith.constant 1.000000e+00 : f32
    %191 = vector.broadcast %cst_45 : f32 to vector<2x32xf32>
    %192 = arith.addf %191, %190 : vector<2x32xf32>
    %193 = arith.divf %191, %192 : vector<2x32xf32>
    %194 = vector.extract_strided_slice %180 {offsets = [0, 64], sizes = [2, 32], strides = [1, 1]} : vector<2x128xf32> to vector<2x32xf32>
    %195 = math.tanh %194 : vector<2x32xf32>
    %196 = vector.extract_strided_slice %180 {offsets = [0, 96], sizes = [2, 32], strides = [1, 1]} : vector<2x128xf32> to vector<2x32xf32>
    %197 = arith.negf %196 : vector<2x32xf32>
    %198 = math.exp %197 : vector<2x32xf32>
    %cst_46 = arith.constant 1.000000e+00 : f32
    %199 = vector.broadcast %cst_46 : f32 to vector<2x32xf32>
    %200 = arith.addf %199, %198 : vector<2x32xf32>
    %201 = arith.divf %199, %200 : vector<2x32xf32>
    %202 = arith.mulf %193, %181 : vector<2x32xf32>
    %203 = arith.mulf %187, %195 : vector<2x32xf32>
    %204 = arith.addf %202, %203 : vector<2x32xf32>
    %205 = math.tanh %204 : vector<2x32xf32>
    %206 = arith.mulf %201, %205 : vector<2x32xf32>
    %c2_47 = arith.constant 2 : index
    %c0_48 = arith.constant 0 : index
    %c0_49 = arith.constant 0 : index
    %207 = vector.load %arg2[%c2_47, %c0_48, %c0_49] : memref<8x2x32xf32, #tpu.memory_space<vmem>>, vector<1x2x32xf32>
    %208 = vector.shape_cast %207 : vector<1x2x32xf32> to vector<2x32xf32>
    %209 = vector.shape_cast %179 : vector<2x32xf32> to vector<1x2x32xf32>
    tpu.vector_store %arg2[%c2_47, %c0_48, %c0_49], %209 {strides = array<i32>} : memref<8x2x32xf32, #tpu.memory_space<vmem>>, vector<1x2x32xf32>,
    %c5_50 = arith.constant 5 : index
    %c0_51 = arith.constant 0 : index
    %c0_52 = arith.constant 0 : index
    %210 = vector.load %arg3[%c5_50, %c0_51, %c0_52] : memref<8x2x32xf32, #tpu.memory_space<vmem>>, vector<1x2x32xf32>
    %211 = vector.shape_cast %210 : vector<1x2x32xf32> to vector<2x32xf32>
    %212 = vector.shape_cast %206 : vector<2x32xf32> to vector<1x2x32xf32>
    tpu.vector_store %arg3[%c5_50, %c0_51, %c0_52], %212 {strides = array<i32>} : memref<8x2x32xf32, #tpu.memory_space<vmem>>, vector<1x2x32xf32>,
    %213 = tpu.concatenate %179, %206 in 1 : vector<2x32xf32>, vector<2x32xf32> -> vector<2x64xf32>
    %214 = tpu.concatenate %177, %204 in 1 : vector<2x32xf32>, vector<2x32xf32> -> vector<2x64xf32>
    %c3 = arith.constant 3 : index
    %c0_53 = arith.constant 0 : index
    %c0_54 = arith.constant 0 : index
    %215 = vector.load %arg0[%c3, %c0_53, %c0_54] : memref<8x2x256xf32, #tpu.memory_space<vmem>>, vector<1x2x256xf32>
    %216 = vector.shape_cast %215 : vector<1x2x256xf32> to vector<2x256xf32>
    %c4 = arith.constant 4 : index
    %c0_55 = arith.constant 0 : index
    %c0_56 = arith.constant 0 : index
    %217 = vector.load %arg0[%c4, %c0_55, %c0_56] : memref<8x2x256xf32, #tpu.memory_space<vmem>>, vector<1x2x256xf32>
    %218 = vector.shape_cast %217 : vector<1x2x256xf32> to vector<2x256xf32>
    %219 = vector.extract_strided_slice %216 {offsets = [0, 0], sizes = [2, 128], strides = [1, 1]} : vector<2x256xf32> to vector<2x128xf32>
    %220 = vector.extract_strided_slice %218 {offsets = [0, 128], sizes = [2, 128], strides = [1, 1]} : vector<2x256xf32> to vector<2x128xf32>
    %221 = tpu.concatenate %219, %220 in 1 : vector<2x128xf32>, vector<2x128xf32> -> vector<2x256xf32>
    %cst_57 = arith.constant dense<0.000000e+00> : vector<2x256xf32>
    %222 = tpu.matmul %213, %0, %cst_57 {dimension_numbers = #tpu.dot_dimension_numbers<[1], [0], [0], [1], [0, 0, 1, 1], [], []>} : vector<2x64xf32>, vector<64x256xf32>, vector<2x256xf32> -> vector<2x256xf32>
    %223 = arith.addf %221, %222 : vector<2x256xf32>
    %224 = vector.extract_strided_slice %223 {offsets = [0, 0], sizes = [2, 128], strides = [1, 1]} : vector<2x256xf32> to vector<2x128xf32>
    %225 = vector.extract_strided_slice %214 {offsets = [0, 0], sizes = [2, 32], strides = [1, 1]} : vector<2x64xf32> to vector<2x32xf32>
    %226 = vector.extract_strided_slice %224 {offsets = [0, 0], sizes = [2, 32], strides = [1, 1]} : vector<2x128xf32> to vector<2x32xf32>
    %227 = arith.negf %226 : vector<2x32xf32>
    %228 = math.exp %227 : vector<2x32xf32>
    %cst_58 = arith.constant 1.000000e+00 : f32
    %229 = vector.broadcast %cst_58 : f32 to vector<2x32xf32>
    %230 = arith.addf %229, %228 : vector<2x32xf32>
    %231 = arith.divf %229, %230 : vector<2x32xf32>
    %232 = vector.extract_strided_slice %224 {offsets = [0, 32], sizes = [2, 32], strides = [1, 1]} : vector<2x128xf32> to vector<2x32xf32>
    %233 = arith.negf %232 : vector<2x32xf32>
    %234 = math.exp %233 : vector<2x32xf32>
    %cst_59 = arith.constant 1.000000e+00 : f32
    %235 = vector.broadcast %cst_59 : f32 to vector<2x32xf32>
    %236 = arith.addf %235, %234 : vector<2x32xf32>
    %237 = arith.divf %235, %236 : vector<2x32xf32>
    %238 = vector.extract_strided_slice %224 {offsets = [0, 64], sizes = [2, 32], strides = [1, 1]} : vector<2x128xf32> to vector<2x32xf32>
    %239 = math.tanh %238 : vector<2x32xf32>
    %240 = vector.extract_strided_slice %224 {offsets = [0, 96], sizes = [2, 32], strides = [1, 1]} : vector<2x128xf32> to vector<2x32xf32>
    %241 = arith.negf %240 : vector<2x32xf32>
    %242 = math.exp %241 : vector<2x32xf32>
    %cst_60 = arith.constant 1.000000e+00 : f32
    %243 = vector.broadcast %cst_60 : f32 to vector<2x32xf32>
    %244 = arith.addf %243, %242 : vector<2x32xf32>
    %245 = arith.divf %243, %244 : vector<2x32xf32>
    %246 = arith.mulf %237, %225 : vector<2x32xf32>
    %247 = arith.mulf %231, %239 : vector<2x32xf32>
    %248 = arith.addf %246, %247 : vector<2x32xf32>
    %249 = math.tanh %248 : vector<2x32xf32>
    %250 = arith.mulf %245, %249 : vector<2x32xf32>
    %251 = vector.extract_strided_slice %223 {offsets = [0, 128], sizes = [2, 128], strides = [1, 1]} : vector<2x256xf32> to vector<2x128xf32>
    %252 = vector.extract_strided_slice %214 {offsets = [0, 32], sizes = [2, 32], strides = [1, 1]} : vector<2x64xf32> to vector<2x32xf32>
    %253 = vector.extract_strided_slice %251 {offsets = [0, 0], sizes = [2, 32], strides = [1, 1]} : vector<2x128xf32> to vector<2x32xf32>
    %254 = arith.negf %253 : vector<2x32xf32>
    %255 = math.exp %254 : vector<2x32xf32>
    %cst_61 = arith.constant 1.000000e+00 : f32
    %256 = vector.broadcast %cst_61 : f32 to vector<2x32xf32>
    %257 = arith.addf %256, %255 : vector<2x32xf32>
    %258 = arith.divf %256, %257 : vector<2x32xf32>
    %259 = vector.extract_strided_slice %251 {offsets = [0, 32], sizes = [2, 32], strides = [1, 1]} : vector<2x128xf32> to vector<2x32xf32>
    %260 = arith.negf %259 : vector<2x32xf32>
    %261 = math.exp %260 : vector<2x32xf32>
    %cst_62 = arith.constant 1.000000e+00 : f32
    %262 = vector.broadcast %cst_62 : f32 to vector<2x32xf32>
    %263 = arith.addf %262, %261 : vector<2x32xf32>
    %264 = arith.divf %262, %263 : vector<2x32xf32>
    %265 = vector.extract_strided_slice %251 {offsets = [0, 64], sizes = [2, 32], strides = [1, 1]} : vector<2x128xf32> to vector<2x32xf32>
    %266 = math.tanh %265 : vector<2x32xf32>
    %267 = vector.extract_strided_slice %251 {offsets = [0, 96], sizes = [2, 32], strides = [1, 1]} : vector<2x128xf32> to vector<2x32xf32>
    %268 = arith.negf %267 : vector<2x32xf32>
    %269 = math.exp %268 : vector<2x32xf32>
    %cst_63 = arith.constant 1.000000e+00 : f32
    %270 = vector.broadcast %cst_63 : f32 to vector<2x32xf32>
    %271 = arith.addf %270, %269 : vector<2x32xf32>
    %272 = arith.divf %270, %271 : vector<2x32xf32>
    %273 = arith.mulf %264, %252 : vector<2x32xf32>
    %274 = arith.mulf %258, %266 : vector<2x32xf32>
    %275 = arith.addf %273, %274 : vector<2x32xf32>
    %276 = math.tanh %275 : vector<2x32xf32>
    %277 = arith.mulf %272, %276 : vector<2x32xf32>
    %c3_64 = arith.constant 3 : index
    %c0_65 = arith.constant 0 : index
    %c0_66 = arith.constant 0 : index
    %278 = vector.load %arg2[%c3_64, %c0_65, %c0_66] : memref<8x2x32xf32, #tpu.memory_space<vmem>>, vector<1x2x32xf32>
    %279 = vector.shape_cast %278 : vector<1x2x32xf32> to vector<2x32xf32>
    %280 = vector.shape_cast %250 : vector<2x32xf32> to vector<1x2x32xf32>
    tpu.vector_store %arg2[%c3_64, %c0_65, %c0_66], %280 {strides = array<i32>} : memref<8x2x32xf32, #tpu.memory_space<vmem>>, vector<1x2x32xf32>,
    %c4_67 = arith.constant 4 : index
    %c0_68 = arith.constant 0 : index
    %c0_69 = arith.constant 0 : index
    %281 = vector.load %arg3[%c4_67, %c0_68, %c0_69] : memref<8x2x32xf32, #tpu.memory_space<vmem>>, vector<1x2x32xf32>
    %282 = vector.shape_cast %281 : vector<1x2x32xf32> to vector<2x32xf32>
    %283 = vector.shape_cast %277 : vector<2x32xf32> to vector<1x2x32xf32>
    tpu.vector_store %arg3[%c4_67, %c0_68, %c0_69], %283 {strides = array<i32>} : memref<8x2x32xf32, #tpu.memory_space<vmem>>, vector<1x2x32xf32>,
    %284 = tpu.concatenate %250, %277 in 1 : vector<2x32xf32>, vector<2x32xf32> -> vector<2x64xf32>
    %285 = tpu.concatenate %248, %275 in 1 : vector<2x32xf32>, vector<2x32xf32> -> vector<2x64xf32>
    %c4_70 = arith.constant 4 : index
    %c0_71 = arith.constant 0 : index
    %c0_72 = arith.constant 0 : index
    %286 = vector.load %arg0[%c4_70, %c0_71, %c0_72] : memref<8x2x256xf32, #tpu.memory_space<vmem>>, vector<1x2x256xf32>
    %287 = vector.shape_cast %286 : vector<1x2x256xf32> to vector<2x256xf32>
    %c3_73 = arith.constant 3 : index
    %c0_74 = arith.constant 0 : index
    %c0_75 = arith.constant 0 : index
    %288 = vector.load %arg0[%c3_73, %c0_74, %c0_75] : memref<8x2x256xf32, #tpu.memory_space<vmem>>, vector<1x2x256xf32>
    %289 = vector.shape_cast %288 : vector<1x2x256xf32> to vector<2x256xf32>
    %290 = vector.extract_strided_slice %287 {offsets = [0, 0], sizes = [2, 128], strides = [1, 1]} : vector<2x256xf32> to vector<2x128xf32>
    %291 = vector.extract_strided_slice %289 {offsets = [0, 128], sizes = [2, 128], strides = [1, 1]} : vector<2x256xf32> to vector<2x128xf32>
    %292 = tpu.concatenate %290, %291 in 1 : vector<2x128xf32>, vector<2x128xf32> -> vector<2x256xf32>
    %cst_76 = arith.constant dense<0.000000e+00> : vector<2x256xf32>
    %293 = tpu.matmul %284, %0, %cst_76 {dimension_numbers = #tpu.dot_dimension_numbers<[1], [0], [0], [1], [0, 0, 1, 1], [], []>} : vector<2x64xf32>, vector<64x256xf32>, vector<2x256xf32> -> vector<2x256xf32>
    %294 = arith.addf %292, %293 : vector<2x256xf32>
    %295 = vector.extract_strided_slice %294 {offsets = [0, 0], sizes = [2, 128], strides = [1, 1]} : vector<2x256xf32> to vector<2x128xf32>
    %296 = vector.extract_strided_slice %285 {offsets = [0, 0], sizes = [2, 32], strides = [1, 1]} : vector<2x64xf32> to vector<2x32xf32>
    %297 = vector.extract_strided_slice %295 {offsets = [0, 0], sizes = [2, 32], strides = [1, 1]} : vector<2x128xf32> to vector<2x32xf32>
    %298 = arith.negf %297 : vector<2x32xf32>
    %299 = math.exp %298 : vector<2x32xf32>
    %cst_77 = arith.constant 1.000000e+00 : f32
    %300 = vector.broadcast %cst_77 : f32 to vector<2x32xf32>
    %301 = arith.addf %300, %299 : vector<2x32xf32>
    %302 = arith.divf %300, %301 : vector<2x32xf32>
    %303 = vector.extract_strided_slice %295 {offsets = [0, 32], sizes = [2, 32], strides = [1, 1]} : vector<2x128xf32> to vector<2x32xf32>
    %304 = arith.negf %303 : vector<2x32xf32>
    %305 = math.exp %304 : vector<2x32xf32>
    %cst_78 = arith.constant 1.000000e+00 : f32
    %306 = vector.broadcast %cst_78 : f32 to vector<2x32xf32>
    %307 = arith.addf %306, %305 : vector<2x32xf32>
    %308 = arith.divf %306, %307 : vector<2x32xf32>
    %309 = vector.extract_strided_slice %295 {offsets = [0, 64], sizes = [2, 32], strides = [1, 1]} : vector<2x128xf32> to vector<2x32xf32>
    %310 = math.tanh %309 : vector<2x32xf32>
    %311 = vector.extract_strided_slice %295 {offsets = [0, 96], sizes = [2, 32], strides = [1, 1]} : vector<2x128xf32> to vector<2x32xf32>
    %312 = arith.negf %311 : vector<2x32xf32>
    %313 = math.exp %312 : vector<2x32xf32>
    %cst_79 = arith.constant 1.000000e+00 : f32
    %314 = vector.broadcast %cst_79 : f32 to vector<2x32xf32>
    %315 = arith.addf %314, %313 : vector<2x32xf32>
    %316 = arith.divf %314, %315 : vector<2x32xf32>
    %317 = arith.mulf %308, %296 : vector<2x32xf32>
    %318 = arith.mulf %302, %310 : vector<2x32xf32>
    %319 = arith.addf %317, %318 : vector<2x32xf32>
    %320 = math.tanh %319 : vector<2x32xf32>
    %321 = arith.mulf %316, %320 : vector<2x32xf32>
    %322 = vector.extract_strided_slice %294 {offsets = [0, 128], sizes = [2, 128], strides = [1, 1]} : vector<2x256xf32> to vector<2x128xf32>
    %323 = vector.extract_strided_slice %285 {offsets = [0, 32], sizes = [2, 32], strides = [1, 1]} : vector<2x64xf32> to vector<2x32xf32>
    %324 = vector.extract_strided_slice %322 {offsets = [0, 0], sizes = [2, 32], strides = [1, 1]} : vector<2x128xf32> to vector<2x32xf32>
    %325 = arith.negf %324 : vector<2x32xf32>
    %326 = math.exp %325 : vector<2x32xf32>
    %cst_80 = arith.constant 1.000000e+00 : f32
    %327 = vector.broadcast %cst_80 : f32 to vector<2x32xf32>
    %328 = arith.addf %327, %326 : vector<2x32xf32>
    %329 = arith.divf %327, %328 : vector<2x32xf32>
    %330 = vector.extract_strided_slice %322 {offsets = [0, 32], sizes = [2, 32], strides = [1, 1]} : vector<2x128xf32> to vector<2x32xf32>
    %331 = arith.negf %330 : vector<2x32xf32>
    %332 = math.exp %331 : vector<2x32xf32>
    %cst_81 = arith.constant 1.000000e+00 : f32
    %333 = vector.broadcast %cst_81 : f32 to vector<2x32xf32>
    %334 = arith.addf %333, %332 : vector<2x32xf32>
    %335 = arith.divf %333, %334 : vector<2x32xf32>
    %336 = vector.extract_strided_slice %322 {offsets = [0, 64], sizes = [2, 32], strides = [1, 1]} : vector<2x128xf32> to vector<2x32xf32>
    %337 = math.tanh %336 : vector<2x32xf32>
    %338 = vector.extract_strided_slice %322 {offsets = [0, 96], sizes = [2, 32], strides = [1, 1]} : vector<2x128xf32> to vector<2x32xf32>
    %339 = arith.negf %338 : vector<2x32xf32>
    %340 = math.exp %339 : vector<2x32xf32>
    %cst_82 = arith.constant 1.000000e+00 : f32
    %341 = vector.broadcast %cst_82 : f32 to vector<2x32xf32>
    %342 = arith.addf %341, %340 : vector<2x32xf32>
    %343 = arith.divf %341, %342 : vector<2x32xf32>
    %344 = arith.mulf %335, %323 : vector<2x32xf32>
    %345 = arith.mulf %329, %337 : vector<2x32xf32>
    %346 = arith.addf %344, %345 : vector<2x32xf32>
    %347 = math.tanh %346 : vector<2x32xf32>
    %348 = arith.mulf %343, %347 : vector<2x32xf32>
    %c4_83 = arith.constant 4 : index
    %c0_84 = arith.constant 0 : index
    %c0_85 = arith.constant 0 : index
    %349 = vector.load %arg2[%c4_83, %c0_84, %c0_85] : memref<8x2x32xf32, #tpu.memory_space<vmem>>, vector<1x2x32xf32>
    %350 = vector.shape_cast %349 : vector<1x2x32xf32> to vector<2x32xf32>
    %351 = vector.shape_cast %321 : vector<2x32xf32> to vector<1x2x32xf32>
    tpu.vector_store %arg2[%c4_83, %c0_84, %c0_85], %351 {strides = array<i32>} : memref<8x2x32xf32, #tpu.memory_space<vmem>>, vector<1x2x32xf32>,
    %c3_86 = arith.constant 3 : index
    %c0_87 = arith.constant 0 : index
    %c0_88 = arith.constant 0 : index
    %352 = vector.load %arg3[%c3_86, %c0_87, %c0_88] : memref<8x2x32xf32, #tpu.memory_space<vmem>>, vector<1x2x32xf32>
    %353 = vector.shape_cast %352 : vector<1x2x32xf32> to vector<2x32xf32>
    %354 = vector.shape_cast %348 : vector<2x32xf32> to vector<1x2x32xf32>
    tpu.vector_store %arg3[%c3_86, %c0_87, %c0_88], %354 {strides = array<i32>} : memref<8x2x32xf32, #tpu.memory_space<vmem>>, vector<1x2x32xf32>,
    %355 = tpu.concatenate %321, %348 in 1 : vector<2x32xf32>, vector<2x32xf32> -> vector<2x64xf32>
    %356 = tpu.concatenate %319, %346 in 1 : vector<2x32xf32>, vector<2x32xf32> -> vector<2x64xf32>
    %c5_89 = arith.constant 5 : index
    %c0_90 = arith.constant 0 : index
    %c0_91 = arith.constant 0 : index
    %357 = vector.load %arg0[%c5_89, %c0_90, %c0_91] : memref<8x2x256xf32, #tpu.memory_space<vmem>>, vector<1x2x256xf32>
    %358 = vector.shape_cast %357 : vector<1x2x256xf32> to vector<2x256xf32>
    %c2_92 = arith.constant 2 : index
    %c0_93 = arith.constant 0 : index
    %c0_94 = arith.constant 0 : index
    %359 = vector.load %arg0[%c2_92, %c0_93, %c0_94] : memref<8x2x256xf32, #tpu.memory_space<vmem>>, vector<1x2x256xf32>
    %360 = vector.shape_cast %359 : vector<1x2x256xf32> to vector<2x256xf32>
    %361 = vector.extract_strided_slice %358 {offsets = [0, 0], sizes = [2, 128], strides = [1, 1]} : vector<2x256xf32> to vector<2x128xf32>
    %362 = vector.extract_strided_slice %360 {offsets = [0, 128], sizes = [2, 128], strides = [1, 1]} : vector<2x256xf32> to vector<2x128xf32>
    %363 = tpu.concatenate %361, %362 in 1 : vector<2x128xf32>, vector<2x128xf32> -> vector<2x256xf32>
    %cst_95 = arith.constant dense<0.000000e+00> : vector<2x256xf32>
    %364 = tpu.matmul %355, %0, %cst_95 {dimension_numbers = #tpu.dot_dimension_numbers<[1], [0], [0], [1], [0, 0, 1, 1], [], []>} : vector<2x64xf32>, vector<64x256xf32>, vector<2x256xf32> -> vector<2x256xf32>
    %365 = arith.addf %363, %364 : vector<2x256xf32>
    %366 = vector.extract_strided_slice %365 {offsets = [0, 0], sizes = [2, 128], strides = [1, 1]} : vector<2x256xf32> to vector<2x128xf32>
    %367 = vector.extract_strided_slice %356 {offsets = [0, 0], sizes = [2, 32], strides = [1, 1]} : vector<2x64xf32> to vector<2x32xf32>
    %368 = vector.extract_strided_slice %366 {offsets = [0, 0], sizes = [2, 32], strides = [1, 1]} : vector<2x128xf32> to vector<2x32xf32>
    %369 = arith.negf %368 : vector<2x32xf32>
    %370 = math.exp %369 : vector<2x32xf32>
    %cst_96 = arith.constant 1.000000e+00 : f32
    %371 = vector.broadcast %cst_96 : f32 to vector<2x32xf32>
    %372 = arith.addf %371, %370 : vector<2x32xf32>
    %373 = arith.divf %371, %372 : vector<2x32xf32>
    %374 = vector.extract_strided_slice %366 {offsets = [0, 32], sizes = [2, 32], strides = [1, 1]} : vector<2x128xf32> to vector<2x32xf32>
    %375 = arith.negf %374 : vector<2x32xf32>
    %376 = math.exp %375 : vector<2x32xf32>
    %cst_97 = arith.constant 1.000000e+00 : f32
    %377 = vector.broadcast %cst_97 : f32 to vector<2x32xf32>
    %378 = arith.addf %377, %376 : vector<2x32xf32>
    %379 = arith.divf %377, %378 : vector<2x32xf32>
    %380 = vector.extract_strided_slice %366 {offsets = [0, 64], sizes = [2, 32], strides = [1, 1]} : vector<2x128xf32> to vector<2x32xf32>
    %381 = math.tanh %380 : vector<2x32xf32>
    %382 = vector.extract_strided_slice %366 {offsets = [0, 96], sizes = [2, 32], strides = [1, 1]} : vector<2x128xf32> to vector<2x32xf32>
    %383 = arith.negf %382 : vector<2x32xf32>
    %384 = math.exp %383 : vector<2x32xf32>
    %cst_98 = arith.constant 1.000000e+00 : f32
    %385 = vector.broadcast %cst_98 : f32 to vector<2x32xf32>
    %386 = arith.addf %385, %384 : vector<2x32xf32>
    %387 = arith.divf %385, %386 : vector<2x32xf32>
    %388 = arith.mulf %379, %367 : vector<2x32xf32>
    %389 = arith.mulf %373, %381 : vector<2x32xf32>
    %390 = arith.addf %388, %389 : vector<2x32xf32>
    %391 = math.tanh %390 : vector<2x32xf32>
    %392 = arith.mulf %387, %391 : vector<2x32xf32>
    %393 = vector.extract_strided_slice %365 {offsets = [0, 128], sizes = [2, 128], strides = [1, 1]} : vector<2x256xf32> to vector<2x128xf32>
    %394 = vector.extract_strided_slice %356 {offsets = [0, 32], sizes = [2, 32], strides = [1, 1]} : vector<2x64xf32> to vector<2x32xf32>
    %395 = vector.extract_strided_slice %393 {offsets = [0, 0], sizes = [2, 32], strides = [1, 1]} : vector<2x128xf32> to vector<2x32xf32>
    %396 = arith.negf %395 : vector<2x32xf32>
    %397 = math.exp %396 : vector<2x32xf32>
    %cst_99 = arith.constant 1.000000e+00 : f32
    %398 = vector.broadcast %cst_99 : f32 to vector<2x32xf32>
    %399 = arith.addf %398, %397 : vector<2x32xf32>
    %400 = arith.divf %398, %399 : vector<2x32xf32>
    %401 = vector.extract_strided_slice %393 {offsets = [0, 32], sizes = [2, 32], strides = [1, 1]} : vector<2x128xf32> to vector<2x32xf32>
    %402 = arith.negf %401 : vector<2x32xf32>
    %403 = math.exp %402 : vector<2x32xf32>
    %cst_100 = arith.constant 1.000000e+00 : f32
    %404 = vector.broadcast %cst_100 : f32 to vector<2x32xf32>
    %405 = arith.addf %404, %403 : vector<2x32xf32>
    %406 = arith.divf %404, %405 : vector<2x32xf32>
    %407 = vector.extract_strided_slice %393 {offsets = [0, 64], sizes = [2, 32], strides = [1, 1]} : vector<2x128xf32> to vector<2x32xf32>
    %408 = math.tanh %407 : vector<2x32xf32>
    %409 = vector.extract_strided_slice %393 {offsets = [0, 96], sizes = [2, 32], strides = [1, 1]} : vector<2x128xf32> to vector<2x32xf32>
    %410 = arith.negf %409 : vector<2x32xf32>
    %411 = math.exp %410 : vector<2x32xf32>
    %cst_101 = arith.constant 1.000000e+00 : f32
    %412 = vector.broadcast %cst_101 : f32 to vector<2x32xf32>
    %413 = arith.addf %412, %411 : vector<2x32xf32>
    %414 = arith.divf %412, %413 : vector<2x32xf32>
    %415 = arith.mulf %406, %394 : vector<2x32xf32>
    %416 = arith.mulf %400, %408 : vector<2x32xf32>
    %417 = arith.addf %415, %416 : vector<2x32xf32>
    %418 = math.tanh %417 : vector<2x32xf32>
    %419 = arith.mulf %414, %418 : vector<2x32xf32>
    %c5_102 = arith.constant 5 : index
    %c0_103 = arith.constant 0 : index
    %c0_104 = arith.constant 0 : index
    %420 = vector.load %arg2[%c5_102, %c0_103, %c0_104] : memref<8x2x32xf32, #tpu.memory_space<vmem>>, vector<1x2x32xf32>
    %421 = vector.shape_cast %420 : vector<1x2x32xf32> to vector<2x32xf32>
    %422 = vector.shape_cast %392 : vector<2x32xf32> to vector<1x2x32xf32>
    tpu.vector_store %arg2[%c5_102, %c0_103, %c0_104], %422 {strides = array<i32>} : memref<8x2x32xf32, #tpu.memory_space<vmem>>, vector<1x2x32xf32>,
    %c2_105 = arith.constant 2 : index
    %c0_106 = arith.constant 0 : index
    %c0_107 = arith.constant 0 : index
    %423 = vector.load %arg3[%c2_105, %c0_106, %c0_107] : memref<8x2x32xf32, #tpu.memory_space<vmem>>, vector<1x2x32xf32>
    %424 = vector.shape_cast %423 : vector<1x2x32xf32> to vector<2x32xf32>
    %425 = vector.shape_cast %419 : vector<2x32xf32> to vector<1x2x32xf32>
    tpu.vector_store %arg3[%c2_105, %c0_106, %c0_107], %425 {strides = array<i32>} : memref<8x2x32xf32, #tpu.memory_space<vmem>>, vector<1x2x32xf32>,
    %426 = tpu.concatenate %392, %419 in 1 : vector<2x32xf32>, vector<2x32xf32> -> vector<2x64xf32>
    %427 = tpu.concatenate %390, %417 in 1 : vector<2x32xf32>, vector<2x32xf32> -> vector<2x64xf32>
    %c6_108 = arith.constant 6 : index
    %c0_109 = arith.constant 0 : index
    %c0_110 = arith.constant 0 : index
    %428 = vector.load %arg0[%c6_108, %c0_109, %c0_110] : memref<8x2x256xf32, #tpu.memory_space<vmem>>, vector<1x2x256xf32>
    %429 = vector.shape_cast %428 : vector<1x2x256xf32> to vector<2x256xf32>
    %c1_111 = arith.constant 1 : index
    %c0_112 = arith.constant 0 : index
    %c0_113 = arith.constant 0 : index
    %430 = vector.load %arg0[%c1_111, %c0_112, %c0_113] : memref<8x2x256xf32, #tpu.memory_space<vmem>>, vector<1x2x256xf32>
    %431 = vector.shape_cast %430 : vector<1x2x256xf32> to vector<2x256xf32>
    %432 = vector.extract_strided_slice %429 {offsets = [0, 0], sizes = [2, 128], strides = [1, 1]} : vector<2x256xf32> to vector<2x128xf32>
    %433 = vector.extract_strided_slice %431 {offsets = [0, 128], sizes = [2, 128], strides = [1, 1]} : vector<2x256xf32> to vector<2x128xf32>
    %434 = tpu.concatenate %432, %433 in 1 : vector<2x128xf32>, vector<2x128xf32> -> vector<2x256xf32>
    %cst_114 = arith.constant dense<0.000000e+00> : vector<2x256xf32>
    %435 = tpu.matmul %426, %0, %cst_114 {dimension_numbers = #tpu.dot_dimension_numbers<[1], [0], [0], [1], [0, 0, 1, 1], [], []>} : vector<2x64xf32>, vector<64x256xf32>, vector<2x256xf32> -> vector<2x256xf32>
    %436 = arith.addf %434, %435 : vector<2x256xf32>
    %437 = vector.extract_strided_slice %436 {offsets = [0, 0], sizes = [2, 128], strides = [1, 1]} : vector<2x256xf32> to vector<2x128xf32>
    %438 = vector.extract_strided_slice %427 {offsets = [0, 0], sizes = [2, 32], strides = [1, 1]} : vector<2x64xf32> to vector<2x32xf32>
    %439 = vector.extract_strided_slice %437 {offsets = [0, 0], sizes = [2, 32], strides = [1, 1]} : vector<2x128xf32> to vector<2x32xf32>
    %440 = arith.negf %439 : vector<2x32xf32>
    %441 = math.exp %440 : vector<2x32xf32>
    %cst_115 = arith.constant 1.000000e+00 : f32
    %442 = vector.broadcast %cst_115 : f32 to vector<2x32xf32>
    %443 = arith.addf %442, %441 : vector<2x32xf32>
    %444 = arith.divf %442, %443 : vector<2x32xf32>
    %445 = vector.extract_strided_slice %437 {offsets = [0, 32], sizes = [2, 32], strides = [1, 1]} : vector<2x128xf32> to vector<2x32xf32>
    %446 = arith.negf %445 : vector<2x32xf32>
    %447 = math.exp %446 : vector<2x32xf32>
    %cst_116 = arith.constant 1.000000e+00 : f32
    %448 = vector.broadcast %cst_116 : f32 to vector<2x32xf32>
    %449 = arith.addf %448, %447 : vector<2x32xf32>
    %450 = arith.divf %448, %449 : vector<2x32xf32>
    %451 = vector.extract_strided_slice %437 {offsets = [0, 64], sizes = [2, 32], strides = [1, 1]} : vector<2x128xf32> to vector<2x32xf32>
    %452 = math.tanh %451 : vector<2x32xf32>
    %453 = vector.extract_strided_slice %437 {offsets = [0, 96], sizes = [2, 32], strides = [1, 1]} : vector<2x128xf32> to vector<2x32xf32>
    %454 = arith.negf %453 : vector<2x32xf32>
    %455 = math.exp %454 : vector<2x32xf32>
    %cst_117 = arith.constant 1.000000e+00 : f32
    %456 = vector.broadcast %cst_117 : f32 to vector<2x32xf32>
    %457 = arith.addf %456, %455 : vector<2x32xf32>
    %458 = arith.divf %456, %457 : vector<2x32xf32>
    %459 = arith.mulf %450, %438 : vector<2x32xf32>
    %460 = arith.mulf %444, %452 : vector<2x32xf32>
    %461 = arith.addf %459, %460 : vector<2x32xf32>
    %462 = math.tanh %461 : vector<2x32xf32>
    %463 = arith.mulf %458, %462 : vector<2x32xf32>
    %464 = vector.extract_strided_slice %436 {offsets = [0, 128], sizes = [2, 128], strides = [1, 1]} : vector<2x256xf32> to vector<2x128xf32>
    %465 = vector.extract_strided_slice %427 {offsets = [0, 32], sizes = [2, 32], strides = [1, 1]} : vector<2x64xf32> to vector<2x32xf32>
    %466 = vector.extract_strided_slice %464 {offsets = [0, 0], sizes = [2, 32], strides = [1, 1]} : vector<2x128xf32> to vector<2x32xf32>
    %467 = arith.negf %466 : vector<2x32xf32>
    %468 = math.exp %467 : vector<2x32xf32>
    %cst_118 = arith.constant 1.000000e+00 : f32
    %469 = vector.broadcast %cst_118 : f32 to vector<2x32xf32>
    %470 = arith.addf %469, %468 : vector<2x32xf32>
    %471 = arith.divf %469, %470 : vector<2x32xf32>
    %472 = vector.extract_strided_slice %464 {offsets = [0, 32], sizes = [2, 32], strides = [1, 1]} : vector<2x128xf32> to vector<2x32xf32>
    %473 = arith.negf %472 : vector<2x32xf32>
    %474 = math.exp %473 : vector<2x32xf32>
    %cst_119 = arith.constant 1.000000e+00 : f32
    %475 = vector.broadcast %cst_119 : f32 to vector<2x32xf32>
    %476 = arith.addf %475, %474 : vector<2x32xf32>
    %477 = arith.divf %475, %476 : vector<2x32xf32>
    %478 = vector.extract_strided_slice %464 {offsets = [0, 64], sizes = [2, 32], strides = [1, 1]} : vector<2x128xf32> to vector<2x32xf32>
    %479 = math.tanh %478 : vector<2x32xf32>
    %480 = vector.extract_strided_slice %464 {offsets = [0, 96], sizes = [2, 32], strides = [1, 1]} : vector<2x128xf32> to vector<2x32xf32>
    %481 = arith.negf %480 : vector<2x32xf32>
    %482 = math.exp %481 : vector<2x32xf32>
    %cst_120 = arith.constant 1.000000e+00 : f32
    %483 = vector.broadcast %cst_120 : f32 to vector<2x32xf32>
    %484 = arith.addf %483, %482 : vector<2x32xf32>
    %485 = arith.divf %483, %484 : vector<2x32xf32>
    %486 = arith.mulf %477, %465 : vector<2x32xf32>
    %487 = arith.mulf %471, %479 : vector<2x32xf32>
    %488 = arith.addf %486, %487 : vector<2x32xf32>
    %489 = math.tanh %488 : vector<2x32xf32>
    %490 = arith.mulf %485, %489 : vector<2x32xf32>
    %c6_121 = arith.constant 6 : index
    %c0_122 = arith.constant 0 : index
    %c0_123 = arith.constant 0 : index
    %491 = vector.load %arg2[%c6_121, %c0_122, %c0_123] : memref<8x2x32xf32, #tpu.memory_space<vmem>>, vector<1x2x32xf32>
    %492 = vector.shape_cast %491 : vector<1x2x32xf32> to vector<2x32xf32>
    %493 = vector.shape_cast %463 : vector<2x32xf32> to vector<1x2x32xf32>
    tpu.vector_store %arg2[%c6_121, %c0_122, %c0_123], %493 {strides = array<i32>} : memref<8x2x32xf32, #tpu.memory_space<vmem>>, vector<1x2x32xf32>,
    %c1_124 = arith.constant 1 : index
    %c0_125 = arith.constant 0 : index
    %c0_126 = arith.constant 0 : index
    %494 = vector.load %arg3[%c1_124, %c0_125, %c0_126] : memref<8x2x32xf32, #tpu.memory_space<vmem>>, vector<1x2x32xf32>
    %495 = vector.shape_cast %494 : vector<1x2x32xf32> to vector<2x32xf32>
    %496 = vector.shape_cast %490 : vector<2x32xf32> to vector<1x2x32xf32>
    tpu.vector_store %arg3[%c1_124, %c0_125, %c0_126], %496 {strides = array<i32>} : memref<8x2x32xf32, #tpu.memory_space<vmem>>, vector<1x2x32xf32>,
    %497 = tpu.concatenate %463, %490 in 1 : vector<2x32xf32>, vector<2x32xf32> -> vector<2x64xf32>
    %498 = tpu.concatenate %461, %488 in 1 : vector<2x32xf32>, vector<2x32xf32> -> vector<2x64xf32>
    %c7_127 = arith.constant 7 : index
    %c0_128 = arith.constant 0 : index
    %c0_129 = arith.constant 0 : index
    %499 = vector.load %arg0[%c7_127, %c0_128, %c0_129] : memref<8x2x256xf32, #tpu.memory_space<vmem>>, vector<1x2x256xf32>
    %500 = vector.shape_cast %499 : vector<1x2x256xf32> to vector<2x256xf32>
    %c0_130 = arith.constant 0 : index
    %c0_131 = arith.constant 0 : index
    %c0_132 = arith.constant 0 : index
    %501 = vector.load %arg0[%c0_130, %c0_131, %c0_132] : memref<8x2x256xf32, #tpu.memory_space<vmem>>, vector<1x2x256xf32>
    %502 = vector.shape_cast %501 : vector<1x2x256xf32> to vector<2x256xf32>
    %503 = vector.extract_strided_slice %500 {offsets = [0, 0], sizes = [2, 128], strides = [1, 1]} : vector<2x256xf32> to vector<2x128xf32>
    %504 = vector.extract_strided_slice %502 {offsets = [0, 128], sizes = [2, 128], strides = [1, 1]} : vector<2x256xf32> to vector<2x128xf32>
    %505 = tpu.concatenate %503, %504 in 1 : vector<2x128xf32>, vector<2x128xf32> -> vector<2x256xf32>
    %cst_133 = arith.constant dense<0.000000e+00> : vector<2x256xf32>
    %506 = tpu.matmul %497, %0, %cst_133 {dimension_numbers = #tpu.dot_dimension_numbers<[1], [0], [0], [1], [0, 0, 1, 1], [], []>} : vector<2x64xf32>, vector<64x256xf32>, vector<2x256xf32> -> vector<2x256xf32>
    %507 = arith.addf %505, %506 : vector<2x256xf32>
    %508 = vector.extract_strided_slice %507 {offsets = [0, 0], sizes = [2, 128], strides = [1, 1]} : vector<2x256xf32> to vector<2x128xf32>
    %509 = vector.extract_strided_slice %498 {offsets = [0, 0], sizes = [2, 32], strides = [1, 1]} : vector<2x64xf32> to vector<2x32xf32>
    %510 = vector.extract_strided_slice %508 {offsets = [0, 0], sizes = [2, 32], strides = [1, 1]} : vector<2x128xf32> to vector<2x32xf32>
    %511 = arith.negf %510 : vector<2x32xf32>
    %512 = math.exp %511 : vector<2x32xf32>
    %cst_134 = arith.constant 1.000000e+00 : f32
    %513 = vector.broadcast %cst_134 : f32 to vector<2x32xf32>
    %514 = arith.addf %513, %512 : vector<2x32xf32>
    %515 = arith.divf %513, %514 : vector<2x32xf32>
    %516 = vector.extract_strided_slice %508 {offsets = [0, 32], sizes = [2, 32], strides = [1, 1]} : vector<2x128xf32> to vector<2x32xf32>
    %517 = arith.negf %516 : vector<2x32xf32>
    %518 = math.exp %517 : vector<2x32xf32>
    %cst_135 = arith.constant 1.000000e+00 : f32
    %519 = vector.broadcast %cst_135 : f32 to vector<2x32xf32>
    %520 = arith.addf %519, %518 : vector<2x32xf32>
    %521 = arith.divf %519, %520 : vector<2x32xf32>
    %522 = vector.extract_strided_slice %508 {offsets = [0, 64], sizes = [2, 32], strides = [1, 1]} : vector<2x128xf32> to vector<2x32xf32>
    %523 = math.tanh %522 : vector<2x32xf32>
    %524 = vector.extract_strided_slice %508 {offsets = [0, 96], sizes = [2, 32], strides = [1, 1]} : vector<2x128xf32> to vector<2x32xf32>
    %525 = arith.negf %524 : vector<2x32xf32>
    %526 = math.exp %525 : vector<2x32xf32>
    %cst_136 = arith.constant 1.000000e+00 : f32
    %527 = vector.broadcast %cst_136 : f32 to vector<2x32xf32>
    %528 = arith.addf %527, %526 : vector<2x32xf32>
    %529 = arith.divf %527, %528 : vector<2x32xf32>
    %530 = arith.mulf %521, %509 : vector<2x32xf32>
    %531 = arith.mulf %515, %523 : vector<2x32xf32>
    %532 = arith.addf %530, %531 : vector<2x32xf32>
    %533 = math.tanh %532 : vector<2x32xf32>
    %534 = arith.mulf %529, %533 : vector<2x32xf32>
    %535 = vector.extract_strided_slice %507 {offsets = [0, 128], sizes = [2, 128], strides = [1, 1]} : vector<2x256xf32> to vector<2x128xf32>
    %536 = vector.extract_strided_slice %498 {offsets = [0, 32], sizes = [2, 32], strides = [1, 1]} : vector<2x64xf32> to vector<2x32xf32>
    %537 = vector.extract_strided_slice %535 {offsets = [0, 0], sizes = [2, 32], strides = [1, 1]} : vector<2x128xf32> to vector<2x32xf32>
    %538 = arith.negf %537 : vector<2x32xf32>
    %539 = math.exp %538 : vector<2x32xf32>
    %cst_137 = arith.constant 1.000000e+00 : f32
    %540 = vector.broadcast %cst_137 : f32 to vector<2x32xf32>
    %541 = arith.addf %540, %539 : vector<2x32xf32>
    %542 = arith.divf %540, %541 : vector<2x32xf32>
    %543 = vector.extract_strided_slice %535 {offsets = [0, 32], sizes = [2, 32], strides = [1, 1]} : vector<2x128xf32> to vector<2x32xf32>
    %544 = arith.negf %543 : vector<2x32xf32>
    %545 = math.exp %544 : vector<2x32xf32>
    %cst_138 = arith.constant 1.000000e+00 : f32
    %546 = vector.broadcast %cst_138 : f32 to vector<2x32xf32>
    %547 = arith.addf %546, %545 : vector<2x32xf32>
    %548 = arith.divf %546, %547 : vector<2x32xf32>
    %549 = vector.extract_strided_slice %535 {offsets = [0, 64], sizes = [2, 32], strides = [1, 1]} : vector<2x128xf32> to vector<2x32xf32>
    %550 = math.tanh %549 : vector<2x32xf32>
    %551 = vector.extract_strided_slice %535 {offsets = [0, 96], sizes = [2, 32], strides = [1, 1]} : vector<2x128xf32> to vector<2x32xf32>
    %552 = arith.negf %551 : vector<2x32xf32>
    %553 = math.exp %552 : vector<2x32xf32>
    %cst_139 = arith.constant 1.000000e+00 : f32
    %554 = vector.broadcast %cst_139 : f32 to vector<2x32xf32>
    %555 = arith.addf %554, %553 : vector<2x32xf32>
    %556 = arith.divf %554, %555 : vector<2x32xf32>
    %557 = arith.mulf %548, %536 : vector<2x32xf32>
    %558 = arith.mulf %542, %550 : vector<2x32xf32>
    %559 = arith.addf %557, %558 : vector<2x32xf32>
    %560 = math.tanh %559 : vector<2x32xf32>
    %561 = arith.mulf %556, %560 : vector<2x32xf32>
    %c7_140 = arith.constant 7 : index
    %c0_141 = arith.constant 0 : index
    %c0_142 = arith.constant 0 : index
    %562 = vector.load %arg2[%c7_140, %c0_141, %c0_142] : memref<8x2x32xf32, #tpu.memory_space<vmem>>, vector<1x2x32xf32>
    %563 = vector.shape_cast %562 : vector<1x2x32xf32> to vector<2x32xf32>
    %564 = vector.shape_cast %534 : vector<2x32xf32> to vector<1x2x32xf32>
    tpu.vector_store %arg2[%c7_140, %c0_141, %c0_142], %564 {strides = array<i32>} : memref<8x2x32xf32, #tpu.memory_space<vmem>>, vector<1x2x32xf32>,
    %c0_143 = arith.constant 0 : index
    %c0_144 = arith.constant 0 : index
    %c0_145 = arith.constant 0 : index
    %565 = vector.load %arg3[%c0_143, %c0_144, %c0_145] : memref<8x2x32xf32, #tpu.memory_space<vmem>>, vector<1x2x32xf32>
    %566 = vector.shape_cast %565 : vector<1x2x32xf32> to vector<2x32xf32>
    %567 = vector.shape_cast %561 : vector<2x32xf32> to vector<1x2x32xf32>
    tpu.vector_store %arg3[%c0_143, %c0_144, %c0_145], %567 {strides = array<i32>} : memref<8x2x32xf32, #tpu.memory_space<vmem>>, vector<1x2x32xf32>,
    return
  }
}

module attributes {stable_mosaic.version = 11 : i64} {
  func.func @_dec_rec_kernel(%arg0: memref<5x2x128xf32, #tpu.memory_space<vmem>>, %arg1: memref<2x8x64xf32, #tpu.memory_space<vmem>>, %arg2: memref<32x128xf32, #tpu.memory_space<vmem>>, %arg3: memref<1x64xf32, #tpu.memory_space<vmem>>, %arg4: memref<1x32xf32, #tpu.memory_space<vmem>>, %arg5: memref<2x2x8xf32, #tpu.memory_space<vmem>>, %arg6: memref<5x2x96xf32, #tpu.memory_space<vmem>>, %arg7: memref<5x2x8xf32, #tpu.memory_space<vmem>>, %arg8: memref<1x1xf32, #tpu.memory_space<vmem>>) attributes {dimension_semantics = [], scalar_prefetch = 0 : i64, scratch_operands = 0 : i64, tpu.core_type = #tpu.core_type<tc>} {
    %c0 = arith.constant 0 : index
    %c0_0 = arith.constant 0 : index
    %c0_1 = arith.constant 0 : index
    %0 = vector.load %arg1[%c0, %c0_0, %c0_1] : memref<2x8x64xf32, #tpu.memory_space<vmem>>, vector<2x8x64xf32>
    %c0_2 = arith.constant 0 : index
    %c0_3 = arith.constant 0 : index
    %1 = vector.load %arg2[%c0_2, %c0_3] : memref<32x128xf32, #tpu.memory_space<vmem>>, vector<32x128xf32>
    %c0_4 = arith.constant 0 : index
    %c0_5 = arith.constant 0 : index
    %2 = vector.load %arg4[%c0_4, %c0_5] : memref<1x32xf32, #tpu.memory_space<vmem>>, vector<1x32xf32>
    %c0_6 = arith.constant 0 : index
    %c0_7 = arith.constant 0 : index
    %c0_8 = arith.constant 0 : index
    %3 = vector.load %arg5[%c0_6, %c0_7, %c0_8] : memref<2x2x8xf32, #tpu.memory_space<vmem>>, vector<2x2x8xf32>
    %c0_9 = arith.constant 0 : index
    %c0_10 = arith.constant 0 : index
    %4 = vector.load %arg3[%c0_9, %c0_10] : memref<1x64xf32, #tpu.memory_space<vmem>>, vector<1x64xf32>
    %5 = vector.shape_cast %4 : vector<1x64xf32> to vector<1x1x64xf32>
    %6 = vector.broadcast %5 : vector<1x1x64xf32> to vector<2x8x64xf32>
    %7 = arith.mulf %0, %6 : vector<2x8x64xf32>
    %cst = arith.constant dense<0.000000e+00> : vector<2x8xf32>
    %8 = vector.multi_reduction <add>, %7, %cst [2] : vector<2x8x64xf32> to vector<2x8xf32>
    %cst_11 = arith.constant 0.000000e+00 : f32
    %9 = vector.broadcast %cst_11 : f32 to vector<2x32xf32>
    %cst_12 = arith.constant 0.000000e+00 : f32
    %10 = vector.broadcast %cst_12 : f32 to vector<2x8xf32>
    %cst_13 = arith.constant 0.000000e+00 : f32
    %11 = vector.broadcast %cst_13 : f32 to vector<1x1xf32>
    %c0_14 = arith.constant 0 : index
    %c0_15 = arith.constant 0 : index
    %c0_16 = arith.constant 0 : index
    %12 = vector.load %arg0[%c0_14, %c0_15, %c0_16] : memref<5x2x128xf32, #tpu.memory_space<vmem>>, vector<1x2x128xf32>
    %13 = vector.shape_cast %12 : vector<1x2x128xf32> to vector<2x128xf32>
    %cst_17 = arith.constant dense<0.000000e+00> : vector<2x128xf32>
    %14 = tpu.matmul %9, %1, %cst_17 {dimension_numbers = #tpu.dot_dimension_numbers<[1], [0], [0], [1], [0, 0, 1, 1], [], []>} : vector<2x32xf32>, vector<32x128xf32>, vector<2x128xf32> -> vector<2x128xf32>
    %15 = arith.addf %13, %14 : vector<2x128xf32>
    %16 = vector.extract_strided_slice %15 {offsets = [0, 0], sizes = [2, 32], strides = [1, 1]} : vector<2x128xf32> to vector<2x32xf32>
    %17 = arith.negf %16 : vector<2x32xf32>
    %18 = math.exp %17 : vector<2x32xf32>
    %cst_18 = arith.constant 1.000000e+00 : f32
    %19 = vector.broadcast %cst_18 : f32 to vector<2x32xf32>
    %20 = arith.addf %19, %18 : vector<2x32xf32>
    %21 = arith.divf %19, %20 : vector<2x32xf32>
    %22 = vector.extract_strided_slice %15 {offsets = [0, 32], sizes = [2, 32], strides = [1, 1]} : vector<2x128xf32> to vector<2x32xf32>
    %23 = arith.negf %22 : vector<2x32xf32>
    %24 = math.exp %23 : vector<2x32xf32>
    %cst_19 = arith.constant 1.000000e+00 : f32
    %25 = vector.broadcast %cst_19 : f32 to vector<2x32xf32>
    %26 = arith.addf %25, %24 : vector<2x32xf32>
    %27 = arith.divf %25, %26 : vector<2x32xf32>
    %28 = vector.extract_strided_slice %15 {offsets = [0, 64], sizes = [2, 32], strides = [1, 1]} : vector<2x128xf32> to vector<2x32xf32>
    %29 = math.tanh %28 : vector<2x32xf32>
    %30 = vector.extract_strided_slice %15 {offsets = [0, 96], sizes = [2, 32], strides = [1, 1]} : vector<2x128xf32> to vector<2x32xf32>
    %31 = arith.negf %30 : vector<2x32xf32>
    %32 = math.exp %31 : vector<2x32xf32>
    %cst_20 = arith.constant 1.000000e+00 : f32
    %33 = vector.broadcast %cst_20 : f32 to vector<2x32xf32>
    %34 = arith.addf %33, %32 : vector<2x32xf32>
    %35 = arith.divf %33, %34 : vector<2x32xf32>
    %36 = arith.mulf %27, %9 : vector<2x32xf32>
    %37 = arith.mulf %21, %29 : vector<2x32xf32>
    %38 = arith.addf %36, %37 : vector<2x32xf32>
    %39 = math.tanh %38 : vector<2x32xf32>
    %40 = arith.mulf %35, %39 : vector<2x32xf32>
    %41 = vector.broadcast %2 : vector<1x32xf32> to vector<2x32xf32>
    %42 = arith.mulf %40, %41 : vector<2x32xf32>
    %cst_21 = arith.constant dense<0.000000e+00> : vector<2xf32>
    %43 = vector.multi_reduction <add>, %42, %cst_21 [1] : vector<2x32xf32> to vector<2xf32>
    %44 = vector.shape_cast %43 : vector<2xf32> to vector<2x1xf32>
    %45 = vector.shape_cast %44 : vector<2x1xf32> to vector<1x2x1xf32>
    %46 = vector.broadcast %45 : vector<1x2x1xf32> to vector<2x2x8xf32>
    %47 = arith.mulf %3, %46 : vector<2x2x8xf32>
    %cst_22 = arith.constant dense<0.000000e+00> : vector<2x8xf32>
    %48 = vector.multi_reduction <add>, %47, %cst_22 [1] : vector<2x2x8xf32> to vector<2x8xf32>
    %49 = arith.addf %8, %48 : vector<2x8xf32>
    %cst_23 = arith.constant dense<0xFF800000> : vector<2xf32>
    %50 = vector.multi_reduction <maximumf>, %49, %cst_23 [1] : vector<2x8xf32> to vector<2xf32>
    %51 = vector.shape_cast %50 : vector<2xf32> to vector<2x1xf32>
    %52 = vector.broadcast %51 : vector<2x1xf32> to vector<2x8xf32>
    %53 = arith.subf %49, %52 : vector<2x8xf32>
    %54 = math.exp %53 : vector<2x8xf32>
    %cst_24 = arith.constant dense<0.000000e+00> : vector<2xf32>
    %55 = vector.multi_reduction <add>, %54, %cst_24 [1] : vector<2x8xf32> to vector<2xf32>
    %56 = vector.shape_cast %55 : vector<2xf32> to vector<2x1xf32>
    %57 = vector.broadcast %56 : vector<2x1xf32> to vector<2x8xf32>
    %58 = arith.divf %54, %57 : vector<2x8xf32>
    %59 = arith.minimumf %58, %10 : vector<2x8xf32>
    %60 = vector.shape_cast %59 : vector<2x8xf32> to vector<1x2x8xf32>
    %cst_25 = arith.constant dense<0.000000e+00> : vector<1xf32>
    %61 = vector.multi_reduction <add>, %60, %cst_25 [1, 2] : vector<1x2x8xf32> to vector<1xf32>
    %62 = vector.shape_cast %61 : vector<1xf32> to vector<1x1x1xf32>
    %63 = vector.extract %62[0, 0, 0] : f32 from vector<1x1x1xf32>
    %64 = vector.broadcast %63 : f32 to vector<1x1xf32>
    %65 = arith.addf %11, %64 : vector<1x1xf32>
    %66 = arith.addf %10, %58 : vector<2x8xf32>
    %67 = vector.shape_cast %58 : vector<2x8xf32> to vector<2x1x8xf32>
    "tpu.trace_start"() <{level = 10 : i32, message = "bql,blh->bqh"}> : () -> ()
    %cst_26 = arith.constant dense<0.000000e+00> : vector<2x1x64xf32>
    %68 = tpu.matmul %67, %0, %cst_26 {dimension_numbers = #tpu.dot_dimension_numbers<[2], [1], [1], [2], [0, 0, 0, 1, 1, 2], [0], [0]>} : vector<2x1x8xf32>, vector<2x8x64xf32>, vector<2x1x64xf32> -> vector<2x1x64xf32>
    "tpu.trace_stop"() : () -> ()
    %69 = vector.shape_cast %68 : vector<2x1x64xf32> to vector<2x64xf32>
    %70 = tpu.concatenate %40, %69 in 1 : vector<2x32xf32>, vector<2x64xf32> -> vector<2x96xf32>
    %c0_27 = arith.constant 0 : index
    %c0_28 = arith.constant 0 : index
    %c0_29 = arith.constant 0 : index
    %71 = vector.load %arg6[%c0_27, %c0_28, %c0_29] : memref<5x2x96xf32, #tpu.memory_space<vmem>>, vector<1x2x96xf32>
    %72 = vector.shape_cast %71 : vector<1x2x96xf32> to vector<2x96xf32>
    %73 = vector.shape_cast %70 : vector<2x96xf32> to vector<1x2x96xf32>
    tpu.vector_store %arg6[%c0_27, %c0_28, %c0_29], %73 {strides = array<i32>} : memref<5x2x96xf32, #tpu.memory_space<vmem>>, vector<1x2x96xf32>,
    %c0_30 = arith.constant 0 : index
    %c0_31 = arith.constant 0 : index
    %c0_32 = arith.constant 0 : index
    %74 = vector.load %arg7[%c0_30, %c0_31, %c0_32] : memref<5x2x8xf32, #tpu.memory_space<vmem>>, vector<1x2x8xf32>
    %75 = vector.shape_cast %74 : vector<1x2x8xf32> to vector<2x8xf32>
    %76 = vector.shape_cast %58 : vector<2x8xf32> to vector<1x2x8xf32>
    tpu.vector_store %arg7[%c0_30, %c0_31, %c0_32], %76 {strides = array<i32>} : memref<5x2x8xf32, #tpu.memory_space<vmem>>, vector<1x2x8xf32>,
    %c1 = arith.constant 1 : index
    %c0_33 = arith.constant 0 : index
    %c0_34 = arith.constant 0 : index
    %77 = vector.load %arg0[%c1, %c0_33, %c0_34] : memref<5x2x128xf32, #tpu.memory_space<vmem>>, vector<1x2x128xf32>
    %78 = vector.shape_cast %77 : vector<1x2x128xf32> to vector<2x128xf32>
    %cst_35 = arith.constant dense<0.000000e+00> : vector<2x128xf32>
    %79 = tpu.matmul %40, %1, %cst_35 {dimension_numbers = #tpu.dot_dimension_numbers<[1], [0], [0], [1], [0, 0, 1, 1], [], []>} : vector<2x32xf32>, vector<32x128xf32>, vector<2x128xf32> -> vector<2x128xf32>
    %80 = arith.addf %78, %79 : vector<2x128xf32>
    %81 = vector.extract_strided_slice %80 {offsets = [0, 0], sizes = [2, 32], strides = [1, 1]} : vector<2x128xf32> to vector<2x32xf32>
    %82 = arith.negf %81 : vector<2x32xf32>
    %83 = math.exp %82 : vector<2x32xf32>
    %cst_36 = arith.constant 1.000000e+00 : f32
    %84 = vector.broadcast %cst_36 : f32 to vector<2x32xf32>
    %85 = arith.addf %84, %83 : vector<2x32xf32>
    %86 = arith.divf %84, %85 : vector<2x32xf32>
    %87 = vector.extract_strided_slice %80 {offsets = [0, 32], sizes = [2, 32], strides = [1, 1]} : vector<2x128xf32> to vector<2x32xf32>
    %88 = arith.negf %87 : vector<2x32xf32>
    %89 = math.exp %88 : vector<2x32xf32>
    %cst_37 = arith.constant 1.000000e+00 : f32
    %90 = vector.broadcast %cst_37 : f32 to vector<2x32xf32>
    %91 = arith.addf %90, %89 : vector<2x32xf32>
    %92 = arith.divf %90, %91 : vector<2x32xf32>
    %93 = vector.extract_strided_slice %80 {offsets = [0, 64], sizes = [2, 32], strides = [1, 1]} : vector<2x128xf32> to vector<2x32xf32>
    %94 = math.tanh %93 : vector<2x32xf32>
    %95 = vector.extract_strided_slice %80 {offsets = [0, 96], sizes = [2, 32], strides = [1, 1]} : vector<2x128xf32> to vector<2x32xf32>
    %96 = arith.negf %95 : vector<2x32xf32>
    %97 = math.exp %96 : vector<2x32xf32>
    %cst_38 = arith.constant 1.000000e+00 : f32
    %98 = vector.broadcast %cst_38 : f32 to vector<2x32xf32>
    %99 = arith.addf %98, %97 : vector<2x32xf32>
    %100 = arith.divf %98, %99 : vector<2x32xf32>
    %101 = arith.mulf %92, %38 : vector<2x32xf32>
    %102 = arith.mulf %86, %94 : vector<2x32xf32>
    %103 = arith.addf %101, %102 : vector<2x32xf32>
    %104 = math.tanh %103 : vector<2x32xf32>
    %105 = arith.mulf %100, %104 : vector<2x32xf32>
    %106 = vector.broadcast %2 : vector<1x32xf32> to vector<2x32xf32>
    %107 = arith.mulf %105, %106 : vector<2x32xf32>
    %cst_39 = arith.constant dense<0.000000e+00> : vector<2xf32>
    %108 = vector.multi_reduction <add>, %107, %cst_39 [1] : vector<2x32xf32> to vector<2xf32>
    %109 = vector.shape_cast %108 : vector<2xf32> to vector<2x1xf32>
    %110 = vector.shape_cast %109 : vector<2x1xf32> to vector<1x2x1xf32>
    %111 = vector.broadcast %110 : vector<1x2x1xf32> to vector<2x2x8xf32>
    %112 = arith.mulf %3, %111 : vector<2x2x8xf32>
    %cst_40 = arith.constant dense<0.000000e+00> : vector<2x8xf32>
    %113 = vector.multi_reduction <add>, %112, %cst_40 [1] : vector<2x2x8xf32> to vector<2x8xf32>
    %114 = arith.addf %8, %113 : vector<2x8xf32>
    %cst_41 = arith.constant dense<0xFF800000> : vector<2xf32>
    %115 = vector.multi_reduction <maximumf>, %114, %cst_41 [1] : vector<2x8xf32> to vector<2xf32>
    %116 = vector.shape_cast %115 : vector<2xf32> to vector<2x1xf32>
    %117 = vector.broadcast %116 : vector<2x1xf32> to vector<2x8xf32>
    %118 = arith.subf %114, %117 : vector<2x8xf32>
    %119 = math.exp %118 : vector<2x8xf32>
    %cst_42 = arith.constant dense<0.000000e+00> : vector<2xf32>
    %120 = vector.multi_reduction <add>, %119, %cst_42 [1] : vector<2x8xf32> to vector<2xf32>
    %121 = vector.shape_cast %120 : vector<2xf32> to vector<2x1xf32>
    %122 = vector.broadcast %121 : vector<2x1xf32> to vector<2x8xf32>
    %123 = arith.divf %119, %122 : vector<2x8xf32>
    %124 = arith.minimumf %123, %66 : vector<2x8xf32>
    %125 = vector.shape_cast %124 : vector<2x8xf32> to vector<1x2x8xf32>
    %cst_43 = arith.constant dense<0.000000e+00> : vector<1xf32>
    %126 = vector.multi_reduction <add>, %125, %cst_43 [1, 2] : vector<1x2x8xf32> to vector<1xf32>
    %127 = vector.shape_cast %126 : vector<1xf32> to vector<1x1x1xf32>
    %128 = vector.extract %127[0, 0, 0] : f32 from vector<1x1x1xf32>
    %129 = vector.broadcast %128 : f32 to vector<1x1xf32>
    %130 = arith.addf %65, %129 : vector<1x1xf32>
    %131 = arith.addf %66, %123 : vector<2x8xf32>
    %132 = vector.shape_cast %123 : vector<2x8xf32> to vector<2x1x8xf32>
    "tpu.trace_start"() <{level = 10 : i32, message = "bql,blh->bqh"}> : () -> ()
    %cst_44 = arith.constant dense<0.000000e+00> : vector<2x1x64xf32>
    %133 = tpu.matmul %132, %0, %cst_44 {dimension_numbers = #tpu.dot_dimension_numbers<[2], [1], [1], [2], [0, 0, 0, 1, 1, 2], [0], [0]>} : vector<2x1x8xf32>, vector<2x8x64xf32>, vector<2x1x64xf32> -> vector<2x1x64xf32>
    "tpu.trace_stop"() : () -> ()
    %134 = vector.shape_cast %133 : vector<2x1x64xf32> to vector<2x64xf32>
    %135 = tpu.concatenate %105, %134 in 1 : vector<2x32xf32>, vector<2x64xf32> -> vector<2x96xf32>
    %c1_45 = arith.constant 1 : index
    %c0_46 = arith.constant 0 : index
    %c0_47 = arith.constant 0 : index
    %136 = vector.load %arg6[%c1_45, %c0_46, %c0_47] : memref<5x2x96xf32, #tpu.memory_space<vmem>>, vector<1x2x96xf32>
    %137 = vector.shape_cast %136 : vector<1x2x96xf32> to vector<2x96xf32>
    %138 = vector.shape_cast %135 : vector<2x96xf32> to vector<1x2x96xf32>
    tpu.vector_store %arg6[%c1_45, %c0_46, %c0_47], %138 {strides = array<i32>} : memref<5x2x96xf32, #tpu.memory_space<vmem>>, vector<1x2x96xf32>,
    %c1_48 = arith.constant 1 : index
    %c0_49 = arith.constant 0 : index
    %c0_50 = arith.constant 0 : index
    %139 = vector.load %arg7[%c1_48, %c0_49, %c0_50] : memref<5x2x8xf32, #tpu.memory_space<vmem>>, vector<1x2x8xf32>
    %140 = vector.shape_cast %139 : vector<1x2x8xf32> to vector<2x8xf32>
    %141 = vector.shape_cast %123 : vector<2x8xf32> to vector<1x2x8xf32>
    tpu.vector_store %arg7[%c1_48, %c0_49, %c0_50], %141 {strides = array<i32>} : memref<5x2x8xf32, #tpu.memory_space<vmem>>, vector<1x2x8xf32>,
    %c2 = arith.constant 2 : index
    %c0_51 = arith.constant 0 : index
    %c0_52 = arith.constant 0 : index
    %142 = vector.load %arg0[%c2, %c0_51, %c0_52] : memref<5x2x128xf32, #tpu.memory_space<vmem>>, vector<1x2x128xf32>
    %143 = vector.shape_cast %142 : vector<1x2x128xf32> to vector<2x128xf32>
    %cst_53 = arith.constant dense<0.000000e+00> : vector<2x128xf32>
    %144 = tpu.matmul %105, %1, %cst_53 {dimension_numbers = #tpu.dot_dimension_numbers<[1], [0], [0], [1], [0, 0, 1, 1], [], []>} : vector<2x32xf32>, vector<32x128xf32>, vector<2x128xf32> -> vector<2x128xf32>
    %145 = arith.addf %143, %144 : vector<2x128xf32>
    %146 = vector.extract_strided_slice %145 {offsets = [0, 0], sizes = [2, 32], strides = [1, 1]} : vector<2x128xf32> to vector<2x32xf32>
    %147 = arith.negf %146 : vector<2x32xf32>
    %148 = math.exp %147 : vector<2x32xf32>
    %cst_54 = arith.constant 1.000000e+00 : f32
    %149 = vector.broadcast %cst_54 : f32 to vector<2x32xf32>
    %150 = arith.addf %149, %148 : vector<2x32xf32>
    %151 = arith.divf %149, %150 : vector<2x32xf32>
    %152 = vector.extract_strided_slice %145 {offsets = [0, 32], sizes = [2, 32], strides = [1, 1]} : vector<2x128xf32> to vector<2x32xf32>
    %153 = arith.negf %152 : vector<2x32xf32>
    %154 = math.exp %153 : vector<2x32xf32>
    %cst_55 = arith.constant 1.000000e+00 : f32
    %155 = vector.broadcast %cst_55 : f32 to vector<2x32xf32>
    %156 = arith.addf %155, %154 : vector<2x32xf32>
    %157 = arith.divf %155, %156 : vector<2x32xf32>
    %158 = vector.extract_strided_slice %145 {offsets = [0, 64], sizes = [2, 32], strides = [1, 1]} : vector<2x128xf32> to vector<2x32xf32>
    %159 = math.tanh %158 : vector<2x32xf32>
    %160 = vector.extract_strided_slice %145 {offsets = [0, 96], sizes = [2, 32], strides = [1, 1]} : vector<2x128xf32> to vector<2x32xf32>
    %161 = arith.negf %160 : vector<2x32xf32>
    %162 = math.exp %161 : vector<2x32xf32>
    %cst_56 = arith.constant 1.000000e+00 : f32
    %163 = vector.broadcast %cst_56 : f32 to vector<2x32xf32>
    %164 = arith.addf %163, %162 : vector<2x32xf32>
    %165 = arith.divf %163, %164 : vector<2x32xf32>
    %166 = arith.mulf %157, %103 : vector<2x32xf32>
    %167 = arith.mulf %151, %159 : vector<2x32xf32>
    %168 = arith.addf %166, %167 : vector<2x32xf32>
    %169 = math.tanh %168 : vector<2x32xf32>
    %170 = arith.mulf %165, %169 : vector<2x32xf32>
    %171 = vector.broadcast %2 : vector<1x32xf32> to vector<2x32xf32>
    %172 = arith.mulf %170, %171 : vector<2x32xf32>
    %cst_57 = arith.constant dense<0.000000e+00> : vector<2xf32>
    %173 = vector.multi_reduction <add>, %172, %cst_57 [1] : vector<2x32xf32> to vector<2xf32>
    %174 = vector.shape_cast %173 : vector<2xf32> to vector<2x1xf32>
    %175 = vector.shape_cast %174 : vector<2x1xf32> to vector<1x2x1xf32>
    %176 = vector.broadcast %175 : vector<1x2x1xf32> to vector<2x2x8xf32>
    %177 = arith.mulf %3, %176 : vector<2x2x8xf32>
    %cst_58 = arith.constant dense<0.000000e+00> : vector<2x8xf32>
    %178 = vector.multi_reduction <add>, %177, %cst_58 [1] : vector<2x2x8xf32> to vector<2x8xf32>
    %179 = arith.addf %8, %178 : vector<2x8xf32>
    %cst_59 = arith.constant dense<0xFF800000> : vector<2xf32>
    %180 = vector.multi_reduction <maximumf>, %179, %cst_59 [1] : vector<2x8xf32> to vector<2xf32>
    %181 = vector.shape_cast %180 : vector<2xf32> to vector<2x1xf32>
    %182 = vector.broadcast %181 : vector<2x1xf32> to vector<2x8xf32>
    %183 = arith.subf %179, %182 : vector<2x8xf32>
    %184 = math.exp %183 : vector<2x8xf32>
    %cst_60 = arith.constant dense<0.000000e+00> : vector<2xf32>
    %185 = vector.multi_reduction <add>, %184, %cst_60 [1] : vector<2x8xf32> to vector<2xf32>
    %186 = vector.shape_cast %185 : vector<2xf32> to vector<2x1xf32>
    %187 = vector.broadcast %186 : vector<2x1xf32> to vector<2x8xf32>
    %188 = arith.divf %184, %187 : vector<2x8xf32>
    %189 = arith.minimumf %188, %131 : vector<2x8xf32>
    %190 = vector.shape_cast %189 : vector<2x8xf32> to vector<1x2x8xf32>
    %cst_61 = arith.constant dense<0.000000e+00> : vector<1xf32>
    %191 = vector.multi_reduction <add>, %190, %cst_61 [1, 2] : vector<1x2x8xf32> to vector<1xf32>
    %192 = vector.shape_cast %191 : vector<1xf32> to vector<1x1x1xf32>
    %193 = vector.extract %192[0, 0, 0] : f32 from vector<1x1x1xf32>
    %194 = vector.broadcast %193 : f32 to vector<1x1xf32>
    %195 = arith.addf %130, %194 : vector<1x1xf32>
    %196 = arith.addf %131, %188 : vector<2x8xf32>
    %197 = vector.shape_cast %188 : vector<2x8xf32> to vector<2x1x8xf32>
    "tpu.trace_start"() <{level = 10 : i32, message = "bql,blh->bqh"}> : () -> ()
    %cst_62 = arith.constant dense<0.000000e+00> : vector<2x1x64xf32>
    %198 = tpu.matmul %197, %0, %cst_62 {dimension_numbers = #tpu.dot_dimension_numbers<[2], [1], [1], [2], [0, 0, 0, 1, 1, 2], [0], [0]>} : vector<2x1x8xf32>, vector<2x8x64xf32>, vector<2x1x64xf32> -> vector<2x1x64xf32>
    "tpu.trace_stop"() : () -> ()
    %199 = vector.shape_cast %198 : vector<2x1x64xf32> to vector<2x64xf32>
    %200 = tpu.concatenate %170, %199 in 1 : vector<2x32xf32>, vector<2x64xf32> -> vector<2x96xf32>
    %c2_63 = arith.constant 2 : index
    %c0_64 = arith.constant 0 : index
    %c0_65 = arith.constant 0 : index
    %201 = vector.load %arg6[%c2_63, %c0_64, %c0_65] : memref<5x2x96xf32, #tpu.memory_space<vmem>>, vector<1x2x96xf32>
    %202 = vector.shape_cast %201 : vector<1x2x96xf32> to vector<2x96xf32>
    %203 = vector.shape_cast %200 : vector<2x96xf32> to vector<1x2x96xf32>
    tpu.vector_store %arg6[%c2_63, %c0_64, %c0_65], %203 {strides = array<i32>} : memref<5x2x96xf32, #tpu.memory_space<vmem>>, vector<1x2x96xf32>,
    %c2_66 = arith.constant 2 : index
    %c0_67 = arith.constant 0 : index
    %c0_68 = arith.constant 0 : index
    %204 = vector.load %arg7[%c2_66, %c0_67, %c0_68] : memref<5x2x8xf32, #tpu.memory_space<vmem>>, vector<1x2x8xf32>
    %205 = vector.shape_cast %204 : vector<1x2x8xf32> to vector<2x8xf32>
    %206 = vector.shape_cast %188 : vector<2x8xf32> to vector<1x2x8xf32>
    tpu.vector_store %arg7[%c2_66, %c0_67, %c0_68], %206 {strides = array<i32>} : memref<5x2x8xf32, #tpu.memory_space<vmem>>, vector<1x2x8xf32>,
    %c3 = arith.constant 3 : index
    %c0_69 = arith.constant 0 : index
    %c0_70 = arith.constant 0 : index
    %207 = vector.load %arg0[%c3, %c0_69, %c0_70] : memref<5x2x128xf32, #tpu.memory_space<vmem>>, vector<1x2x128xf32>
    %208 = vector.shape_cast %207 : vector<1x2x128xf32> to vector<2x128xf32>
    %cst_71 = arith.constant dense<0.000000e+00> : vector<2x128xf32>
    %209 = tpu.matmul %170, %1, %cst_71 {dimension_numbers = #tpu.dot_dimension_numbers<[1], [0], [0], [1], [0, 0, 1, 1], [], []>} : vector<2x32xf32>, vector<32x128xf32>, vector<2x128xf32> -> vector<2x128xf32>
    %210 = arith.addf %208, %209 : vector<2x128xf32>
    %211 = vector.extract_strided_slice %210 {offsets = [0, 0], sizes = [2, 32], strides = [1, 1]} : vector<2x128xf32> to vector<2x32xf32>
    %212 = arith.negf %211 : vector<2x32xf32>
    %213 = math.exp %212 : vector<2x32xf32>
    %cst_72 = arith.constant 1.000000e+00 : f32
    %214 = vector.broadcast %cst_72 : f32 to vector<2x32xf32>
    %215 = arith.addf %214, %213 : vector<2x32xf32>
    %216 = arith.divf %214, %215 : vector<2x32xf32>
    %217 = vector.extract_strided_slice %210 {offsets = [0, 32], sizes = [2, 32], strides = [1, 1]} : vector<2x128xf32> to vector<2x32xf32>
    %218 = arith.negf %217 : vector<2x32xf32>
    %219 = math.exp %218 : vector<2x32xf32>
    %cst_73 = arith.constant 1.000000e+00 : f32
    %220 = vector.broadcast %cst_73 : f32 to vector<2x32xf32>
    %221 = arith.addf %220, %219 : vector<2x32xf32>
    %222 = arith.divf %220, %221 : vector<2x32xf32>
    %223 = vector.extract_strided_slice %210 {offsets = [0, 64], sizes = [2, 32], strides = [1, 1]} : vector<2x128xf32> to vector<2x32xf32>
    %224 = math.tanh %223 : vector<2x32xf32>
    %225 = vector.extract_strided_slice %210 {offsets = [0, 96], sizes = [2, 32], strides = [1, 1]} : vector<2x128xf32> to vector<2x32xf32>
    %226 = arith.negf %225 : vector<2x32xf32>
    %227 = math.exp %226 : vector<2x32xf32>
    %cst_74 = arith.constant 1.000000e+00 : f32
    %228 = vector.broadcast %cst_74 : f32 to vector<2x32xf32>
    %229 = arith.addf %228, %227 : vector<2x32xf32>
    %230 = arith.divf %228, %229 : vector<2x32xf32>
    %231 = arith.mulf %222, %168 : vector<2x32xf32>
    %232 = arith.mulf %216, %224 : vector<2x32xf32>
    %233 = arith.addf %231, %232 : vector<2x32xf32>
    %234 = math.tanh %233 : vector<2x32xf32>
    %235 = arith.mulf %230, %234 : vector<2x32xf32>
    %236 = vector.broadcast %2 : vector<1x32xf32> to vector<2x32xf32>
    %237 = arith.mulf %235, %236 : vector<2x32xf32>
    %cst_75 = arith.constant dense<0.000000e+00> : vector<2xf32>
    %238 = vector.multi_reduction <add>, %237, %cst_75 [1] : vector<2x32xf32> to vector<2xf32>
    %239 = vector.shape_cast %238 : vector<2xf32> to vector<2x1xf32>
    %240 = vector.shape_cast %239 : vector<2x1xf32> to vector<1x2x1xf32>
    %241 = vector.broadcast %240 : vector<1x2x1xf32> to vector<2x2x8xf32>
    %242 = arith.mulf %3, %241 : vector<2x2x8xf32>
    %cst_76 = arith.constant dense<0.000000e+00> : vector<2x8xf32>
    %243 = vector.multi_reduction <add>, %242, %cst_76 [1] : vector<2x2x8xf32> to vector<2x8xf32>
    %244 = arith.addf %8, %243 : vector<2x8xf32>
    %cst_77 = arith.constant dense<0xFF800000> : vector<2xf32>
    %245 = vector.multi_reduction <maximumf>, %244, %cst_77 [1] : vector<2x8xf32> to vector<2xf32>
    %246 = vector.shape_cast %245 : vector<2xf32> to vector<2x1xf32>
    %247 = vector.broadcast %246 : vector<2x1xf32> to vector<2x8xf32>
    %248 = arith.subf %244, %247 : vector<2x8xf32>
    %249 = math.exp %248 : vector<2x8xf32>
    %cst_78 = arith.constant dense<0.000000e+00> : vector<2xf32>
    %250 = vector.multi_reduction <add>, %249, %cst_78 [1] : vector<2x8xf32> to vector<2xf32>
    %251 = vector.shape_cast %250 : vector<2xf32> to vector<2x1xf32>
    %252 = vector.broadcast %251 : vector<2x1xf32> to vector<2x8xf32>
    %253 = arith.divf %249, %252 : vector<2x8xf32>
    %254 = arith.minimumf %253, %196 : vector<2x8xf32>
    %255 = vector.shape_cast %254 : vector<2x8xf32> to vector<1x2x8xf32>
    %cst_79 = arith.constant dense<0.000000e+00> : vector<1xf32>
    %256 = vector.multi_reduction <add>, %255, %cst_79 [1, 2] : vector<1x2x8xf32> to vector<1xf32>
    %257 = vector.shape_cast %256 : vector<1xf32> to vector<1x1x1xf32>
    %258 = vector.extract %257[0, 0, 0] : f32 from vector<1x1x1xf32>
    %259 = vector.broadcast %258 : f32 to vector<1x1xf32>
    %260 = arith.addf %195, %259 : vector<1x1xf32>
    %261 = arith.addf %196, %253 : vector<2x8xf32>
    %262 = vector.shape_cast %253 : vector<2x8xf32> to vector<2x1x8xf32>
    "tpu.trace_start"() <{level = 10 : i32, message = "bql,blh->bqh"}> : () -> ()
    %cst_80 = arith.constant dense<0.000000e+00> : vector<2x1x64xf32>
    %263 = tpu.matmul %262, %0, %cst_80 {dimension_numbers = #tpu.dot_dimension_numbers<[2], [1], [1], [2], [0, 0, 0, 1, 1, 2], [0], [0]>} : vector<2x1x8xf32>, vector<2x8x64xf32>, vector<2x1x64xf32> -> vector<2x1x64xf32>
    "tpu.trace_stop"() : () -> ()
    %264 = vector.shape_cast %263 : vector<2x1x64xf32> to vector<2x64xf32>
    %265 = tpu.concatenate %235, %264 in 1 : vector<2x32xf32>, vector<2x64xf32> -> vector<2x96xf32>
    %c3_81 = arith.constant 3 : index
    %c0_82 = arith.constant 0 : index
    %c0_83 = arith.constant 0 : index
    %266 = vector.load %arg6[%c3_81, %c0_82, %c0_83] : memref<5x2x96xf32, #tpu.memory_space<vmem>>, vector<1x2x96xf32>
    %267 = vector.shape_cast %266 : vector<1x2x96xf32> to vector<2x96xf32>
    %268 = vector.shape_cast %265 : vector<2x96xf32> to vector<1x2x96xf32>
    tpu.vector_store %arg6[%c3_81, %c0_82, %c0_83], %268 {strides = array<i32>} : memref<5x2x96xf32, #tpu.memory_space<vmem>>, vector<1x2x96xf32>,
    %c3_84 = arith.constant 3 : index
    %c0_85 = arith.constant 0 : index
    %c0_86 = arith.constant 0 : index
    %269 = vector.load %arg7[%c3_84, %c0_85, %c0_86] : memref<5x2x8xf32, #tpu.memory_space<vmem>>, vector<1x2x8xf32>
    %270 = vector.shape_cast %269 : vector<1x2x8xf32> to vector<2x8xf32>
    %271 = vector.shape_cast %253 : vector<2x8xf32> to vector<1x2x8xf32>
    tpu.vector_store %arg7[%c3_84, %c0_85, %c0_86], %271 {strides = array<i32>} : memref<5x2x8xf32, #tpu.memory_space<vmem>>, vector<1x2x8xf32>,
    %c4 = arith.constant 4 : index
    %c0_87 = arith.constant 0 : index
    %c0_88 = arith.constant 0 : index
    %272 = vector.load %arg0[%c4, %c0_87, %c0_88] : memref<5x2x128xf32, #tpu.memory_space<vmem>>, vector<1x2x128xf32>
    %273 = vector.shape_cast %272 : vector<1x2x128xf32> to vector<2x128xf32>
    %cst_89 = arith.constant dense<0.000000e+00> : vector<2x128xf32>
    %274 = tpu.matmul %235, %1, %cst_89 {dimension_numbers = #tpu.dot_dimension_numbers<[1], [0], [0], [1], [0, 0, 1, 1], [], []>} : vector<2x32xf32>, vector<32x128xf32>, vector<2x128xf32> -> vector<2x128xf32>
    %275 = arith.addf %273, %274 : vector<2x128xf32>
    %276 = vector.extract_strided_slice %275 {offsets = [0, 0], sizes = [2, 32], strides = [1, 1]} : vector<2x128xf32> to vector<2x32xf32>
    %277 = arith.negf %276 : vector<2x32xf32>
    %278 = math.exp %277 : vector<2x32xf32>
    %cst_90 = arith.constant 1.000000e+00 : f32
    %279 = vector.broadcast %cst_90 : f32 to vector<2x32xf32>
    %280 = arith.addf %279, %278 : vector<2x32xf32>
    %281 = arith.divf %279, %280 : vector<2x32xf32>
    %282 = vector.extract_strided_slice %275 {offsets = [0, 32], sizes = [2, 32], strides = [1, 1]} : vector<2x128xf32> to vector<2x32xf32>
    %283 = arith.negf %282 : vector<2x32xf32>
    %284 = math.exp %283 : vector<2x32xf32>
    %cst_91 = arith.constant 1.000000e+00 : f32
    %285 = vector.broadcast %cst_91 : f32 to vector<2x32xf32>
    %286 = arith.addf %285, %284 : vector<2x32xf32>
    %287 = arith.divf %285, %286 : vector<2x32xf32>
    %288 = vector.extract_strided_slice %275 {offsets = [0, 64], sizes = [2, 32], strides = [1, 1]} : vector<2x128xf32> to vector<2x32xf32>
    %289 = math.tanh %288 : vector<2x32xf32>
    %290 = vector.extract_strided_slice %275 {offsets = [0, 96], sizes = [2, 32], strides = [1, 1]} : vector<2x128xf32> to vector<2x32xf32>
    %291 = arith.negf %290 : vector<2x32xf32>
    %292 = math.exp %291 : vector<2x32xf32>
    %cst_92 = arith.constant 1.000000e+00 : f32
    %293 = vector.broadcast %cst_92 : f32 to vector<2x32xf32>
    %294 = arith.addf %293, %292 : vector<2x32xf32>
    %295 = arith.divf %293, %294 : vector<2x32xf32>
    %296 = arith.mulf %287, %233 : vector<2x32xf32>
    %297 = arith.mulf %281, %289 : vector<2x32xf32>
    %298 = arith.addf %296, %297 : vector<2x32xf32>
    %299 = math.tanh %298 : vector<2x32xf32>
    %300 = arith.mulf %295, %299 : vector<2x32xf32>
    %301 = vector.broadcast %2 : vector<1x32xf32> to vector<2x32xf32>
    %302 = arith.mulf %300, %301 : vector<2x32xf32>
    %cst_93 = arith.constant dense<0.000000e+00> : vector<2xf32>
    %303 = vector.multi_reduction <add>, %302, %cst_93 [1] : vector<2x32xf32> to vector<2xf32>
    %304 = vector.shape_cast %303 : vector<2xf32> to vector<2x1xf32>
    %305 = vector.shape_cast %304 : vector<2x1xf32> to vector<1x2x1xf32>
    %306 = vector.broadcast %305 : vector<1x2x1xf32> to vector<2x2x8xf32>
    %307 = arith.mulf %3, %306 : vector<2x2x8xf32>
    %cst_94 = arith.constant dense<0.000000e+00> : vector<2x8xf32>
    %308 = vector.multi_reduction <add>, %307, %cst_94 [1] : vector<2x2x8xf32> to vector<2x8xf32>
    %309 = arith.addf %8, %308 : vector<2x8xf32>
    %cst_95 = arith.constant dense<0xFF800000> : vector<2xf32>
    %310 = vector.multi_reduction <maximumf>, %309, %cst_95 [1] : vector<2x8xf32> to vector<2xf32>
    %311 = vector.shape_cast %310 : vector<2xf32> to vector<2x1xf32>
    %312 = vector.broadcast %311 : vector<2x1xf32> to vector<2x8xf32>
    %313 = arith.subf %309, %312 : vector<2x8xf32>
    %314 = math.exp %313 : vector<2x8xf32>
    %cst_96 = arith.constant dense<0.000000e+00> : vector<2xf32>
    %315 = vector.multi_reduction <add>, %314, %cst_96 [1] : vector<2x8xf32> to vector<2xf32>
    %316 = vector.shape_cast %315 : vector<2xf32> to vector<2x1xf32>
    %317 = vector.broadcast %316 : vector<2x1xf32> to vector<2x8xf32>
    %318 = arith.divf %314, %317 : vector<2x8xf32>
    %319 = arith.minimumf %318, %261 : vector<2x8xf32>
    %320 = vector.shape_cast %319 : vector<2x8xf32> to vector<1x2x8xf32>
    %cst_97 = arith.constant dense<0.000000e+00> : vector<1xf32>
    %321 = vector.multi_reduction <add>, %320, %cst_97 [1, 2] : vector<1x2x8xf32> to vector<1xf32>
    %322 = vector.shape_cast %321 : vector<1xf32> to vector<1x1x1xf32>
    %323 = vector.extract %322[0, 0, 0] : f32 from vector<1x1x1xf32>
    %324 = vector.broadcast %323 : f32 to vector<1x1xf32>
    %325 = arith.addf %260, %324 : vector<1x1xf32>
    %326 = vector.shape_cast %318 : vector<2x8xf32> to vector<2x1x8xf32>
    "tpu.trace_start"() <{level = 10 : i32, message = "bql,blh->bqh"}> : () -> ()
    %cst_98 = arith.constant dense<0.000000e+00> : vector<2x1x64xf32>
    %327 = tpu.matmul %326, %0, %cst_98 {dimension_numbers = #tpu.dot_dimension_numbers<[2], [1], [1], [2], [0, 0, 0, 1, 1, 2], [0], [0]>} : vector<2x1x8xf32>, vector<2x8x64xf32>, vector<2x1x64xf32> -> vector<2x1x64xf32>
    "tpu.trace_stop"() : () -> ()
    %328 = vector.shape_cast %327 : vector<2x1x64xf32> to vector<2x64xf32>
    %329 = tpu.concatenate %300, %328 in 1 : vector<2x32xf32>, vector<2x64xf32> -> vector<2x96xf32>
    %c4_99 = arith.constant 4 : index
    %c0_100 = arith.constant 0 : index
    %c0_101 = arith.constant 0 : index
    %330 = vector.load %arg6[%c4_99, %c0_100, %c0_101] : memref<5x2x96xf32, #tpu.memory_space<vmem>>, vector<1x2x96xf32>
    %331 = vector.shape_cast %330 : vector<1x2x96xf32> to vector<2x96xf32>
    %332 = vector.shape_cast %329 : vector<2x96xf32> to vector<1x2x96xf32>
    tpu.vector_store %arg6[%c4_99, %c0_100, %c0_101], %332 {strides = array<i32>} : memref<5x2x96xf32, #tpu.memory_space<vmem>>, vector<1x2x96xf32>,
    %c4_102 = arith.constant 4 : index
    %c0_103 = arith.constant 0 : index
    %c0_104 = arith.constant 0 : index
    %333 = vector.load %arg7[%c4_102, %c0_103, %c0_104] : memref<5x2x8xf32, #tpu.memory_space<vmem>>, vector<1x2x8xf32>
    %334 = vector.shape_cast %333 : vector<1x2x8xf32> to vector<2x8xf32>
    %335 = vector.shape_cast %318 : vector<2x8xf32> to vector<1x2x8xf32>
    tpu.vector_store %arg7[%c4_102, %c0_103, %c0_104], %335 {strides = array<i32>} : memref<5x2x8xf32, #tpu.memory_space<vmem>>, vector<1x2x8xf32>,
    %c0_105 = arith.constant 0 : index
    %c0_106 = arith.constant 0 : index
    %336 = vector.load %arg8[%c0_105, %c0_106] : memref<1x1xf32, #tpu.memory_space<vmem>>, vector<1x1xf32>
    tpu.vector_store %arg8[%c0_105, %c0_106], %325 {strides = array<i32>} : memref<1x1xf32, #tpu.memory_space<vmem>>, vector<1x1xf32>,
    return
  }
}

module attributes {stable_mosaic.version = 11 : i64} {
  func.func @_vocab_kernel(%arg0: i32, %arg1: memref<1x5x96xf32, #tpu.memory_space<vmem>>, %arg2: memref<1x5x16xf32, #tpu.memory_space<vmem>>, %arg3: memref<1x5x8xf32, #tpu.memory_space<vmem>>, %arg4: memref<1x8x64xf32, #tpu.memory_space<vmem>>, %arg5: memref<112x97xf32, #tpu.memory_space<vmem>>, %arg6: memref<1x97xf32, #tpu.memory_space<vmem>>, %arg7: memref<96x64xf32, #tpu.memory_space<vmem>>, %arg8: memref<1x64xf32, #tpu.memory_space<vmem>>, %arg9: memref<1x5x64xf32, #tpu.memory_space<vmem>>) attributes {dimension_semantics = [#tpu.dimension_semantics<parallel>], iteration_bounds = array<i64: 2>, scalar_prefetch = 0 : i64, scratch_operands = 0 : i64, tpu.core_type = #tpu.core_type<tc>, window_params = [{transform_indices = @transform_0, window_bounds = array<i64: 1, 5, 96>}, {transform_indices = @transform_1, window_bounds = array<i64: 1, 5, 16>}, {transform_indices = @transform_2, window_bounds = array<i64: 1, 5, 8>}, {transform_indices = @transform_3, window_bounds = array<i64: 1, 8, 64>}, {pipeline_mode = #tpu.pipeline_mode<synchronous>, transform_indices = @transform_4, window_bounds = array<i64: 112, 97>}, {pipeline_mode = #tpu.pipeline_mode<synchronous>, transform_indices = @transform_5, window_bounds = array<i64: 1, 97>}, {pipeline_mode = #tpu.pipeline_mode<synchronous>, transform_indices = @transform_6, window_bounds = array<i64: 96, 64>}, {pipeline_mode = #tpu.pipeline_mode<synchronous>, transform_indices = @transform_7, window_bounds = array<i64: 1, 64>}, {transform_indices = @transform_8, window_bounds = array<i64: 1, 5, 64>}]} {
    %c0 = arith.constant 0 : index
    %c0_0 = arith.constant 0 : index
    %c0_1 = arith.constant 0 : index
    %0 = vector.load %arg1[%c0, %c0_0, %c0_1] : memref<1x5x96xf32, #tpu.memory_space<vmem>>, vector<1x5x96xf32>
    %1 = vector.shape_cast %0 : vector<1x5x96xf32> to vector<5x96xf32>
    %c0_2 = arith.constant 0 : index
    %c0_3 = arith.constant 0 : index
    %c0_4 = arith.constant 0 : index
    %2 = vector.load %arg2[%c0_2, %c0_3, %c0_4] : memref<1x5x16xf32, #tpu.memory_space<vmem>>, vector<1x5x16xf32>
    %3 = vector.shape_cast %2 : vector<1x5x16xf32> to vector<5x16xf32>
    %4 = tpu.concatenate %1, %3 in 1 : vector<5x96xf32>, vector<5x16xf32> -> vector<5x112xf32>
    %c0_5 = arith.constant 0 : index
    %c0_6 = arith.constant 0 : index
    %5 = vector.load %arg5[%c0_5, %c0_6] : memref<112x97xf32, #tpu.memory_space<vmem>>, vector<112x97xf32>
    %cst = arith.constant dense<0.000000e+00> : vector<5x97xf32>
    %6 = tpu.matmul %4, %5, %cst {dimension_numbers = #tpu.dot_dimension_numbers<[1], [0], [0], [1], [0, 0, 1, 1], [], []>} : vector<5x112xf32>, vector<112x97xf32>, vector<5x97xf32> -> vector<5x97xf32>
    %c0_7 = arith.constant 0 : index
    %c0_8 = arith.constant 0 : index
    %7 = vector.load %arg6[%c0_7, %c0_8] : memref<1x97xf32, #tpu.memory_space<vmem>>, vector<1x97xf32>
    %8 = vector.broadcast %7 : vector<1x97xf32> to vector<5x97xf32>
    %9 = arith.addf %6, %8 : vector<5x97xf32>
    %10 = vector.extract_strided_slice %9 {offsets = [0, 0], sizes = [5, 96], strides = [1, 1]} : vector<5x97xf32> to vector<5x96xf32>
    %11 = vector.extract_strided_slice %9 {offsets = [0, 96], sizes = [5, 1], strides = [1, 1]} : vector<5x97xf32> to vector<5x1xf32>
    %c0_9 = arith.constant 0 : index
    %c0_10 = arith.constant 0 : index
    %12 = vector.load %arg7[%c0_9, %c0_10] : memref<96x64xf32, #tpu.memory_space<vmem>>, vector<96x64xf32>
    %cst_11 = arith.constant dense<0.000000e+00> : vector<5x64xf32>
    %13 = tpu.matmul %10, %12, %cst_11 {dimension_numbers = #tpu.dot_dimension_numbers<[1], [0], [0], [1], [0, 0, 1, 1], [], []>} : vector<5x96xf32>, vector<96x64xf32>, vector<5x64xf32> -> vector<5x64xf32>
    %c0_12 = arith.constant 0 : index
    %c0_13 = arith.constant 0 : index
    %14 = vector.load %arg8[%c0_12, %c0_13] : memref<1x64xf32, #tpu.memory_space<vmem>>, vector<1x64xf32>
    %15 = vector.broadcast %14 : vector<1x64xf32> to vector<5x64xf32>
    %16 = arith.addf %13, %15 : vector<5x64xf32>
    %cst_14 = arith.constant dense<0xFF800000> : vector<5xf32>
    %17 = vector.multi_reduction <maximumf>, %16, %cst_14 [1] : vector<5x64xf32> to vector<5xf32>
    %18 = vector.shape_cast %17 : vector<5xf32> to vector<5x1xf32>
    %19 = vector.broadcast %18 : vector<5x1xf32> to vector<5x64xf32>
    %20 = arith.subf %16, %19 : vector<5x64xf32>
    %21 = math.exp %20 : vector<5x64xf32>
    %cst_15 = arith.constant dense<0.000000e+00> : vector<5xf32>
    %22 = vector.multi_reduction <add>, %21, %cst_15 [1] : vector<5x64xf32> to vector<5xf32>
    %23 = vector.shape_cast %22 : vector<5xf32> to vector<5x1xf32>
    %24 = vector.broadcast %23 : vector<5x1xf32> to vector<5x64xf32>
    %25 = arith.divf %21, %24 : vector<5x64xf32>
    %c0_16 = arith.constant 0 : index
    %c0_17 = arith.constant 0 : index
    %c0_18 = arith.constant 0 : index
    %26 = vector.load %arg3[%c0_16, %c0_17, %c0_18] : memref<1x5x8xf32, #tpu.memory_space<vmem>>, vector<1x5x8xf32>
    %27 = vector.shape_cast %26 : vector<1x5x8xf32> to vector<5x8xf32>
    %c0_19 = arith.constant 0 : index
    %c0_20 = arith.constant 0 : index
    %c0_21 = arith.constant 0 : index
    %28 = vector.load %arg4[%c0_19, %c0_20, %c0_21] : memref<1x8x64xf32, #tpu.memory_space<vmem>>, vector<1x8x64xf32>
    %29 = vector.shape_cast %28 : vector<1x8x64xf32> to vector<8x64xf32>
    %cst_22 = arith.constant dense<0.000000e+00> : vector<5x64xf32>
    %30 = tpu.matmul %27, %29, %cst_22 {dimension_numbers = #tpu.dot_dimension_numbers<[1], [0], [0], [1], [0, 0, 1, 1], [], []>} : vector<5x8xf32>, vector<8x64xf32>, vector<5x64xf32> -> vector<5x64xf32>
    %31 = arith.negf %11 : vector<5x1xf32>
    %32 = math.exp %31 : vector<5x1xf32>
    %cst_23 = arith.constant 1.000000e+00 : f32
    %33 = vector.broadcast %cst_23 : f32 to vector<5x1xf32>
    %34 = arith.addf %33, %32 : vector<5x1xf32>
    %35 = arith.divf %33, %34 : vector<5x1xf32>
    %36 = vector.broadcast %35 : vector<5x1xf32> to vector<5x64xf32>
    %37 = arith.mulf %36, %25 : vector<5x64xf32>
    %cst_24 = arith.constant 1.000000e+00 : f32
    %38 = vector.broadcast %cst_24 : f32 to vector<5x1xf32>
    %39 = arith.subf %38, %35 : vector<5x1xf32>
    %40 = vector.broadcast %39 : vector<5x1xf32> to vector<5x64xf32>
    %41 = arith.mulf %40, %30 : vector<5x64xf32>
    %42 = arith.addf %37, %41 : vector<5x64xf32>
    %cst_25 = arith.constant 1.562500e-02 : f32
    %43 = vector.broadcast %cst_25 : f32 to vector<5x64xf32>
    %44 = arith.addf %42, %43 : vector<5x64xf32>
    %c0_26 = arith.constant 0 : index
    %c0_27 = arith.constant 0 : index
    %c0_28 = arith.constant 0 : index
    %45 = vector.load %arg9[%c0_26, %c0_27, %c0_28] : memref<1x5x64xf32, #tpu.memory_space<vmem>>, vector<1x5x64xf32>
    %46 = vector.shape_cast %45 : vector<1x5x64xf32> to vector<5x64xf32>
    %47 = vector.shape_cast %44 : vector<5x64xf32> to vector<1x5x64xf32>
    tpu.vector_store %arg9[%c0_26, %c0_27, %c0_28], %47 {strides = array<i32>} : memref<1x5x64xf32, #tpu.memory_space<vmem>>, vector<1x5x64xf32>,
    return
  }
  func.func @transform_0(%arg0: i32) -> (i32, i32, i32) {
    %c0_i32 = arith.constant 0 : i32
    %c0_i32_0 = arith.constant 0 : i32
    %c0_i32_1 = arith.constant 0 : i32
    return %arg0, %c0_i32, %c0_i32_0 : i32, i32, i32
  }
  func.func @transform_1(%arg0: i32) -> (i32, i32, i32) {
    %c0_i32 = arith.constant 0 : i32
    %c0_i32_0 = arith.constant 0 : i32
    %c0_i32_1 = arith.constant 0 : i32
    return %arg0, %c0_i32, %c0_i32_0 : i32, i32, i32
  }
  func.func @transform_2(%arg0: i32) -> (i32, i32, i32) {
    %c0_i32 = arith.constant 0 : i32
    %c0_i32_0 = arith.constant 0 : i32
    %c0_i32_1 = arith.constant 0 : i32
    return %arg0, %c0_i32, %c0_i32_0 : i32, i32, i32
  }
  func.func @transform_3(%arg0: i32) -> (i32, i32, i32) {
    %c0_i32 = arith.constant 0 : i32
    %c0_i32_0 = arith.constant 0 : i32
    %c0_i32_1 = arith.constant 0 : i32
    return %arg0, %c0_i32, %c0_i32_0 : i32, i32, i32
  }
  func.func @transform_4(%arg0: i32) -> (i32, i32) {
    %c0_i32 = arith.constant 0 : i32
    %c0_i32_0 = arith.constant 0 : i32
    %c0_i32_1 = arith.constant 0 : i32
    return %c0_i32, %c0_i32_0 : i32, i32
  }
  func.func @transform_5(%arg0: i32) -> (i32, i32) {
    %c0_i32 = arith.constant 0 : i32
    %c0_i32_0 = arith.constant 0 : i32
    %c0_i32_1 = arith.constant 0 : i32
    return %c0_i32, %c0_i32_0 : i32, i32
  }
  func.func @transform_6(%arg0: i32) -> (i32, i32) {
    %c0_i32 = arith.constant 0 : i32
    %c0_i32_0 = arith.constant 0 : i32
    %c0_i32_1 = arith.constant 0 : i32
    return %c0_i32, %c0_i32_0 : i32, i32
  }
  func.func @transform_7(%arg0: i32) -> (i32, i32) {
    %c0_i32 = arith.constant 0 : i32
    %c0_i32_0 = arith.constant 0 : i32
    %c0_i32_1 = arith.constant 0 : i32
    return %c0_i32, %c0_i32_0 : i32, i32
  }
  func.func @transform_8(%arg0: i32) -> (i32, i32, i32) {
    %c0_i32 = arith.constant 0 : i32
    %c0_i32_0 = arith.constant 0 : i32
    %c0_i32_1 = arith.constant 0 : i32
    return %arg0, %c0_i32, %c0_i32_0 : i32, i32, i32
  }
}

</mosaic_0001>

<llo_original>
// kernel: forward.5
$region0: #{forward.5}
  #allocation0 [shape = 'u32[]', space=smem, size = 0x4, offset = 0x4, fixed_abs, tag = 'smem constant byte address 0x4 - core index']
  #allocation1 [shape = 'u32[144,128]{1,0:T(1,128)}', space=vmem, size = 0x12000, scoped, tag = 'internal scratch']
  %s0 = inlined_call_operand.vmem [shape: f32[16,16], index: 0, kind: input, shape index: {}]
  %s1 = inlined_call_operand.vmem [shape: f32[16,256], index: 1, kind: input, shape index: {}]
  %s2 = inlined_call_operand.vmem [shape: f32[1,256], index: 2, kind: input, shape index: {}]
  %s3 = inlined_call_operand.vmem [shape: f32[16,256], index: 3, kind: output, shape index: {}]
  %s4 = sld [smem:[#allocation0]]
  $region22: #{forward.5} parent=0
    _
  %s6 = ssub.s32 1, %s4
  %s7 = scalar_select 0, %s6, %s4
  // Predicated region
  $region2: #{forward.5} parent=0 // pred_check
    _
  $region3: #{forward.5} parent=0 // pred_check_branch
    %9 = sbr.rel (0) target = $region5
  $region4: #{forward.5} parent=0 // pred_region
    _
  $region5: #{forward.5} parent=0 // pred_fallthru
    _
  // Predicated region
  $region6: #{forward.5} parent=0 // pred_check
    _
  $region7: #{forward.5} parent=0 // pred_check_branch
    %11 = sbr.rel (0) target = $region9
  $region8: #{forward.5} parent=0 // pred_region
    _
  $region9: #{forward.5} parent=0 // pred_fallthru
    _
  // Predicated region
  $region10: #{forward.5} parent=0 // pred_check
    _
  $region11: #{forward.5} parent=0 // pred_check_branch
    %13 = sbr.rel (0) target = $region13
  $region12: #{forward.5} parent=0 // pred_region
    _
  $region13: #{forward.5} parent=0 // pred_fallthru
    _
  %v14 = vld [vmem:[%s0] sm:$0xff]
  %v15 = vld [vmem:[%s0 + $0x8] sm:$0xff]
  %v16 = vld [vmem:[%s1] sm:$0xff]
  %v17 = vld [vmem:[%s1 + $0x8] sm:$0xff]
  %v18 = vld [vmem:[%s1 + $0x10] sm:$0xff]
  %v19 = vld [vmem:[%s1 + $0x18] sm:$0xff]
  %v20 = vld [vmem:[%s2] sm:$0x3]
  %v22 = vlaneseq
  %v23 = vshrl.u32 %v22, 7
  %v24 = vsub.s32 0, %v23
  %v25 = vrot.slane %v20, %v24
  %v26 = vlaneseq
  %v27 = vshrl.u32 %v26, 7
  %v28 = vsub.s32 1, %v27
  %v29 = vrot.slane %v20, %v28
  %vm32 = vcmask 130048
  %v34 = vsel %vm32, %v14, 0
  %v37 = vsel %vm32, %v15, 0
  %39 = vmatprep.subr.mxu0 %v17
  %40 = vmatpush1.msra.mxu0 %v16
  %41 = vmatprep.subr.mxu0 %v19
  %42 = vmatpush1.msra.mxu0 %v18
  %43 = vmatprep.subr.mxu0 0.0
  %44 = vmatpush1.msra.mxu0 0.0
  %45 = vmatprep.subr.mxu0 0.0
  %46 = vmatpush1.msra.mxu0 0.0
  %47 = vmatprep.subr.mxu0 0.0
  %48 = vmatpush1.msra.mxu0 0.0
  %49 = vmatprep.subr.mxu0 0.0
  %50 = vmatpush1.msra.mxu0 0.0
  %51 = vmatprep.subr.mxu0 0.0
  %52 = vmatpush1.msra.mxu0 0.0
  %53 = vmatprep.subr.mxu0 0.0
  %54 = vmatpush1.msra.mxu0 0.0
  %55 = vmatprep.subr.mxu0 0.0
  %56 = vmatpush1.msra.mxu0 0.0
  %57 = vmatprep.subr.mxu0 0.0
  %58 = vmatpush1.msra.mxu0 0.0
  %59 = vmatprep.subr.mxu0 0.0
  %60 = vmatpush1.msra.mxu0 0.0
  %61 = vmatprep.subr.mxu0 0.0
  %62 = vmatpush1.msra.mxu0 0.0
  %63 = vmatprep.subr.mxu0 0.0
  %64 = vmatpush1.msra.mxu0 0.0
  %65 = vmatprep.subr.mxu0 0.0
  %66 = vmatpush1.msra.mxu0 0.0
  %67 = vmatprep.subr.mxu0 0.0
  %68 = vmatpush1.msra.mxu0 0.0
  %69 = vmatprep.subr.mxu0 0.0
  %70 = vmatpush1.msra.mxu0 0.0
  %71 = vmatprep.subr.mxu0 0.0
  %72 = vmatpush1.msra.mxu0 0.0
  %73 = vmatprep.subr.mxu0 0.0
  %74 = vmatpush1.msra.mxu0 0.0
  %75 = vmatprep.subr.mxu0 0.0
  %76 = vmatpush1.msra.mxu0 0.0
  %77 = vmatprep.subr.mxu0 0.0
  %78 = vmatpush1.msra.mxu0 0.0
  %79 = vmatprep.subr.mxu0 0.0
  %80 = vmatpush1.msra.mxu0 0.0
  %81 = vmatprep.subr.mxu0 0.0
  %82 = vmatpush1.msra.mxu0 0.0
  %83 = vmatprep.subr.mxu0 0.0
  %84 = vmatpush1.msra.mxu0 0.0
  %85 = vmatprep.subr.mxu0 0.0
  %86 = vmatpush1.msra.mxu0 0.0
  %87 = vmatprep.subr.mxu0 0.0
  %88 = vmatpush1.msra.mxu0 0.0
  %89 = vmatprep.subr.mxu0 0.0
  %90 = vmatpush1.msra.mxu0 0.0
  %91 = vmatprep.subr.mxu0 0.0
  %92 = vmatpush1.msra.mxu0 0.0
  %93 = vmatprep.subr.mxu0 0.0
  %94 = vmatpush1.msra.mxu0 0.0
  %95 = vmatprep.subr.mxu0 0.0
  %96 = vmatpush1.msra.mxu0 0.0
  %97 = vmatprep.subr.mxu0 0.0
  %98 = vmatpush1.msra.mxu0 0.0
  %99 = vmatprep.subr.mxu0 0.0
  %100 = vmatpush1.msra.mxu0 0.0
  %101 = vmatprep.subr.mxu0 0.0
  %102 = vmatpush1.msra.mxu0 0.0
  %103 = vmatprep.mubr.f32.mxu0 0.0
  %104 = vmatmul.mubr.f32.gmra.mrb[0].mxu0 %v34
  %v105 = vpop.f32.mrb[0].mxu0
  %v106 = vadd.f32 %v25, %v105
  %v107 = vpop.f32.mrb[0].mxu0
  %v108 = vadd.f32 %v29, %v107
  %109 = vmatprep.mubr.f32.mxu0 0.0
  %110 = vmatmul.mubr.f32.gmra.mrb[0].mxu0 %v37
  %v111 = vpop.f32.mrb[0].mxu0
  %v112 = vadd.f32 %v25, %v111
  %v113 = vpop.f32.mrb[0].mxu0
  %v114 = vadd.f32 %v29, %v113
  %115 = vdwg.mxu0
  %116 = vst [vmem:[%s3] sm:$0xff] %v106
  %117 = vst [vmem:[%s3 + $0x8] sm:$0xff] %v108
  %118 = vst [vmem:[%s3 + $0x10] sm:$0xff] %v112
  %119 = vst [vmem:[%s3 + $0x18] sm:$0xff] %v114
  // Predicated region
  $region14: #{forward.5} parent=0 // pred_check
    _
  $region15: #{forward.5} parent=0 // pred_check_branch
    %121 = sbr.rel (0) target = $region17
  $region16: #{forward.5} parent=0 // pred_region
    _
  $region17: #{forward.5} parent=0 // pred_fallthru
    _
  // Predicated region
  $region18: #{forward.5} parent=0 // pred_check
    _
  $region19: #{forward.5} parent=0 // pred_check_branch
    %123 = sbr.rel (0) target = $region21
  $region20: #{forward.5} parent=0 // pred_region
    _
  $region21: #{forward.5} parent=0 // pred_fallthru
    _

// kernel: forward.7
$region0: #{forward.7}
  #allocation0 [shape = 'u32[]', space=smem, size = 0x4, offset = 0x4, fixed_abs, tag = 'smem constant byte address 0x4 - core index']
  #allocation1 [shape = 'u32[144,128]{1,0:T(1,128)}', space=vmem, size = 0x12000, scoped, tag = 'internal scratch']
  %s0 = inlined_call_operand.vmem [shape: f32[10,16], index: 0, kind: input, shape index: {}]
  %s1 = inlined_call_operand.vmem [shape: f32[16,128], index: 1, kind: input, shape index: {}]
  %s2 = inlined_call_operand.vmem [shape: f32[1,128], index: 2, kind: input, shape index: {}]
  %s3 = inlined_call_operand.vmem [shape: f32[10,128], index: 3, kind: output, shape index: {}]
  %s4 = sld [smem:[#allocation0]]
  $region22: #{forward.7} parent=0
    _
  %s6 = ssub.s32 1, %s4
  %s7 = scalar_select 0, %s6, %s4
  // Predicated region
  $region2: #{forward.7} parent=0 // pred_check
    _
  $region3: #{forward.7} parent=0 // pred_check_branch
    %9 = sbr.rel (0) target = $region5
  $region4: #{forward.7} parent=0 // pred_region
    _
  $region5: #{forward.7} parent=0 // pred_fallthru
    _
  // Predicated region
  $region6: #{forward.7} parent=0 // pred_check
    _
  $region7: #{forward.7} parent=0 // pred_check_branch
    %11 = sbr.rel (0) target = $region9
  $region8: #{forward.7} parent=0 // pred_region
    _
  $region9: #{forward.7} parent=0 // pred_fallthru
    _
  // Predicated region
  $region10: #{forward.7} parent=0 // pred_check
    _
  $region11: #{forward.7} parent=0 // pred_check_branch
    %13 = sbr.rel (0) target = $region13
  $region12: #{forward.7} parent=0 // pred_region
    _
  $region13: #{forward.7} parent=0 // pred_fallthru
    _
  %v14 = vld [vmem:[%s0] sm:$0xff]
  %v15 = vld [vmem:[%s0 + $0x8] sm:$0x3]
  %v16 = vld [vmem:[%s1] sm:$0xff]
  %v17 = vld [vmem:[%s1 + $0x8] sm:$0xff]
  %v18 = vld [vmem:[%s2] sm:$0x1]
  %v20 = vlaneseq
  %v21 = vshrl.u32 %v20, 7
  %v22 = vsub.s32 0, %v21
  %v23 = vrot.slane %v18, %v22
  %vm25 = vcmask 130048
  %v27 = vsel %vm25, %v14, 0
  %v30 = vsel %vm25, %v15, 0
  %32 = vmatprep.subr.mxu0 0.0
  %33 = vmatpush1.msra.mxu0 %v16
  %34 = vmatprep.subr.mxu0 0.0
  %35 = vmatpush1.msra.mxu0 %v17
  %36 = vmatprep.subr.mxu0 0.0
  %37 = vmatpush1.msra.mxu0 0.0
  %38 = vmatprep.subr.mxu0 0.0
  %39 = vmatpush1.msra.mxu0 0.0
  %40 = vmatprep.subr.mxu0 0.0
  %41 = vmatpush1.msra.mxu0 0.0
  %42 = vmatprep.subr.mxu0 0.0
  %43 = vmatpush1.msra.mxu0 0.0
  %44 = vmatprep.subr.mxu0 0.0
  %45 = vmatpush1.msra.mxu0 0.0
  %46 = vmatprep.subr.mxu0 0.0
  %47 = vmatpush1.msra.mxu0 0.0
  %48 = vmatprep.subr.mxu0 0.0
  %49 = vmatpush1.msra.mxu0 0.0
  %50 = vmatprep.subr.mxu0 0.0
  %51 = vmatpush1.msra.mxu0 0.0
  %52 = vmatprep.subr.mxu0 0.0
  %53 = vmatpush1.msra.mxu0 0.0
  %54 = vmatprep.subr.mxu0 0.0
  %55 = vmatpush1.msra.mxu0 0.0
  %56 = vmatprep.subr.mxu0 0.0
  %57 = vmatpush1.msra.mxu0 0.0
  %58 = vmatprep.subr.mxu0 0.0
  %59 = vmatpush1.msra.mxu0 0.0
  %60 = vmatprep.subr.mxu0 0.0
  %61 = vmatpush1.msra.mxu0 0.0
  %62 = vmatprep.subr.mxu0 0.0
  %63 = vmatpush1.msra.mxu0 0.0
  %64 = vmatprep.subr.mxu0 0.0
  %65 = vmatpush1.msra.mxu0 0.0
  %66 = vmatprep.subr.mxu0 0.0
  %67 = vmatpush1.msra.mxu0 0.0
  %68 = vmatprep.subr.mxu0 0.0
  %69 = vmatpush1.msra.mxu0 0.0
  %70 = vmatprep.subr.mxu0 0.0
  %71 = vmatpush1.msra.mxu0 0.0
  %72 = vmatprep.subr.mxu0 0.0
  %73 = vmatpush1.msra.mxu0 0.0
  %74 = vmatprep.subr.mxu0 0.0
  %75 = vmatpush1.msra.mxu0 0.0
  %76 = vmatprep.subr.mxu0 0.0
  %77 = vmatpush1.msra.mxu0 0.0
  %78 = vmatprep.subr.mxu0 0.0
  %79 = vmatpush1.msra.mxu0 0.0
  %80 = vmatprep.subr.mxu0 0.0
  %81 = vmatpush1.msra.mxu0 0.0
  %82 = vmatprep.subr.mxu0 0.0
  %83 = vmatpush1.msra.mxu0 0.0
  %84 = vmatprep.subr.mxu0 0.0
  %85 = vmatpush1.msra.mxu0 0.0
  %86 = vmatprep.subr.mxu0 0.0
  %87 = vmatpush1.msra.mxu0 0.0
  %88 = vmatprep.subr.mxu0 0.0
  %89 = vmatpush1.msra.mxu0 0.0
  %90 = vmatprep.subr.mxu0 0.0
  %91 = vmatpush1.msra.mxu0 0.0
  %92 = vmatprep.subr.mxu0 0.0
  %93 = vmatpush1.msra.mxu0 0.0
  %94 = vmatprep.subr.mxu0 0.0
  %95 = vmatpush1.msra.mxu0 0.0
  %96 = vmatprep.mubr.f32.mxu0 0.0
  %97 = vmatmul.mubr.f32.gmra.mrb[0].mxu0 %v27
  %v98 = vpop.f32.mrb[0].mxu0
  %v99 = vadd.f32 %v23, %v98
  %v100 = vpop.f32.mrb[0].mxu0
  %101 = vmatprep.mubr.f32.mxu0 0.0
  %102 = vmatmul.mubr.f32.gmra.mrb[0].mxu0 %v30
  %v103 = vpop.f32.mrb[0].mxu0
  %v104 = vadd.f32 %v23, %v103
  %v105 = vpop.f32.mrb[0].mxu0
  %106 = vdwg.mxu0
  %107 = vst [vmem:[%s3] sm:$0xff] %v99
  %108 = vst [vmem:[%s3 + $0x8] sm:$0x3] %v104
  // Predicated region
  $region14: #{forward.7} parent=0 // pred_check
    _
  $region15: #{forward.7} parent=0 // pred_check_branch
    %110 = sbr.rel (0) target = $region17
  $region16: #{forward.7} parent=0 // pred_region
    _
  $region17: #{forward.7} parent=0 // pred_fallthru
    _
  // Predicated region
  $region18: #{forward.7} parent=0 // pred_check
    _
  $region19: #{forward.7} parent=0 // pred_check_branch
    %112 = sbr.rel (0) target = $region21
  $region20: #{forward.7} parent=0 // pred_region
    _
  $region21: #{forward.7} parent=0 // pred_fallthru
    _

// kernel: forward.6
$region0: #{forward.6}
  #allocation0 [shape = 'u32[]', space=smem, size = 0x4, offset = 0x4, fixed_abs, tag = 'smem constant byte address 0x4 - core index']
  #allocation1 [shape = 'u32[144,128]{1,0:T(1,128)}', space=vmem, size = 0x12000, scoped, tag = 'internal scratch']
  %s0 = inlined_call_operand.vmem [shape: f32[8,2,256], index: 0, kind: input, shape index: {}]
  %s1 = inlined_call_operand.vmem [shape: f32[64,256], index: 1, kind: input, shape index: {}]
  %s2 = inlined_call_operand.vmem [shape: f32[8,2,32], index: 2, kind: output, shape index: {0}]
  %s3 = inlined_call_operand.vmem [shape: f32[8,2,32], index: 3, kind: output, shape index: {1}]
  %4 = xla_tuple %s2, %s3
  %s5 = sld [smem:[#allocation0]]
  $region26: #{forward.6} parent=0
    _
  %s7 = ssub.s32 1, %s5
  %s8 = scalar_select 0, %s7, %s5
  // Predicated region
  $region2: #{forward.6} parent=0 // pred_check
    _
  $region3: #{forward.6} parent=0 // pred_check_branch
    %10 = sbr.rel (0) target = $region5
  $region4: #{forward.6} parent=0 // pred_region
    _
  $region5: #{forward.6} parent=0 // pred_fallthru
    _
  // Predicated region
  $region6: #{forward.6} parent=0 // pred_check
    _
  $region7: #{forward.6} parent=0 // pred_check_branch
    %12 = sbr.rel (0) target = $region9
  $region8: #{forward.6} parent=0 // pred_region
    _
  $region9: #{forward.6} parent=0 // pred_fallthru
    _
  %v13 = vld [vmem:[%s1] sm:$0xff]
  %v14 = vld [vmem:[%s1 + $0x8] sm:$0xff]
  %v15 = vld [vmem:[%s1 + $0x10] sm:$0xff]
  %v16 = vld [vmem:[%s1 + $0x18] sm:$0xff]
  %v17 = vld [vmem:[%s1 + $0x20] sm:$0xff]
  %v18 = vld [vmem:[%s1 + $0x28] sm:$0xff]
  %v19 = vld [vmem:[%s1 + $0x30] sm:$0xff]
  %v20 = vld [vmem:[%s1 + $0x38] sm:$0xff]
  %v21 = vld [vmem:[%s1 + $0x40] sm:$0xff]
  %v22 = vld [vmem:[%s1 + $0x48] sm:$0xff]
  %v23 = vld [vmem:[%s1 + $0x50] sm:$0xff]
  %v24 = vld [vmem:[%s1 + $0x58] sm:$0xff]
  %v25 = vld [vmem:[%s1 + $0x60] sm:$0xff]
  %v26 = vld [vmem:[%s1 + $0x68] sm:$0xff]
  %v27 = vld [vmem:[%s1 + $0x70] sm:$0xff]
  %v28 = vld [vmem:[%s1 + $0x78] sm:$0xff]
  %v29 = vld [vmem:[%s0] sm:$0xf]
  %s30 = scalar_lea.vmem %s0, 28
  %v31 = vld [vmem:[%s30] sm:$0xf]
  %v34 = vunpack.c.l.s4 1983009808
  %v35 = vunpack.c.0.s8 %v34
  %v36 = vlaneseq
  %v37 = vshrl.u32 %v36, 7
  %v38 = vsub.s32 %v35, %v37
  %v39 = vrot.slane %v31, %v38
  %v40 = vcombine.high %v39, %v39
  %vm42 = vcmask 523264
  %v44 = vsel %vm42, 0.0, 0
  %46 = vmatprep.subr.mxu0 %v14
  %47 = vmatpush1.msra.mxu0 %v13
  %48 = vmatprep.subr.mxu0 %v16
  %49 = vmatpush1.msra.mxu0 %v15
  %50 = vmatprep.subr.mxu0 %v18
  %51 = vmatpush1.msra.mxu0 %v17
  %52 = vmatprep.subr.mxu0 %v20
  %53 = vmatpush1.msra.mxu0 %v19
  %54 = vmatprep.subr.mxu0 %v22
  %55 = vmatpush1.msra.mxu0 %v21
  %56 = vmatprep.subr.mxu0 %v24
  %57 = vmatpush1.msra.mxu0 %v23
  %58 = vmatprep.subr.mxu0 %v26
  %59 = vmatpush1.msra.mxu0 %v25
  %60 = vmatprep.subr.mxu0 %v28
  %61 = vmatpush1.msra.mxu0 %v27
  %62 = vmatprep.subr.mxu0 0.0
  %63 = vmatpush1.msra.mxu0 0.0
  %64 = vmatprep.subr.mxu0 0.0
  %65 = vmatpush1.msra.mxu0 0.0
  %66 = vmatprep.subr.mxu0 0.0
  %67 = vmatpush1.msra.mxu0 0.0
  %68 = vmatprep.subr.mxu0 0.0
  %69 = vmatpush1.msra.mxu0 0.0
  %70 = vmatprep.subr.mxu0 0.0
  %71 = vmatpush1.msra.mxu0 0.0
  %72 = vmatprep.subr.mxu0 0.0
  %73 = vmatpush1.msra.mxu0 0.0
  %74 = vmatprep.subr.mxu0 0.0
  %75 = vmatpush1.msra.mxu0 0.0
  %76 = vmatprep.subr.mxu0 0.0
  %77 = vmatpush1.msra.mxu0 0.0
  %78 = vmatprep.subr.mxu0 0.0
  %79 = vmatpush1.msra.mxu0 0.0
  %80 = vmatprep.subr.mxu0 0.0
  %81 = vmatpush1.msra.mxu0 0.0
  %82 = vmatprep.subr.mxu0 0.0
  %83 = vmatpush1.msra.mxu0 0.0
  %84 = vmatprep.subr.mxu0 0.0
  %85 = vmatpush1.msra.mxu0 0.0
  %86 = vmatprep.subr.mxu0 0.0
  %87 = vmatpush1.msra.mxu0 0.0
  %88 = vmatprep.subr.mxu0 0.0
  %89 = vmatpush1.msra.mxu0 0.0
  %90 = vmatprep.subr.mxu0 0.0
  %91 = vmatpush1.msra.mxu0 0.0
  %92 = vmatprep.subr.mxu0 0.0
  %93 = vmatpush1.msra.mxu0 0.0
  %94 = vmatprep.subr.mxu0 0.0
  %95 = vmatpush1.msra.mxu0 0.0
  %96 = vmatprep.subr.mxu0 0.0
  %97 = vmatpush1.msra.mxu0 0.0
  %98 = vmatprep.subr.mxu0 0.0
  %99 = vmatpush1.msra.mxu0 0.0
  %100 = vmatprep.subr.mxu0 0.0
  %101 = vmatpush1.msra.mxu0 0.0
  %102 = vmatprep.subr.mxu0 0.0
  %103 = vmatpush1.msra.mxu0 0.0
  %104 = vmatprep.subr.mxu0 0.0
  %105 = vmatpush1.msra.mxu0 0.0
  %106 = vmatprep.subr.mxu0 0.0
  %107 = vmatpush1.msra.mxu0 0.0
  %108 = vmatprep.subr.mxu0 0.0
  %109 = vmatpush1.msra.mxu0 0.0
  %110 = vmatprep.mubr.f32.mxu0 0.0
  %111 = vmatmul.mubr.f32.gmra.mrb[0].mxu0 %v44
  %v112 = vpop.f32.mrb[0].mxu0
  %v113 = vadd.f32 0.0, %v112
  %v114 = vpop.f32.mrb[0].mxu0
  %v115 = vadd.f32 0.0, %v114
  %116 = vdwg.mxu0
  %v117 = vadd.f32 %v29, %v113
  %v118 = vadd.f32 %v40, %v115
  %v119 = vxor.u32 %v117, 2147483648
  %v120 = vmul.f32 %v119, 1.442695
  %v121 = vpow.pop %v120
  %v122 = vadd.f32 %v121, 1.0
  %v123 = vrcp.pop %v122
  %v124 = vmul.f32 1.0, %v123
  %v125 = vtanh.pop %v117
  %v126 = vmul.f32 %v124, 0.0
  %128 = vrot.lane.b32.xlu0 %v125, 64
  %v129 = vpop.permute.xlu0 %128
  %v131 = vmul.f32 %v124, %v129
  %133 = vrot.lane.b32.xlu0 %v131, 32
  %v134 = vpop.permute.xlu0 %133
  %v136 = vadd.f32 %v126, %v134
  %v137 = vtanh.pop %v136
  %139 = vrot.lane.b32.xlu0 %v137, 64
  %v140 = vpop.permute.xlu0 %139
  %v142 = vmul.f32 %v124, %v140
  %v143 = vxor.u32 %v118, 2147483648
  %v144 = vmul.f32 %v143, 1.442695
  %v145 = vpow.pop %v144
  %v146 = vadd.f32 %v145, 1.0
  %v147 = vrcp.pop %v146
  %v148 = vmul.f32 1.0, %v147
  %v149 = vtanh.pop %v118
  %v150 = vmul.f32 %v148, 0.0
  %152 = vrot.lane.b32.xlu0 %v149, 64
  %v153 = vpop.permute.xlu0 %152
  %v155 = vmul.f32 %v148, %v153
  %157 = vrot.lane.b32.xlu0 %v155, 32
  %v158 = vpop.permute.xlu0 %157
  %v160 = vadd.f32 %v150, %v158
  %v161 = vtanh.pop %v160
  %163 = vrot.lane.b32.xlu0 %v161, 64
  %v164 = vpop.permute.xlu0 %163
  %v166 = vmul.f32 %v148, %v164
  %168 = vrot.lane.b32.xlu0 %v142, 32
  %v169 = vpop.permute.xlu0 %168
  %vm171 = vcmask 254976
  %172 = vst.msk [vmem:[%s2] sm:$0x3] %vm171, %v169
  %174 = vrot.lane.b32.xlu0 %v166, 32
  %v175 = vpop.permute.xlu0 %174
  %s177 = scalar_lea.vmem %s3, 14
  %178 = vst.msk [vmem:[%s177] sm:$0x3] %vm171, %v175
  %179 = vrot.lane.b32.xlu0 %v166, 64
  %v180 = vpop.permute.xlu0 %179
  %vm182 = vcmask 261120
  %v183 = vsel %vm182, %v169, %v180
  %185 = vrot.lane.b32.xlu0 %v136, 96
  %v186 = vpop.permute.xlu0 %185
  %v188 = vsel %vm182, %v186, %v160
  %s189 = scalar_lea.vmem %s0, 4
  %v190 = vld [vmem:[%s189] sm:$0xf]
  %s191 = scalar_lea.vmem %s0, 24
  %v192 = vld [vmem:[%s191] sm:$0xf]
  %v195 = vunpack.c.l.s4 1983009808
  %v196 = vunpack.c.0.s8 %v195
  %v197 = vlaneseq
  %v198 = vshrl.u32 %v197, 7
  %v199 = vsub.s32 %v196, %v198
  %v200 = vrot.slane %v192, %v199
  %v201 = vcombine.high %v200, %v200
  %v204 = vsel %vm42, %v183, 0
  %206 = vmatprep.subr.mxu0 %v14
  %207 = vmatpush1.msra.mxu0 %v13
  %208 = vmatprep.subr.mxu0 %v16
  %209 = vmatpush1.msra.mxu0 %v15
  %210 = vmatprep.subr.mxu0 %v18
  %211 = vmatpush1.msra.mxu0 %v17
  %212 = vmatprep.subr.mxu0 %v20
  %213 = vmatpush1.msra.mxu0 %v19
  %214 = vmatprep.subr.mxu0 %v22
  %215 = vmatpush1.msra.mxu0 %v21
  %216 = vmatprep.subr.mxu0 %v24
  %217 = vmatpush1.msra.mxu0 %v23
  %218 = vmatprep.subr.mxu0 %v26
  %219 = vmatpush1.msra.mxu0 %v25
  %220 = vmatprep.subr.mxu0 %v28
  %221 = vmatpush1.msra.mxu0 %v27
  %222 = vmatprep.subr.mxu0 0.0
  %223 = vmatpush1.msra.mxu0 0.0
  %224 = vmatprep.subr.mxu0 0.0
  %225 = vmatpush1.msra.mxu0 0.0
  %226 = vmatprep.subr.mxu0 0.0
  %227 = vmatpush1.msra.mxu0 0.0
  %228 = vmatprep.subr.mxu0 0.0
  %229 = vmatpush1.msra.mxu0 0.0
  %230 = vmatprep.subr.mxu0 0.0
  %231 = vmatpush1.msra.mxu0 0.0
  %232 = vmatprep.subr.mxu0 0.0
  %233 = vmatpush1.msra.mxu0 0.0
  %234 = vmatprep.subr.mxu0 0.0
  %235 = vmatpush1.msra.mxu0 0.0
  %236 = vmatprep.subr.mxu0 0.0
  %237 = vmatpush1.msra.mxu0 0.0
  %238 = vmatprep.subr.mxu0 0.0
  %239 = vmatpush1.msra.mxu0 0.0
  %240 = vmatprep.subr.mxu0 0.0
  %241 = vmatpush1.msra.mxu0 0.0
  %242 = vmatprep.subr.mxu0 0.0
  %243 = vmatpush1.msra.mxu0 0.0
  %244 = vmatprep.subr.mxu0 0.0
  %245 = vmatpush1.msra.mxu0 0.0
  %246 = vmatprep.subr.mxu0 0.0
  %247 = vmatpush1.msra.mxu0 0.0
  %248 = vmatprep.subr.mxu0 0.0
  %249 = vmatpush1.msra.mxu0 0.0
  %250 = vmatprep.subr.mxu0 0.0
  %251 = vmatpush1.msra.mxu0 0.0
  %252 = vmatprep.subr.mxu0 0.0
  %253 = vmatpush1.msra.mxu0 0.0
  %254 = vmatprep.subr.mxu0 0.0
  %255 = vmatpush1.msra.mxu0 0.0
  %256 = vmatprep.subr.mxu0 0.0
  %257 = vmatpush1.msra.mxu0 0.0
  %258 = vmatprep.subr.mxu0 0.0
  %259 = vmatpush1.msra.mxu0 0.0
  %260 = vmatprep.subr.mxu0 0.0
  %261 = vmatpush1.msra.mxu0 0.0
  %262 = vmatprep.subr.mxu0 0.0
  %263 = vmatpush1.msra.mxu0 0.0
  %264 = vmatprep.subr.mxu0 0.0
  %265 = vmatpush1.msra.mxu0 0.0
  %266 = vmatprep.subr.mxu0 0.0
  %267 = vmatpush1.msra.mxu0 0.0
  %268 = vmatprep.subr.mxu0 0.0
  %269 = vmatpush1.msra.mxu0 0.0
  %270 = vmatprep.mubr.f32.mxu0 0.0
  %271 = vmatmul.mubr.f32.gmra.mrb[0].mxu0 %v204
  %v272 = vpop.f32.mrb[0].mxu0
  %v273 = vadd.f32 0.0, %v272
  %v274 = vpop.f32.mrb[0].mxu0
  %v275 = vadd.f32 0.0, %v274
  %276 = vdwg.mxu0
  %v277 = vadd.f32 %v190, %v273
  %v278 = vadd.f32 %v201, %v275
  %v279 = vxor.u32 %v277, 2147483648
  %v280 = vmul.f32 %v279, 1.442695
  %v281 = vpow.pop %v280
  %v282 = vadd.f32 %v281, 1.0
  %v283 = vrcp.pop %v282
  %v284 = vmul.f32 1.0, %v283
  %v285 = vtanh.pop %v277
  %287 = vrot.lane.b32.xlu0 %v188, 32
  %v288 = vpop.permute.xlu0 %287
  %v290 = vmul.f32 %v284, %v288
  %292 = vrot.lane.b32.xlu0 %v285, 64
  %v293 = vpop.permute.xlu0 %292
  %v295 = vmul.f32 %v284, %v293
  %297 = vrot.lane.b32.xlu0 %v295, 32
  %v298 = vpop.permute.xlu0 %297
  %v300 = vadd.f32 %v290, %v298
  %v301 = vtanh.pop %v300
  %303 = vrot.lane.b32.xlu0 %v301, 64
  %v304 = vpop.permute.xlu0 %303
  %v306 = vmul.f32 %v284, %v304
  %v307 = vxor.u32 %v278, 2147483648
  %v308 = vmul.f32 %v307, 1.442695
  %v309 = vpow.pop %v308
  %v310 = vadd.f32 %v309, 1.0
  %v311 = vrcp.pop %v310
  %v312 = vmul.f32 1.0, %v311
  %v313 = vtanh.pop %v278
  %v314 = vmul.f32 %v312, %v188
  %316 = vrot.lane.b32.xlu0 %v313, 64
  %v317 = vpop.permute.xlu0 %316
  %v319 = vmul.f32 %v312, %v317
  %321 = vrot.lane.b32.xlu0 %v319, 32
  %v322 = vpop.permute.xlu0 %321
  %v324 = vadd.f32 %v314, %v322
  %v325 = vtanh.pop %v324
  %327 = vrot.lane.b32.xlu0 %v325, 64
  %v328 = vpop.permute.xlu0 %327
  %v330 = vmul.f32 %v312, %v328
  %332 = vrot.lane.b32.xlu0 %v306, 32
  %v333 = vpop.permute.xlu0 %332
  %s335 = scalar_lea.vmem %s2, 2
  %336 = vst.msk [vmem:[%s335] sm:$0x3] %vm171, %v333
  %338 = vrot.lane.b32.xlu0 %v330, 32
  %v339 = vpop.permute.xlu0 %338
  %s341 = scalar_lea.vmem %s3, 12
  %342 = vst.msk [vmem:[%s341] sm:$0x3] %vm171, %v339
  %343 = vrot.lane.b32.xlu0 %v330, 64
  %v344 = vpop.permute.xlu0 %343
  %v346 = vsel %vm182, %v333, %v344
  %348 = vrot.lane.b32.xlu0 %v300, 96
  %v349 = vpop.permute.xlu0 %348
  %v351 = vsel %vm182, %v349, %v324
  %s352 = scalar_lea.vmem %s0, 8
  %v353 = vld [vmem:[%s352] sm:$0xf]
  %s354 = scalar_lea.vmem %s0, 20
  %v355 = vld [vmem:[%s354] sm:$0xf]
  %v358 = vunpack.c.l.s4 1983009808
  %v359 = vunpack.c.0.s8 %v358
  %v360 = vlaneseq
  %v361 = vshrl.u32 %v360, 7
  %v362 = vsub.s32 %v359, %v361
  %v363 = vrot.slane %v355, %v362
  %v364 = vcombine.high %v363, %v363
  %v367 = vsel %vm42, %v346, 0
  %369 = vmatprep.subr.mxu0 %v14
  %370 = vmatpush1.msra.mxu0 %v13
  %371 = vmatprep.subr.mxu0 %v16
  %372 = vmatpush1.msra.mxu0 %v15
  %373 = vmatprep.subr.mxu0 %v18
  %374 = vmatpush1.msra.mxu0 %v17
  %375 = vmatprep.subr.mxu0 %v20
  %376 = vmatpush1.msra.mxu0 %v19
  %377 = vmatprep.subr.mxu0 %v22
  %378 = vmatpush1.msra.mxu0 %v21
  %379 = vmatprep.subr.mxu0 %v24
  %380 = vmatpush1.msra.mxu0 %v23
  %381 = vmatprep.subr.mxu0 %v26
  %382 = vmatpush1.msra.mxu0 %v25
  %383 = vmatprep.subr.mxu0 %v28
  %384 = vmatpush1.msra.mxu0 %v27
  %385 = vmatprep.subr.mxu0 0.0
  %386 = vmatpush1.msra.mxu0 0.0
  %387 = vmatprep.subr.mxu0 0.0
  %388 = vmatpush1.msra.mxu0 0.0
  %389 = vmatprep.subr.mxu0 0.0
  %390 = vmatpush1.msra.mxu0 0.0
  %391 = vmatprep.subr.mxu0 0.0
  %392 = vmatpush1.msra.mxu0 0.0
  %393 = vmatprep.subr.mxu0 0.0
  %394 = vmatpush1.msra.mxu0 0.0
  %395 = vmatprep.subr.mxu0 0.0
  %396 = vmatpush1.msra.mxu0 0.0
  %397 = vmatprep.subr.mxu0 0.0
  %398 = vmatpush1.msra.mxu0 0.0
  %399 = vmatprep.subr.mxu0 0.0
  %400 = vmatpush1.msra.mxu0 0.0
  %401 = vmatprep.subr.mxu0 0.0
  %402 = vmatpush1.msra.mxu0 0.0
  %403 = vmatprep.subr.mxu0 0.0
  %404 = vmatpush1.msra.mxu0 0.0
  %405 = vmatprep.subr.mxu0 0.0
  %406 = vmatpush1.msra.mxu0 0.0
  %407 = vmatprep.subr.mxu0 0.0
  %408 = vmatpush1.msra.mxu0 0.0
  %409 = vmatprep.subr.mxu0 0.0
  %410 = vmatpush1.msra.mxu0 0.0
  %411 = vmatprep.subr.mxu0 0.0
  %412 = vmatpush1.msra.mxu0 0.0
  %413 = vmatprep.subr.mxu0 0.0
  %414 = vmatpush1.msra.mxu0 0.0
  %415 = vmatprep.subr.mxu0 0.0
  %416 = vmatpush1.msra.mxu0 0.0
  %417 = vmatprep.subr.mxu0 0.0
  %418 = vmatpush1.msra.mxu0 0.0
  %419 = vmatprep.subr.mxu0 0.0
  %420 = vmatpush1.msra.mxu0 0.0
  %421 = vmatprep.subr.mxu0 0.0
  %422 = vmatpush1.msra.mxu0 0.0
  %423 = vmatprep.subr.mxu0 0.0
  %424 = vmatpush1.msra.mxu0 0.0
  %425 = vmatprep.subr.mxu0 0.0
  %426 = vmatpush1.msra.mxu0 0.0
  %427 = vmatprep.subr.mxu0 0.0
  %428 = vmatpush1.msra.mxu0 0.0
  %429 = vmatprep.subr.mxu0 0.0
  %430 = vmatpush1.msra.mxu0 0.0
  %431 = vmatprep.subr.mxu0 0.0
  %432 = vmatpush1.msra.mxu0 0.0
  %433 = vmatprep.mubr.f32.mxu0 0.0
  %434 = vmatmul.mubr.f32.gmra.mrb[0].mxu0 %v367
  %v435 = vpop.f32.mrb[0].mxu0
  %v436 = vadd.f32 0.0, %v435
  %v437 = vpop.f32.mrb[0].mxu0
  %v438 = vadd.f32 0.0, %v437
  %439 = vdwg.mxu0
  %v440 = vadd.f32 %v353, %v436
  %v441 = vadd.f32 %v364, %v438
  %v442 = vxor.u32 %v440, 2147483648
  %v443 = vmul.f32 %v442, 1.442695
  %v444 = vpow.pop %v443
  %v445 = vadd.f32 %v444, 1.0
  %v446 = vrcp.pop %v445
  %v447 = vmul.f32 1.0, %v446
  %v448 = vtanh.pop %v440
  %450 = vrot.lane.b32.xlu0 %v351, 32
  %v451 = vpop.permute.xlu0 %450
  %v453 = vmul.f32 %v447, %v451
  %455 = vrot.lane.b32.xlu0 %v448, 64
  %v456 = vpop.permute.xlu0 %455
  %v458 = vmul.f32 %v447, %v456
  %460 = vrot.lane.b32.xlu0 %v458, 32
  %v461 = vpop.permute.xlu0 %460
  %v463 = vadd.f32 %v453, %v461
  %v464 = vtanh.pop %v463
  %466 = vrot.lane.b32.xlu0 %v464, 64
  %v467 = vpop.permute.xlu0 %466
  %v469 = vmul.f32 %v447, %v467
  %v470 = vxor.u32 %v441, 2147483648
  %v471 = vmul.f32 %v470, 1.442695
  %v472 = vpow.pop %v471
  %v473 = vadd.f32 %v472, 1.0
  %v474 = vrcp.pop %v473
  %v475 = vmul.f32 1.0, %v474
  %v476 = vtanh.pop %v441
  %v477 = vmul.f32 %v475, %v351
  %479 = vrot.lane.b32.xlu0 %v476, 64
  %v480 = vpop.permute.xlu0 %479
  %v482 = vmul.f32 %v475, %v480
  %484 = vrot.lane.b32.xlu0 %v482, 32
  %v485 = vpop.permute.xlu0 %484
  %v487 = vadd.f32 %v477, %v485
  %v488 = vtanh.pop %v487
  %490 = vrot.lane.b32.xlu0 %v488, 64
  %v491 = vpop.permute.xlu0 %490
  %v493 = vmul.f32 %v475, %v491
  %495 = vrot.lane.b32.xlu0 %v469, 32
  %v496 = vpop.permute.xlu0 %495
  %s498 = scalar_lea.vmem %s2, 4
  %499 = vst.msk [vmem:[%s498] sm:$0x3] %vm171, %v496
  %501 = vrot.lane.b32.xlu0 %v493, 32
  %v502 = vpop.permute.xlu0 %501
  %s504 = scalar_lea.vmem %s3, 10
  %505 = vst.msk [vmem:[%s504] sm:$0x3] %vm171, %v502
  %506 = vrot.lane.b32.xlu0 %v493, 64
  %v507 = vpop.permute.xlu0 %506
  %v509 = vsel %vm182, %v496, %v507
  %511 = vrot.lane.b32.xlu0 %v463, 96
  %v512 = vpop.permute.xlu0 %511
  %v514 = vsel %vm182, %v512, %v487
  %s515 = scalar_lea.vmem %s0, 12
  %v516 = vld [vmem:[%s515] sm:$0xf]
  %s517 = scalar_lea.vmem %s0, 16
  %v518 = vld [vmem:[%s517] sm:$0xf]
  %v521 = vunpack.c.l.s4 1983009808
  %v522 = vunpack.c.0.s8 %v521
  %v523 = vlaneseq
  %v524 = vshrl.u32 %v523, 7
  %v525 = vsub.s32 %v522, %v524
  %v526 = vrot.slane %v518, %v525
  %v527 = vcombine.high %v526, %v526
  %v530 = vsel %vm42, %v509, 0
  %532 = vmatprep.subr.mxu0 %v14
  %533 = vmatpush1.msra.mxu0 %v13
  %534 = vmatprep.subr.mxu0 %v16
  %535 = vmatpush1.msra.mxu0 %v15
  %536 = vmatprep.subr.mxu0 %v18
  %537 = vmatpush1.msra.mxu0 %v17
  %538 = vmatprep.subr.mxu0 %v20
  %539 = vmatpush1.msra.mxu0 %v19
  %540 = vmatprep.subr.mxu0 %v22
  %541 = vmatpush1.msra.mxu0 %v21
  %542 = vmatprep.subr.mxu0 %v24
  %543 = vmatpush1.msra.mxu0 %v23
  %544 = vmatprep.subr.mxu0 %v26
  %545 = vmatpush1.msra.mxu0 %v25
  %546 = vmatprep.subr.mxu0 %v28
  %547 = vmatpush1.msra.mxu0 %v27
  %548 = vmatprep.subr.mxu0 0.0
  %549 = vmatpush1.msra.mxu0 0.0
  %550 = vmatprep.subr.mxu0 0.0
  %551 = vmatpush1.msra.mxu0 0.0
  %552 = vmatprep.subr.mxu0 0.0
  %553 = vmatpush1.msra.mxu0 0.0
  %554 = vmatprep.subr.mxu0 0.0
  %555 = vmatpush1.msra.mxu0 0.0
  %556 = vmatprep.subr.mxu0 0.0
  %557 = vmatpush1.msra.mxu0 0.0
  %558 = vmatprep.subr.mxu0 0.0
  %559 = vmatpush1.msra.mxu0 0.0
  %560 = vmatprep.subr.mxu0 0.0
  %561 = vmatpush1.msra.mxu0 0.0
  %562 = vmatprep.subr.mxu0 0.0
  %563 = vmatpush1.msra.mxu0 0.0
  %564 = vmatprep.subr.mxu0 0.0
  %565 = vmatpush1.msra.mxu0 0.0
  %566 = vmatprep.subr.mxu0 0.0
  %567 = vmatpush1.msra.mxu0 0.0
  %568 = vmatprep.subr.mxu0 0.0
  %569 = vmatpush1.msra.mxu0 0.0
  %570 = vmatprep.subr.mxu0 0.0
  %571 = vmatpush1.msra.mxu0 0.0
  %572 = vmatprep.subr.mxu0 0.0
  %573 = vmatpush1.msra.mxu0 0.0
  %574 = vmatprep.subr.mxu0 0.0
  %575 = vmatpush1.msra.mxu0 0.0
  %576 = vmatprep.subr.mxu0 0.0
  %577 = vmatpush1.msra.mxu0 0.0
  %578 = vmatprep.subr.mxu0 0.0
  %579 = vmatpush1.msra.mxu0 0.0
  %580 = vmatprep.subr.mxu0 0.0
  %581 = vmatpush1.msra.mxu0 0.0
  %582 = vmatprep.subr.mxu0 0.0
  %583 = vmatpush1.msra.mxu0 0.0
  %584 = vmatprep.subr.mxu0 0.0
  %585 = vmatpush1.msra.mxu0 0.0
  %586 = vmatprep.subr.mxu0 0.0
  %587 = vmatpush1.msra.mxu0 0.0
  %588 = vmatprep.subr.mxu0 0.0
  %589 = vmatpush1.msra.mxu0 0.0
  %590 = vmatprep.subr.mxu0 0.0
  %591 = vmatpush1.msra.mxu0 0.0
  %592 = vmatprep.subr.mxu0 0.0
  %593 = vmatpush1.msra.mxu0 0.0
  %594 = vmatprep.subr.mxu0 0.0
  %595 = vmatpush1.msra.mxu0 0.0
  %596 = vmatprep.mubr.f32.mxu0 0.0
  %597 = vmatmul.mubr.f32.gmra.mrb[0].mxu0 %v530
  %v598 = vpop.f32.mrb[0].mxu0
  %v599 = vadd.f32 0.0, %v598
  %v600 = vpop.f32.mrb[0].mxu0
  %v601 = vadd.f32 0.0, %v600
  %602 = vdwg.mxu0
  %v603 = vadd.f32 %v516, %v599
  %v604 = vadd.f32 %v527, %v601
  %v605 = vxor.u32 %v603, 2147483648
  %v606 = vmul.f32 %v605, 1.442695
  %v607 = vpow.pop %v606
  %v608 = vadd.f32 %v607, 1.0
  %v609 = vrcp.pop %v608
  %v610 = vmul.f32 1.0, %v609
  %v611 = vtanh.pop %v603
  %613 = vrot.lane.b32.xlu0 %v514, 32
  %v614 = vpop.permute.xlu0 %613
  %v616 = vmul.f32 %v610, %v614
  %618 = vrot.lane.b32.xlu0 %v611, 64
  %v619 = vpop.permute.xlu0 %618
  %v621 = vmul.f32 %v610, %v619
  %623 = vrot.lane.b32.xlu0 %v621, 32
  %v624 = vpop.permute.xlu0 %623
  %v626 = vadd.f32 %v616, %v624
  %v627 = vtanh.pop %v626
  %629 = vrot.lane.b32.xlu0 %v627, 64
  %v630 = vpop.permute.xlu0 %629
  %v632 = vmul.f32 %v610, %v630
  %v633 = vxor.u32 %v604, 2147483648
  %v634 = vmul.f32 %v633, 1.442695
  %v635 = vpow.pop %v634
  %v636 = vadd.f32 %v635, 1.0
  %v637 = vrcp.pop %v636
  %v638 = vmul.f32 1.0, %v637
  %v639 = vtanh.pop %v604
  %v640 = vmul.f32 %v638, %v514
  %642 = vrot.lane.b32.xlu0 %v639, 64
  %v643 = vpop.permute.xlu0 %642
  %v645 = vmul.f32 %v638, %v643
  %647 = vrot.lane.b32.xlu0 %v645, 32
  %v648 = vpop.permute.xlu0 %647
  %v650 = vadd.f32 %v640, %v648
  %v651 = vtanh.pop %v650
  %653 = vrot.lane.b32.xlu0 %v651, 64
  %v654 = vpop.permute.xlu0 %653
  %v656 = vmul.f32 %v638, %v654
  %658 = vrot.lane.b32.xlu0 %v632, 32
  %v659 = vpop.permute.xlu0 %658
  %s661 = scalar_lea.vmem %s2, 6
  %662 = vst.msk [vmem:[%s661] sm:$0x3] %vm171, %v659
  %664 = vrot.lane.b32.xlu0 %v656, 32
  %v665 = vpop.permute.xlu0 %664
  %s667 = scalar_lea.vmem %s3, 8
  %668 = vst.msk [vmem:[%s667] sm:$0x3] %vm171, %v665
  %669 = vrot.lane.b32.xlu0 %v656, 64
  %v670 = vpop.permute.xlu0 %669
  %v672 = vsel %vm182, %v659, %v670
  %674 = vrot.lane.b32.xlu0 %v626, 96
  %v675 = vpop.permute.xlu0 %674
  %v677 = vsel %vm182, %v675, %v650
  %v678 = vld [vmem:[%s517] sm:$0xf]
  %v679 = vld [vmem:[%s515] sm:$0xf]
  %v682 = vunpack.c.l.s4 1983009808
  %v683 = vunpack.c.0.s8 %v682
  %v684 = vlaneseq
  %v685 = vshrl.u32 %v684, 7
  %v686 = vsub.s32 %v683, %v685
  %v687 = vrot.slane %v679, %v686
  %v688 = vcombine.high %v687, %v687
  %v691 = vsel %vm42, %v672, 0
  %693 = vmatprep.subr.mxu0 %v14
  %694 = vmatpush1.msra.mxu0 %v13
  %695 = vmatprep.subr.mxu0 %v16
  %696 = vmatpush1.msra.mxu0 %v15
  %697 = vmatprep.subr.mxu0 %v18
  %698 = vmatpush1.msra.mxu0 %v17
  %699 = vmatprep.subr.mxu0 %v20
  %700 = vmatpush1.msra.mxu0 %v19
  %701 = vmatprep.subr.mxu0 %v22
  %702 = vmatpush1.msra.mxu0 %v21
  %703 = vmatprep.subr.mxu0 %v24
  %704 = vmatpush1.msra.mxu0 %v23
  %705 = vmatprep.subr.mxu0 %v26
  %706 = vmatpush1.msra.mxu0 %v25
  %707 = vmatprep.subr.mxu0 %v28
  %708 = vmatpush1.msra.mxu0 %v27
  %709 = vmatprep.subr.mxu0 0.0
  %710 = vmatpush1.msra.mxu0 0.0
  %711 = vmatprep.subr.mxu0 0.0
  %712 = vmatpush1.msra.mxu0 0.0
  %713 = vmatprep.subr.mxu0 0.0
  %714 = vmatpush1.msra.mxu0 0.0
  %715 = vmatprep.subr.mxu0 0.0
  %716 = vmatpush1.msra.mxu0 0.0
  %717 = vmatprep.subr.mxu0 0.0
  %718 = vmatpush1.msra.mxu0 0.0
  %719 = vmatprep.subr.mxu0 0.0
  %720 = vmatpush1.msra.mxu0 0.0
  %721 = vmatprep.subr.mxu0 0.0
  %722 = vmatpush1.msra.mxu0 0.0
  %723 = vmatprep.subr.mxu0 0.0
  %724 = vmatpush1.msra.mxu0 0.0
  %725 = vmatprep.subr.mxu0 0.0
  %726 = vmatpush1.msra.mxu0 0.0
  %727 = vmatprep.subr.mxu0 0.0
  %728 = vmatpush1.msra.mxu0 0.0
  %729 = vmatprep.subr.mxu0 0.0
  %730 = vmatpush1.msra.mxu0 0.0
  %731 = vmatprep.subr.mxu0 0.0
  %732 = vmatpush1.msra.mxu0 0.0
  %733 = vmatprep.subr.mxu0 0.0
  %734 = vmatpush1.msra.mxu0 0.0
  %735 = vmatprep.subr.mxu0 0.0
  %736 = vmatpush1.msra.mxu0 0.0
  %737 = vmatprep.subr.mxu0 0.0
  %738 = vmatpush1.msra.mxu0 0.0
  %739 = vmatprep.subr.mxu0 0.0
  %740 = vmatpush1.msra.mxu0 0.0
  %741 = vmatprep.subr.mxu0 0.0
  %742 = vmatpush1.msra.mxu0 0.0
  %743 = vmatprep.subr.mxu0 0.0
  %744 = vmatpush1.msra.mxu0 0.0
  %745 = vmatprep.subr.mxu0 0.0
  %746 = vmatpush1.msra.mxu0 0.0
  %747 = vmatprep.subr.mxu0 0.0
  %748 = vmatpush1.msra.mxu0 0.0
  %749 = vmatprep.subr.mxu0 0.0
  %750 = vmatpush1.msra.mxu0 0.0
  %751 = vmatprep.subr.mxu0 0.0
  %752 = vmatpush1.msra.mxu0 0.0
  %753 = vmatprep.subr.mxu0 0.0
  %754 = vmatpush1.msra.mxu0 0.0
  %755 = vmatprep.subr.mxu0 0.0
  %756 = vmatpush1.msra.mxu0 0.0
  %757 = vmatprep.mubr.f32.mxu0 0.0
  %758 = vmatmul.mubr.f32.gmra.mrb[0].mxu0 %v691
  %v759 = vpop.f32.mrb[0].mxu0
  %v760 = vadd.f32 0.0, %v759
  %v761 = vpop.f32.mrb[0].mxu0
  %v762 = vadd.f32 0.0, %v761
  %763 = vdwg.mxu0
  %v764 = vadd.f32 %v678, %v760
  %v765 = vadd.f32 %v688, %v762
  %v766 = vxor.u32 %v764, 2147483648
  %v767 = vmul.f32 %v766, 1.442695
  %v768 = vpow.pop %v767
  %v769 = vadd.f32 %v768, 1.0
  %v770 = vrcp.pop %v769
  %v771 = vmul.f32 1.0, %v770
  %v772 = vtanh.pop %v764
  %774 = vrot.lane.b32.xlu0 %v677, 32
  %v775 = vpop.permute.xlu0 %774
  %v777 = vmul.f32 %v771, %v775
  %779 = vrot.lane.b32.xlu0 %v772, 64
  %v780 = vpop.permute.xlu0 %779
  %v782 = vmul.f32 %v771, %v780
  %784 = vrot.lane.b32.xlu0 %v782, 32
  %v785 = vpop.permute.xlu0 %784
  %v787 = vadd.f32 %v777, %v785
  %v788 = vtanh.pop %v787
  %790 = vrot.lane.b32.xlu0 %v788, 64
  %v791 = vpop.permute.xlu0 %790
  %v793 = vmul.f32 %v771, %v791
  %v794 = vxor.u32 %v765, 2147483648
  %v795 = vmul.f32 %v794, 1.442695
  %v796 = vpow.pop %v795
  %v797 = vadd.f32 %v796, 1.0
  %v798 = vrcp.pop %v797
  %v799 = vmul.f32 1.0, %v798
  %v800 = vtanh.pop %v765
  %v801 = vmul.f32 %v799, %v677
  %803 = vrot.lane.b32.xlu0 %v800, 64
  %v804 = vpop.permute.xlu0 %803
  %v806 = vmul.f32 %v799, %v804
  %808 = vrot.lane.b32.xlu0 %v806, 32
  %v809 = vpop.permute.xlu0 %808
  %v811 = vadd.f32 %v801, %v809
  %v812 = vtanh.pop %v811
  %814 = vrot.lane.b32.xlu0 %v812, 64
  %v815 = vpop.permute.xlu0 %814
  %v817 = vmul.f32 %v799, %v815
  %819 = vrot.lane.b32.xlu0 %v793, 32
  %v820 = vpop.permute.xlu0 %819
  %s822 = scalar_lea.vmem %s2, 8
  %823 = vst.msk [vmem:[%s822] sm:$0x3] %vm171, %v820
  %825 = vrot.lane.b32.xlu0 %v817, 32
  %v826 = vpop.permute.xlu0 %825
  %s828 = scalar_lea.vmem %s3, 6
  %829 = vst.msk [vmem:[%s828] sm:$0x3] %vm171, %v826
  %830 = vrot.lane.b32.xlu0 %v817, 64
  %v831 = vpop.permute.xlu0 %830
  %v833 = vsel %vm182, %v820, %v831
  %835 = vrot.lane.b32.xlu0 %v787, 96
  %v836 = vpop.permute.xlu0 %835
  %v838 = vsel %vm182, %v836, %v811
  %v839 = vld [vmem:[%s354] sm:$0xf]
  %v840 = vld [vmem:[%s352] sm:$0xf]
  %v843 = vunpack.c.l.s4 1983009808
  %v844 = vunpack.c.0.s8 %v843
  %v845 = vlaneseq
  %v846 = vshrl.u32 %v845, 7
  %v847 = vsub.s32 %v844, %v846
  %v848 = vrot.slane %v840, %v847
  %v849 = vcombine.high %v848, %v848
  %v852 = vsel %vm42, %v833, 0
  %854 = vmatprep.subr.mxu0 %v14
  %855 = vmatpush1.msra.mxu0 %v13
  %856 = vmatprep.subr.mxu0 %v16
  %857 = vmatpush1.msra.mxu0 %v15
  %858 = vmatprep.subr.mxu0 %v18
  %859 = vmatpush1.msra.mxu0 %v17
  %860 = vmatprep.subr.mxu0 %v20
  %861 = vmatpush1.msra.mxu0 %v19
  %862 = vmatprep.subr.mxu0 %v22
  %863 = vmatpush1.msra.mxu0 %v21
  %864 = vmatprep.subr.mxu0 %v24
  %865 = vmatpush1.msra.mxu0 %v23
  %866 = vmatprep.subr.mxu0 %v26
  %867 = vmatpush1.msra.mxu0 %v25
  %868 = vmatprep.subr.mxu0 %v28
  %869 = vmatpush1.msra.mxu0 %v27
  %870 = vmatprep.subr.mxu0 0.0
  %871 = vmatpush1.msra.mxu0 0.0
  %872 = vmatprep.subr.mxu0 0.0
  %873 = vmatpush1.msra.mxu0 0.0
  %874 = vmatprep.subr.mxu0 0.0
  %875 = vmatpush1.msra.mxu0 0.0
  %876 = vmatprep.subr.mxu0 0.0
  %877 = vmatpush1.msra.mxu0 0.0
  %878 = vmatprep.subr.mxu0 0.0
  %879 = vmatpush1.msra.mxu0 0.0
  %880 = vmatprep.subr.mxu0 0.0
  %881 = vmatpush1.msra.mxu0 0.0
  %882 = vmatprep.subr.mxu0 0.0
  %883 = vmatpush1.msra.mxu0 0.0
  %884 = vmatprep.subr.mxu0 0.0
  %885 = vmatpush1.msra.mxu0 0.0
  %886 = vmatprep.subr.mxu0 0.0
  %887 = vmatpush1.msra.mxu0 0.0
  %888 = vmatprep.subr.mxu0 0.0
  %889 = vmatpush1.msra.mxu0 0.0
  %890 = vmatprep.subr.mxu0 0.0
  %891 = vmatpush1.msra.mxu0 0.0
  %892 = vmatprep.subr.mxu0 0.0
  %893 = vmatpush1.msra.mxu0 0.0
  %894 = vmatprep.subr.mxu0 0.0
  %895 = vmatpush1.msra.mxu0 0.0
  %896 = vmatprep.subr.mxu0 0.0
  %897 = vmatpush1.msra.mxu0 0.0
  %898 = vmatprep.subr.mxu0 0.0
  %899 = vmatpush1.msra.mxu0 0.0
  %900 = vmatprep.subr.mxu0 0.0
  %901 = vmatpush1.msra.mxu0 0.0
  %902 = vmatprep.subr.mxu0 0.0
  %903 = vmatpush1.msra.mxu0 0.0
  %904 = vmatprep.subr.mxu0 0.0
  %905 = vmatpush1.msra.mxu0 0.0
  %906 = vmatprep.subr.mxu0 0.0
  %907 = vmatpush1.msra.mxu0 0.0
  %908 = vmatprep.subr.mxu0 0.0
  %909 = vmatpush1.msra.mxu0 0.0
  %910 = vmatprep.subr.mxu0 0.0
  %911 = vmatpush1.msra.mxu0 0.0
  %912 = vmatprep.subr.mxu0 0.0
  %913 = vmatpush1.msra.mxu0 0.0
  %914 = vmatprep.subr.mxu0 0.0
  %915 = vmatpush1.msra.mxu0 0.0
  %916 = vmatprep.subr.mxu0 0.0
  %917 = vmatpush1.msra.mxu0 0.0
  %918 = vmatprep.mubr.f32.mxu0 0.0
  %919 = vmatmul.mubr.f32.gmra.mrb[0].mxu0 %v852
  %v920 = vpop.f32.mrb[0].mxu0
  %v921 = vadd.f32 0.0, %v920
  %v922 = vpop.f32.mrb[0].mxu0
  %v923 = vadd.f32 0.0, %v922
  %924 = vdwg.mxu0
  %v925 = vadd.f32 %v839, %v921
  %v926 = vadd.f32 %v849, %v923
  %v927 = vxor.u32 %v925, 2147483648
  %v928 = vmul.f32 %v927, 1.442695
  %v929 = vpow.pop %v928
  %v930 = vadd.f32 %v929, 1.0
  %v931 = vrcp.pop %v930
  %v932 = vmul.f32 1.0, %v931
  %v933 = vtanh.pop %v925
  %935 = vrot.lane.b32.xlu0 %v838, 32
  %v936 = vpop.permute.xlu0 %935
  %v938 = vmul.f32 %v932, %v936
  %940 = vrot.lane.b32.xlu0 %v933, 64
  %v941 = vpop.permute.xlu0 %940
  %v943 = vmul.f32 %v932, %v941
  %945 = vrot.lane.b32.xlu0 %v943, 32
  %v946 = vpop.permute.xlu0 %945
  %v948 = vadd.f32 %v938, %v946
  %v949 = vtanh.pop %v948
  %951 = vrot.lane.b32.xlu0 %v949, 64
  %v952 = vpop.permute.xlu0 %951
  %v954 = vmul.f32 %v932, %v952
  %v955 = vxor.u32 %v926, 2147483648
  %v956 = vmul.f32 %v955, 1.442695
  %v957 = vpow.pop %v956
  %v958 = vadd.f32 %v957, 1.0
  %v959 = vrcp.pop %v958
  %v960 = vmul.f32 1.0, %v959
  %v961 = vtanh.pop %v926
  %v962 = vmul.f32 %v960, %v838
  %964 = vrot.lane.b32.xlu0 %v961, 64
  %v965 = vpop.permute.xlu0 %964
  %v967 = vmul.f32 %v960, %v965
  %969 = vrot.lane.b32.xlu0 %v967, 32
  %v970 = vpop.permute.xlu0 %969
  %v972 = vadd.f32 %v962, %v970
  %v973 = vtanh.pop %v972
  %975 = vrot.lane.b32.xlu0 %v973, 64
  %v976 = vpop.permute.xlu0 %975
  %v978 = vmul.f32 %v960, %v976
  %980 = vrot.lane.b32.xlu0 %v954, 32
  %v981 = vpop.permute.xlu0 %980
  %s983 = scalar_lea.vmem %s2, 10
  %984 = vst.msk [vmem:[%s983] sm:$0x3] %vm171, %v981
  %986 = vrot.lane.b32.xlu0 %v978, 32
  %v987 = vpop.permute.xlu0 %986
  %s989 = scalar_lea.vmem %s3, 4
  %990 = vst.msk [vmem:[%s989] sm:$0x3] %vm171, %v987
  %991 = vrot.lane.b32.xlu0 %v978, 64
  %v992 = vpop.permute.xlu0 %991
  %v994 = vsel %vm182, %v981, %v992
  %996 = vrot.lane.b32.xlu0 %v948, 96
  %v997 = vpop.permute.xlu0 %996
  %v999 = vsel %vm182, %v997, %v972
  %v1000 = vld [vmem:[%s191] sm:$0xf]
  %v1001 = vld [vmem:[%s189] sm:$0xf]
  %v1004 = vunpack.c.l.s4 1983009808
  %v1005 = vunpack.c.0.s8 %v1004
  %v1006 = vlaneseq
  %v1007 = vshrl.u32 %v1006, 7
  %v1008 = vsub.s32 %v1005, %v1007
  %v1009 = vrot.slane %v1001, %v1008
  %v1010 = vcombine.high %v1009, %v1009
  %v1013 = vsel %vm42, %v994, 0
  %1015 = vmatprep.subr.mxu0 %v14
  %1016 = vmatpush1.msra.mxu0 %v13
  %1017 = vmatprep.subr.mxu0 %v16
  %1018 = vmatpush1.msra.mxu0 %v15
  %1019 = vmatprep.subr.mxu0 %v18
  %1020 = vmatpush1.msra.mxu0 %v17
  %1021 = vmatprep.subr.mxu0 %v20
  %1022 = vmatpush1.msra.mxu0 %v19
  %1023 = vmatprep.subr.mxu0 %v22
  %1024 = vmatpush1.msra.mxu0 %v21
  %1025 = vmatprep.subr.mxu0 %v24
  %1026 = vmatpush1.msra.mxu0 %v23
  %1027 = vmatprep.subr.mxu0 %v26
  %1028 = vmatpush1.msra.mxu0 %v25
  %1029 = vmatprep.subr.mxu0 %v28
  %1030 = vmatpush1.msra.mxu0 %v27
  %1031 = vmatprep.subr.mxu0 0.0
  %1032 = vmatpush1.msra.mxu0 0.0
  %1033 = vmatprep.subr.mxu0 0.0
  %1034 = vmatpush1.msra.mxu0 0.0
  %1035 = vmatprep.subr.mxu0 0.0
  %1036 = vmatpush1.msra.mxu0 0.0
  %1037 = vmatprep.subr.mxu0 0.0
  %1038 = vmatpush1.msra.mxu0 0.0
  %1039 = vmatprep.subr.mxu0 0.0
  %1040 = vmatpush1.msra.mxu0 0.0
  %1041 = vmatprep.subr.mxu0 0.0
  %1042 = vmatpush1.msra.mxu0 0.0
  %1043 = vmatprep.subr.mxu0 0.0
  %1044 = vmatpush1.msra.mxu0 0.0
  %1045 = vmatprep.subr.mxu0 0.0
  %1046 = vmatpush1.msra.mxu0 0.0
  %1047 = vmatprep.subr.mxu0 0.0
  %1048 = vmatpush1.msra.mxu0 0.0
  %1049 = vmatprep.subr.mxu0 0.0
  %1050 = vmatpush1.msra.mxu0 0.0
  %1051 = vmatprep.subr.mxu0 0.0
  %1052 = vmatpush1.msra.mxu0 0.0
  %1053 = vmatprep.subr.mxu0 0.0
  %1054 = vmatpush1.msra.mxu0 0.0
  %1055 = vmatprep.subr.mxu0 0.0
  %1056 = vmatpush1.msra.mxu0 0.0
  %1057 = vmatprep.subr.mxu0 0.0
  %1058 = vmatpush1.msra.mxu0 0.0
  %1059 = vmatprep.subr.mxu0 0.0
  %1060 = vmatpush1.msra.mxu0 0.0
  %1061 = vmatprep.subr.mxu0 0.0
  %1062 = vmatpush1.msra.mxu0 0.0
  %1063 = vmatprep.subr.mxu0 0.0
  %1064 = vmatpush1.msra.mxu0 0.0
  %1065 = vmatprep.subr.mxu0 0.0
  %1066 = vmatpush1.msra.mxu0 0.0
  %1067 = vmatprep.subr.mxu0 0.0
  %1068 = vmatpush1.msra.mxu0 0.0
  %1069 = vmatprep.subr.mxu0 0.0
  %1070 = vmatpush1.msra.mxu0 0.0
  %1071 = vmatprep.subr.mxu0 0.0
  %1072 = vmatpush1.msra.mxu0 0.0
  %1073 = vmatprep.subr.mxu0 0.0
  %1074 = vmatpush1.msra.mxu0 0.0
  %1075 = vmatprep.subr.mxu0 0.0
  %1076 = vmatpush1.msra.mxu0 0.0
  %1077 = vmatprep.subr.mxu0 0.0
  %1078 = vmatpush1.msra.mxu0 0.0
  %1079 = vmatprep.mubr.f32.mxu0 0.0
  %1080 = vmatmul.mubr.f32.gmra.mrb[0].mxu0 %v1013
  %v1081 = vpop.f32.mrb[0].mxu0
  %v1082 = vadd.f32 0.0, %v1081
  %v1083 = vpop.f32.mrb[0].mxu0
  %v1084 = vadd.f32 0.0, %v1083
  %1085 = vdwg.mxu0
  %v1086 = vadd.f32 %v1000, %v1082
  %v1087 = vadd.f32 %v1010, %v1084
  %v1088 = vxor.u32 %v1086, 2147483648
  %v1089 = vmul.f32 %v1088, 1.442695
  %v1090 = vpow.pop %v1089
  %v1091 = vadd.f32 %v1090, 1.0
  %v1092 = vrcp.pop %v1091
  %v1093 = vmul.f32 1.0, %v1092
  %v1094 = vtanh.pop %v1086
  %1096 = vrot.lane.b32.xlu0 %v999, 32
  %v1097 = vpop.permute.xlu0 %1096
  %v1099 = vmul.f32 %v1093, %v1097
  %1101 = vrot.lane.b32.xlu0 %v1094, 64
  %v1102 = vpop.permute.xlu0 %1101
  %v1104 = vmul.f32 %v1093, %v1102
  %1106 = vrot.lane.b32.xlu0 %v1104, 32
  %v1107 = vpop.permute.xlu0 %1106
  %v1109 = vadd.f32 %v1099, %v1107
  %v1110 = vtanh.pop %v1109
  %1112 = vrot.lane.b32.xlu0 %v1110, 64
  %v1113 = vpop.permute.xlu0 %1112
  %v1115 = vmul.f32 %v1093, %v1113
  %v1116 = vxor.u32 %v1087, 2147483648
  %v1117 = vmul.f32 %v1116, 1.442695
  %v1118 = vpow.pop %v1117
  %v1119 = vadd.f32 %v1118, 1.0
  %v1120 = vrcp.pop %v1119
  %v1121 = vmul.f32 1.0, %v1120
  %v1122 = vtanh.pop %v1087
  %v1123 = vmul.f32 %v1121, %v999
  %1125 = vrot.lane.b32.xlu0 %v1122, 64
  %v1126 = vpop.permute.xlu0 %1125
  %v1128 = vmul.f32 %v1121, %v1126
  %1130 = vrot.lane.b32.xlu0 %v1128, 32
  %v1131 = vpop.permute.xlu0 %1130
  %v1133 = vadd.f32 %v1123, %v1131
  %v1134 = vtanh.pop %v1133
  %1136 = vrot.lane.b32.xlu0 %v1134, 64
  %v1137 = vpop.permute.xlu0 %1136
  %v1139 = vmul.f32 %v1121, %v1137
  %1141 = vrot.lane.b32.xlu0 %v1115, 32
  %v1142 = vpop.permute.xlu0 %1141
  %s1144 = scalar_lea.vmem %s2, 12
  %1145 = vst.msk [vmem:[%s1144] sm:$0x3] %vm171, %v1142
  %1147 = vrot.lane.b32.xlu0 %v1139, 32
  %v1148 = vpop.permute.xlu0 %1147
  %s1150 = scalar_lea.vmem %s3, 2
  %1151 = vst.msk [vmem:[%s1150] sm:$0x3] %vm171, %v1148
  %1152 = vrot.lane.b32.xlu0 %v1139, 64
  %v1153 = vpop.permute.xlu0 %1152
  %v1155 = vsel %vm182, %v1142, %v1153
  %1157 = vrot.lane.b32.xlu0 %v1109, 96
  %v1158 = vpop.permute.xlu0 %1157
  %v1160 = vsel %vm182, %v1158, %v1133
  %v1161 = vld [vmem:[%s30] sm:$0xf]
  %v1162 = vld [vmem:[%s0] sm:$0xf]
  %v1165 = vunpack.c.l.s4 1983009808
  %v1166 = vunpack.c.0.s8 %v1165
  %v1167 = vlaneseq
  %v1168 = vshrl.u32 %v1167, 7
  %v1169 = vsub.s32 %v1166, %v1168
  %v1170 = vrot.slane %v1162, %v1169
  %v1171 = vcombine.high %v1170, %v1170
  %v1174 = vsel %vm42, %v1155, 0
  %1176 = vmatprep.subr.mxu0 %v14
  %1177 = vmatpush1.msra.mxu0 %v13
  %1178 = vmatprep.subr.mxu0 %v16
  %1179 = vmatpush1.msra.mxu0 %v15
  %1180 = vmatprep.subr.mxu0 %v18
  %1181 = vmatpush1.msra.mxu0 %v17
  %1182 = vmatprep.subr.mxu0 %v20
  %1183 = vmatpush1.msra.mxu0 %v19
  %1184 = vmatprep.subr.mxu0 %v22
  %1185 = vmatpush1.msra.mxu0 %v21
  %1186 = vmatprep.subr.mxu0 %v24
  %1187 = vmatpush1.msra.mxu0 %v23
  %1188 = vmatprep.subr.mxu0 %v26
  %1189 = vmatpush1.msra.mxu0 %v25
  %1190 = vmatprep.subr.mxu0 %v28
  %1191 = vmatpush1.msra.mxu0 %v27
  %1192 = vmatprep.subr.mxu0 0.0
  %1193 = vmatpush1.msra.mxu0 0.0
  %1194 = vmatprep.subr.mxu0 0.0
  %1195 = vmatpush1.msra.mxu0 0.0
  %1196 = vmatprep.subr.mxu0 0.0
  %1197 = vmatpush1.msra.mxu0 0.0
  %1198 = vmatprep.subr.mxu0 0.0
  %1199 = vmatpush1.msra.mxu0 0.0
  %1200 = vmatprep.subr.mxu0 0.0
  %1201 = vmatpush1.msra.mxu0 0.0
  %1202 = vmatprep.subr.mxu0 0.0
  %1203 = vmatpush1.msra.mxu0 0.0
  %1204 = vmatprep.subr.mxu0 0.0
  %1205 = vmatpush1.msra.mxu0 0.0
  %1206 = vmatprep.subr.mxu0 0.0
  %1207 = vmatpush1.msra.mxu0 0.0
  %1208 = vmatprep.subr.mxu0 0.0
  %1209 = vmatpush1.msra.mxu0 0.0
  %1210 = vmatprep.subr.mxu0 0.0
  %1211 = vmatpush1.msra.mxu0 0.0
  %1212 = vmatprep.subr.mxu0 0.0
  %1213 = vmatpush1.msra.mxu0 0.0
  %1214 = vmatprep.subr.mxu0 0.0
  %1215 = vmatpush1.msra.mxu0 0.0
  %1216 = vmatprep.subr.mxu0 0.0
  %1217 = vmatpush1.msra.mxu0 0.0
  %1218 = vmatprep.subr.mxu0 0.0
  %1219 = vmatpush1.msra.mxu0 0.0
  %1220 = vmatprep.subr.mxu0 0.0
  %1221 = vmatpush1.msra.mxu0 0.0
  %1222 = vmatprep.subr.mxu0 0.0
  %1223 = vmatpush1.msra.mxu0 0.0
  %1224 = vmatprep.subr.mxu0 0.0
  %1225 = vmatpush1.msra.mxu0 0.0
  %1226 = vmatprep.subr.mxu0 0.0
  %1227 = vmatpush1.msra.mxu0 0.0
  %1228 = vmatprep.subr.mxu0 0.0
  %1229 = vmatpush1.msra.mxu0 0.0
  %1230 = vmatprep.subr.mxu0 0.0
  %1231 = vmatpush1.msra.mxu0 0.0
  %1232 = vmatprep.subr.mxu0 0.0
  %1233 = vmatpush1.msra.mxu0 0.0
  %1234 = vmatprep.subr.mxu0 0.0
  %1235 = vmatpush1.msra.mxu0 0.0
  %1236 = vmatprep.subr.mxu0 0.0
  %1237 = vmatpush1.msra.mxu0 0.0
  %1238 = vmatprep.subr.mxu0 0.0
  %1239 = vmatpush1.msra.mxu0 0.0
  %1240 = vmatprep.mubr.f32.mxu0 0.0
  %1241 = vmatmul.mubr.f32.gmra.mrb[0].mxu0 %v1174
  %v1242 = vpop.f32.mrb[0].mxu0
  %v1243 = vadd.f32 0.0, %v1242
  %v1244 = vpop.f32.mrb[0].mxu0
  %v1245 = vadd.f32 0.0, %v1244
  %1246 = vdwg.mxu0
  %v1247 = vadd.f32 %v1161, %v1243
  %v1248 = vadd.f32 %v1171, %v1245
  %v1249 = vxor.u32 %v1247, 2147483648
  %v1250 = vmul.f32 %v1249, 1.442695
  %v1251 = vpow.pop %v1250
  %v1252 = vadd.f32 %v1251, 1.0
  %v1253 = vrcp.pop %v1252
  %v1254 = vmul.f32 1.0, %v1253
  %v1255 = vtanh.pop %v1247
  %1257 = vrot.lane.b32.xlu0 %v1160, 32
  %v1258 = vpop.permute.xlu0 %1257
  %v1260 = vmul.f32 %v1254, %v1258
  %1262 = vrot.lane.b32.xlu0 %v1255, 64
  %v1263 = vpop.permute.xlu0 %1262
  %v1265 = vmul.f32 %v1254, %v1263
  %1267 = vrot.lane.b32.xlu0 %v1265, 32
  %v1268 = vpop.permute.xlu0 %1267
  %v1270 = vadd.f32 %v1260, %v1268
  %v1271 = vtanh.pop %v1270
  %1273 = vrot.lane.b32.xlu0 %v1271, 64
  %v1274 = vpop.permute.xlu0 %1273
  %v1276 = vmul.f32 %v1254, %v1274
  %v1277 = vxor.u32 %v1248, 2147483648
  %v1278 = vmul.f32 %v1277, 1.442695
  %v1279 = vpow.pop %v1278
  %v1280 = vadd.f32 %v1279, 1.0
  %v1281 = vrcp.pop %v1280
  %v1282 = vmul.f32 1.0, %v1281
  %v1283 = vtanh.pop %v1248
  %v1284 = vmul.f32 %v1282, %v1160
  %1286 = vrot.lane.b32.xlu0 %v1283, 64
  %v1287 = vpop.permute.xlu0 %1286
  %v1289 = vmul.f32 %v1282, %v1287
  %1291 = vrot.lane.b32.xlu0 %v1289, 32
  %v1292 = vpop.permute.xlu0 %1291
  %v1294 = vadd.f32 %v1284, %v1292
  %v1295 = vtanh.pop %v1294
  %1297 = vrot.lane.b32.xlu0 %v1295, 64
  %v1298 = vpop.permute.xlu0 %1297
  %v1300 = vmul.f32 %v1282, %v1298
  %1302 = vrot.lane.b32.xlu0 %v1276, 32
  %v1303 = vpop.permute.xlu0 %1302
  %s1305 = scalar_lea.vmem %s2, 14
  %1306 = vst.msk [vmem:[%s1305] sm:$0x3] %vm171, %v1303
  %1308 = vrot.lane.b32.xlu0 %v1300, 32
  %v1309 = vpop.permute.xlu0 %1308
  %1311 = vst.msk [vmem:[%s3] sm:$0x3] %vm171, %v1309
  // Predicated region
  $region10: #{forward.6} parent=0 // pred_check
    _
  $region11: #{forward.6} parent=0 // pred_check_branch
    %1313 = sbr.rel (0) target = $region13
  $region12: #{forward.6} parent=0 // pred_region
    _
  $region13: #{forward.6} parent=0 // pred_fallthru
    _
  // Predicated region
  $region14: #{forward.6} parent=0 // pred_check
    _
  $region15: #{forward.6} parent=0 // pred_check_branch
    %1315 = sbr.rel (0) target = $region17
  $region16: #{forward.6} parent=0 // pred_region
    _
  $region17: #{forward.6} parent=0 // pred_fallthru
    _
  // Predicated region
  $region18: #{forward.6} parent=0 // pred_check
    _
  $region19: #{forward.6} parent=0 // pred_check_branch
    %1317 = sbr.rel (0) target = $region21
  $region20: #{forward.6} parent=0 // pred_region
    _
  $region21: #{forward.6} parent=0 // pred_fallthru
    _
  // Predicated region
  $region22: #{forward.6} parent=0 // pred_check
    _
  $region23: #{forward.6} parent=0 // pred_check_branch
    %1319 = sbr.rel (0) target = $region25
  $region24: #{forward.6} parent=0 // pred_region
    _
  $region25: #{forward.6} parent=0 // pred_fallthru
    _

// kernel: forward.8
$region0: #{forward.8}
  #allocation0 [shape = 'u32[]', space=smem, size = 0x4, offset = 0x4, fixed_abs, tag = 'smem constant byte address 0x4 - core index']
  #allocation1 [shape = 'u32[144,128]{1,0:T(1,128)}', space=vmem, size = 0x12000, scoped, tag = 'internal scratch']
  %s0 = inlined_call_operand.vmem [shape: f32[5,2,128], index: 0, kind: input, shape index: {}]
  %s1 = inlined_call_operand.vmem [shape: f32[2,8,64], index: 1, kind: input, shape index: {}]
  %s2 = inlined_call_operand.vmem [shape: f32[32,128], index: 2, kind: input, shape index: {}]
  %s3 = inlined_call_operand.vmem [shape: f32[1,64], index: 3, kind: input, shape index: {}]
  %s4 = inlined_call_operand.vmem [shape: f32[1,32], index: 4, kind: input, shape index: {}]
  %s5 = inlined_call_operand.vmem [shape: f32[2,2,8], index: 5, kind: input, shape index: {}]
  %s6 = inlined_call_operand.vmem [shape: f32[5,2,96], index: 6, kind: output, shape index: {0}]
  %s7 = inlined_call_operand.vmem [shape: f32[5,2,8], index: 7, kind: output, shape index: {1}]
  %s8 = inlined_call_operand.hbm [shape: f32[1,1], index: 8, kind: output, shape index: {2}]
  %9 = xla_tuple %s6, %s7, %s8
  %s10 = sld [smem:[#allocation0]]
  $region50: #{forward.8} parent=0
    _
  %s12 = ssub.s32 1, %s10
  %s13 = scalar_select 0, %s12, %s10
  $region1: #{forward.8} parent=0
    #allocation2 [shape = 'u8[512]{0}', space=vmem, size = 0x400, scoped, tag = 'output window, operand 2, single buffered']
    #allocation3 [shape = 's32[1]{0}', space=sflag, size = 0x4, scoped, tag = 'scoped memory for forward.8']
    %14 = vsyncpa [#allocation3], 0
    // Predicated region
    $region2: #{forward.8} parent=1 // pred_check
      _
    $region3: #{forward.8} parent=1 // pred_check_branch
      %16 = sbr.rel (0) target = $region5
    $region4: #{forward.8} parent=1 // pred_region
      _
    $region5: #{forward.8} parent=1 // pred_fallthru
      _
    // Predicated region
    $region6: #{forward.8} parent=1 // pred_check
      _
    $region7: #{forward.8} parent=1 // pred_check_branch
      %18 = sbr.rel (0) target = $region9
    $region8: #{forward.8} parent=1 // pred_region
      _
    $region9: #{forward.8} parent=1 // pred_fallthru
      _
    // Predicated region
    $region10: #{forward.8} parent=1 // pred_check
      _
    $region11: #{forward.8} parent=1 // pred_check_branch
      %20 = sbr.rel (0) target = $region13
    $region12: #{forward.8} parent=1 // pred_region
      _
    $region13: #{forward.8} parent=1 // pred_fallthru
      _
    // Predicated region
    $region14: #{forward.8} parent=1 // pred_check
      _
    $region15: #{forward.8} parent=1 // pred_check_branch
      %22 = sbr.rel (0) target = $region17
    $region16: #{forward.8} parent=1 // pred_region
      _
    $region17: #{forward.8} parent=1 // pred_fallthru
      _
    // Predicated region
    $region18: #{forward.8} parent=1 // pred_check
      _
    $region19: #{forward.8} parent=1 // pred_check_branch
      %24 = sbr.rel (0) target = $region21
    $region20: #{forward.8} parent=1 // pred_region
      _
    $region21: #{forward.8} parent=1 // pred_fallthru
      _
    // Predicated region
    $region22: #{forward.8} parent=1 // pred_check
      _
    $region23: #{forward.8} parent=1 // pred_check_branch
      %26 = sbr.rel (0) target = $region25
    $region24: #{forward.8} parent=1 // pred_region
      _
    $region25: #{forward.8} parent=1 // pred_fallthru
      _
    %v27 = vld [vmem:[%s1] sm:$0xff]
    %v28 = vld [vmem:[%s1 + $0x8] sm:$0xff]
    %v29 = vld [vmem:[%s2] sm:$0xff]
    %v30 = vld [vmem:[%s2 + $0x8] sm:$0xff]
    %v31 = vld [vmem:[%s2 + $0x10] sm:$0xff]
    %v32 = vld [vmem:[%s2 + $0x18] sm:$0xff]
    %v33 = vld [vmem:[%s4] sm:$0x1]
    %v34 = vld [vmem:[%s5] sm:$0x3]
    %v35 = vld [vmem:[%s5 + $0x2] sm:$0x3]
    %v36 = vld [vmem:[%s3] sm:$0x1]
    %v38 = vlaneseq
    %v39 = vshrl.u32 %v38, 7
    %v40 = vsub.s32 0, %v39
    %v41 = vrot.slane %v36, %v40
    %v43 = vmul.f32 %v27, %v41
    %v44 = vmul.f32 %v28, %v41
    %vm45 = vcmask 523264
    %v46 = vsel %vm45, %v43, 0.0
    %47 = vadd.xlane.f32.xlu0 %v46
    %v48 = vpop.xlane.xlu0 %47
    %v49 = vsel %vm45, %v44, 0.0
    %50 = vadd.xlane.f32.xlu0 %v49
    %v51 = vpop.xlane.xlu0 %50
    %v52 = vld [vmem:[%s0] sm:$0x3]
    %vm53 = vcmask 261120
    %v55 = vsel %vm53, 0.0, 0
    %57 = vmatprep.subr.mxu0 0.0
    %58 = vmatpush1.msra.mxu0 %v29
    %59 = vmatprep.subr.mxu0 0.0
    %60 = vmatpush1.msra.mxu0 %v30
    %61 = vmatprep.subr.mxu0 0.0
    %62 = vmatpush1.msra.mxu0 %v31
    %63 = vmatprep.subr.mxu0 0.0
    %64 = vmatpush1.msra.mxu0 %v32
    %65 = vmatprep.subr.mxu0 0.0
    %66 = vmatpush1.msra.mxu0 0.0
    %67 = vmatprep.subr.mxu0 0.0
    %68 = vmatpush1.msra.mxu0 0.0
    %69 = vmatprep.subr.mxu0 0.0
    %70 = vmatpush1.msra.mxu0 0.0
    %71 = vmatprep.subr.mxu0 0.0
    %72 = vmatpush1.msra.mxu0 0.0
    %73 = vmatprep.subr.mxu0 0.0
    %74 = vmatpush1.msra.mxu0 0.0
    %75 = vmatprep.subr.mxu0 0.0
    %76 = vmatpush1.msra.mxu0 0.0
    %77 = vmatprep.subr.mxu0 0.0
    %78 = vmatpush1.msra.mxu0 0.0
    %79 = vmatprep.subr.mxu0 0.0
    %80 = vmatpush1.msra.mxu0 0.0
    %81 = vmatprep.subr.mxu0 0.0
    %82 = vmatpush1.msra.mxu0 0.0
    %83 = vmatprep.subr.mxu0 0.0
    %84 = vmatpush1.msra.mxu0 0.0
    %85 = vmatprep.subr.mxu0 0.0
    %86 = vmatpush1.msra.mxu0 0.0
    %87 = vmatprep.subr.mxu0 0.0
    %88 = vmatpush1.msra.mxu0 0.0
    %89 = vmatprep.subr.mxu0 0.0
    %90 = vmatpush1.msra.mxu0 0.0
    %91 = vmatprep.subr.mxu0 0.0
    %92 = vmatpush1.msra.mxu0 0.0
    %93 = vmatprep.subr.mxu0 0.0
    %94 = vmatpush1.msra.mxu0 0.0
    %95 = vmatprep.subr.mxu0 0.0
    %96 = vmatpush1.msra.mxu0 0.0
    %97 = vmatprep.subr.mxu0 0.0
    %98 = vmatpush1.msra.mxu0 0.0
    %99 = vmatprep.subr.mxu0 0.0
    %100 = vmatpush1.msra.mxu0 0.0
    %101 = vmatprep.subr.mxu0 0.0
    %102 = vmatpush1.msra.mxu0 0.0
    %103 = vmatprep.subr.mxu0 0.0
    %104 = vmatpush1.msra.mxu0 0.0
    %105 = vmatprep.subr.mxu0 0.0
    %106 = vmatpush1.msra.mxu0 0.0
    %107 = vmatprep.subr.mxu0 0.0
    %108 = vmatpush1.msra.mxu0 0.0
    %109 = vmatprep.subr.mxu0 0.0
    %110 = vmatpush1.msra.mxu0 0.0
    %111 = vmatprep.subr.mxu0 0.0
    %112 = vmatpush1.msra.mxu0 0.0
    %113 = vmatprep.subr.mxu0 0.0
    %114 = vmatpush1.msra.mxu0 0.0
    %115 = vmatprep.subr.mxu0 0.0
    %116 = vmatpush1.msra.mxu0 0.0
    %117 = vmatprep.subr.mxu0 0.0
    %118 = vmatpush1.msra.mxu0 0.0
    %119 = vmatprep.subr.mxu0 0.0
    %120 = vmatpush1.msra.mxu0 0.0
    %121 = vmatprep.mubr.f32.mxu0 0.0
    %122 = vmatmul.mubr.f32.gmra.mrb[0].mxu0 %v55
    %v123 = vpop.f32.mrb[0].mxu0
    %v124 = vadd.f32 0.0, %v123
    %v125 = vpop.f32.mrb[0].mxu0
    %126 = vdwg.mxu0
    %v127 = vadd.f32 %v52, %v124
    %v128 = vxor.u32 %v127, 2147483648
    %v129 = vmul.f32 %v128, 1.442695
    %v130 = vpow.pop %v129
    %v131 = vadd.f32 %v130, 1.0
    %v132 = vrcp.pop %v131
    %v133 = vmul.f32 1.0, %v132
    %v134 = vtanh.pop %v127
    %v135 = vmul.f32 %v133, 0.0
    %137 = vrot.lane.b32.xlu0 %v134, 64
    %v138 = vpop.permute.xlu0 %137
    %v140 = vmul.f32 %v133, %v138
    %142 = vrot.lane.b32.xlu0 %v140, 32
    %v143 = vpop.permute.xlu0 %142
    %v145 = vadd.f32 %v135, %v143
    %v146 = vtanh.pop %v145
    %148 = vrot.lane.b32.xlu0 %v146, 64
    %v149 = vpop.permute.xlu0 %148
    %v151 = vmul.f32 %v133, %v149
    %v153 = vlaneseq
    %v154 = vshrl.u32 %v153, 7
    %v155 = vsub.s32 0, %v154
    %v156 = vrot.slane %v33, %v155
    %157 = vrot.lane.b32.xlu0 %v156, 96
    %v158 = vpop.permute.xlu0 %157
    %v160 = vmul.f32 %v151, %v158
    %162 = vrot.lane.b32.xlu0 %v160, 32
    %v163 = vpop.permute.xlu0 %162
    %vm165 = vcmask 254976
    %v166 = vsel %vm165, %v163, 0.0
    %167 = vadd.xlane.f32.xlu0 %v166
    %v168 = vpop.xlane.xlu0 %167
    %v169 = vmul.f32 %v34, %v168
    %v170 = vmul.f32 %v35, %v168
    %vm171 = vcmask 58368
    %v172 = vsel %vm171, %v169, 0.0
    %v173 = vrot.slane %v172, 4
    %v174 = vadd.f32 %v172, %v173
    %v175 = vrot.slane %v174, 2
    %v176 = vadd.f32 %v174, %v175
    %v177 = vrot.slane %v176, 1
    %v178 = vadd.f32 %v176, %v177
    %v179 = vsel %vm171, %v170, 0.0
    %v180 = vrot.slane %v179, 4
    %v181 = vadd.f32 %v179, %v180
    %v182 = vrot.slane %v181, 2
    %v183 = vadd.f32 %v181, %v182
    %v184 = vrot.slane %v183, 1
    %v185 = vadd.f32 %v183, %v184
    %189 = vbcast.lane.b32.xlu0 %v178, 256
    %v190 = vpop.permute.xlu0 %189
    %192 = vbcast.lane.b32.xlu0 %v185, 256
    %v193 = vpop.permute.xlu0 %192
    %v196 = vadd.f32 %v48, %v190
    %v197 = vadd.f32 %v51, %v193
    %200 = vset.pattern.permute.xlu0 0
    %201 = vperm.xlu0 %200, %v196
    %v202 = vpop.permute.xlu0 %201
    %203 = vset.pattern.permute.xlu0 0
    %204 = vperm.xlu0 %203, %v197
    %v205 = vpop.permute.xlu0 %204
    %v206 = vlaneseq
    %v207 = vand.u32 %v206, 127
    %v208 = vlaneseq
    %v209 = vshrl.u32 %v208, 7
    %v210 = vsub.s32 %v207, %v209
    %v211 = vrot.slane %v202, %v210
    %v212 = vlaneseq
    %v213 = vshrl.u32 %v212, 7
    %v214 = vsub.s32 %v207, %v213
    %v215 = vrot.slane %v205, %v214
    %vm216 = vcmask 1041409
    %v217 = vsel %vm216, %v215, %v211
    %v219 = vsel %vm171, %v217, -inf
    %220 = vmax.xlane.f32.xlu0 %v219
    %v221 = vpop.xlane.xlu0 %220
    %v223 = vlaneseq
    %v224 = vshrl.u32 %v223, 7
    %v225 = vsub.s32 0, %v224
    %v226 = vrot.slane %v221, %v225
    %v227 = vlaneseq
    %v228 = vshrl.u32 %v227, 7
    %v229 = vsub.s32 1, %v228
    %v230 = vrot.slane %v221, %v229
    %v233 = vsub.f32 %v196, %v226
    %v234 = vsub.f32 %v197, %v230
    %v235 = vmul.f32 %v233, 1.442695
    %v236 = vpow.pop %v235
    %v237 = vmul.f32 %v234, 1.442695
    %v238 = vpow.pop %v237
    %241 = vset.pattern.permute.xlu0 0
    %242 = vperm.xlu0 %241, %v236
    %v243 = vpop.permute.xlu0 %242
    %244 = vset.pattern.permute.xlu0 0
    %245 = vperm.xlu0 %244, %v238
    %v246 = vpop.permute.xlu0 %245
    %v247 = vlaneseq
    %v248 = vshrl.u32 %v247, 7
    %v249 = vsub.s32 %v207, %v248
    %v250 = vrot.slane %v243, %v249
    %v251 = vlaneseq
    %v252 = vshrl.u32 %v251, 7
    %v253 = vsub.s32 %v207, %v252
    %v254 = vrot.slane %v246, %v253
    %v255 = vsel %vm216, %v254, %v250
    %v257 = vsel %vm171, %v255, 0.0
    %258 = vadd.xlane.f32.xlu0 %v257
    %v259 = vpop.xlane.xlu0 %258
    %v261 = vlaneseq
    %v262 = vshrl.u32 %v261, 7
    %v263 = vsub.s32 0, %v262
    %v264 = vrot.slane %v259, %v263
    %v265 = vlaneseq
    %v266 = vshrl.u32 %v265, 7
    %v267 = vsub.s32 1, %v266
    %v268 = vrot.slane %v259, %v267
    %v271 = vrcp.pop %v264
    %v272 = vmul.f32 %v236, %v271
    %v273 = vrcp.pop %v268
    %v274 = vmul.f32 %v238, %v273
    %v275 = vmin.f32 %v272, 0.0
    %v276 = vmin.f32 %v274, 0.0
    %279 = vset.pattern.permute.xlu0 0
    %280 = vperm.xlu0 %279, %v275
    %v281 = vpop.permute.xlu0 %280
    %282 = vset.pattern.permute.xlu0 0
    %283 = vperm.xlu0 %282, %v276
    %v284 = vpop.permute.xlu0 %283
    %v285 = vlaneseq
    %v286 = vshrl.u32 %v285, 7
    %v287 = vsub.s32 %v207, %v286
    %v288 = vrot.slane %v281, %v287
    %v289 = vlaneseq
    %v290 = vshrl.u32 %v289, 7
    %v291 = vsub.s32 %v207, %v290
    %v292 = vrot.slane %v284, %v291
    %v293 = vsel %vm216, %v292, %v288
    %v295 = vsel %vm171, %v293, 0.0
    %296 = vadd.xlane.f32.xlu0 %v295
    %v297 = vpop.xlane.xlu0 %296
    %v298 = vrot.slane %v297, 4
    %v299 = vadd.f32 %v297, %v298
    %v300 = vrot.slane %v299, 2
    %v301 = vadd.f32 %v299, %v300
    %v302 = vrot.slane %v301, 1
    %v303 = vadd.f32 %v301, %v302
    %s304 = vtos %v303
    %v305 = vstv %s304
    %v306 = vadd.f32 %v305, 0.0
    %v307 = vadd.f32 %v272, 0.0
    %v308 = vadd.f32 %v274, 0.0
    %310 = vset.pattern.permute.xlu0 0
    %311 = vperm.xlu0 %310, %v272
    %v312 = vpop.permute.xlu0 %311
    %v313 = vlaneseq
    %v314 = vshrl.u32 %v313, 7
    %v315 = vsub.s32 %v207, %v314
    %v316 = vrot.slane %v312, %v315
    %vm317 = vcmask 64512
    %v318 = vsel %vm317, %v316, 0
    %320 = vmatprep.subr.mxu0 0.0
    %321 = vmatpush1.msra.mxu0 %v27
    %322 = vmatprep.subr.mxu0 0.0
    %323 = vmatpush1.msra.mxu0 0.0
    %324 = vmatprep.subr.mxu0 0.0
    %325 = vmatpush1.msra.mxu0 0.0
    %326 = vmatprep.subr.mxu0 0.0
    %327 = vmatpush1.msra.mxu0 0.0
    %328 = vmatprep.subr.mxu0 0.0
    %329 = vmatpush1.msra.mxu0 0.0
    %330 = vmatprep.subr.mxu0 0.0
    %331 = vmatpush1.msra.mxu0 0.0
    %332 = vmatprep.subr.mxu0 0.0
    %333 = vmatpush1.msra.mxu0 0.0
    %334 = vmatprep.subr.mxu0 0.0
    %335 = vmatpush1.msra.mxu0 0.0
    %336 = vmatprep.subr.mxu0 0.0
    %337 = vmatpush1.msra.mxu0 0.0
    %338 = vmatprep.subr.mxu0 0.0
    %339 = vmatpush1.msra.mxu0 0.0
    %340 = vmatprep.subr.mxu0 0.0
    %341 = vmatpush1.msra.mxu0 0.0
    %342 = vmatprep.subr.mxu0 0.0
    %343 = vmatpush1.msra.mxu0 0.0
    %344 = vmatprep.subr.mxu0 0.0
    %345 = vmatpush1.msra.mxu0 0.0
    %346 = vmatprep.subr.mxu0 0.0
    %347 = vmatpush1.msra.mxu0 0.0
    %348 = vmatprep.subr.mxu0 0.0
    %349 = vmatpush1.msra.mxu0 0.0
    %350 = vmatprep.subr.mxu0 0.0
    %351 = vmatpush1.msra.mxu0 0.0
    %352 = vmatprep.subr.mxu0 0.0
    %353 = vmatpush1.msra.mxu0 0.0
    %354 = vmatprep.subr.mxu0 0.0
    %355 = vmatpush1.msra.mxu0 0.0
    %356 = vmatprep.subr.mxu0 0.0
    %357 = vmatpush1.msra.mxu0 0.0
    %358 = vmatprep.subr.mxu0 0.0
    %359 = vmatpush1.msra.mxu0 0.0
    %360 = vmatprep.subr.mxu0 0.0
    %361 = vmatpush1.msra.mxu0 0.0
    %362 = vmatprep.subr.mxu0 0.0
    %363 = vmatpush1.msra.mxu0 0.0
    %364 = vmatprep.subr.mxu0 0.0
    %365 = vmatpush1.msra.mxu0 0.0
    %366 = vmatprep.subr.mxu0 0.0
    %367 = vmatpush1.msra.mxu0 0.0
    %368 = vmatprep.subr.mxu0 0.0
    %369 = vmatpush1.msra.mxu0 0.0
    %370 = vmatprep.subr.mxu0 0.0
    %371 = vmatpush1.msra.mxu0 0.0
    %372 = vmatprep.subr.mxu0 0.0
    %373 = vmatpush1.msra.mxu0 0.0
    %374 = vmatprep.subr.mxu0 0.0
    %375 = vmatpush1.msra.mxu0 0.0
    %376 = vmatprep.subr.mxu0 0.0
    %377 = vmatpush1.msra.mxu0 0.0
    %378 = vmatprep.subr.mxu0 0.0
    %379 = vmatpush1.msra.mxu0 0.0
    %380 = vmatprep.subr.mxu0 0.0
    %381 = vmatpush1.msra.mxu0 0.0
    %382 = vmatprep.subr.mxu0 0.0
    %383 = vmatpush1.msra.mxu0 0.0
    %384 = vmatprep.mubr.f32.mxu0 0.0
    %385 = vmatmul.mubr.f32.gmra.mrb[0].mxu0 %v318
    %v386 = vpop.f32.mrb[0].mxu0
    %v387 = vadd.f32 0.0, %v386
    %v388 = vpop.f32.mrb[0].mxu0
    %389 = vdwg.mxu0
    %391 = vset.pattern.permute.xlu0 0
    %392 = vperm.xlu0 %391, %v274
    %v393 = vpop.permute.xlu0 %392
    %v394 = vlaneseq
    %v395 = vshrl.u32 %v394, 7
    %v396 = vsub.s32 %v207, %v395
    %v397 = vrot.slane %v393, %v396
    %v398 = vsel %vm317, %v397, 0
    %400 = vmatprep.subr.mxu0 0.0
    %401 = vmatpush1.msra.mxu0 %v28
    %402 = vmatprep.subr.mxu0 0.0
    %403 = vmatpush1.msra.mxu0 0.0
    %404 = vmatprep.subr.mxu0 0.0
    %405 = vmatpush1.msra.mxu0 0.0
    %406 = vmatprep.subr.mxu0 0.0
    %407 = vmatpush1.msra.mxu0 0.0
    %408 = vmatprep.subr.mxu0 0.0
    %409 = vmatpush1.msra.mxu0 0.0
    %410 = vmatprep.subr.mxu0 0.0
    %411 = vmatpush1.msra.mxu0 0.0
    %412 = vmatprep.subr.mxu0 0.0
    %413 = vmatpush1.msra.mxu0 0.0
    %414 = vmatprep.subr.mxu0 0.0
    %415 = vmatpush1.msra.mxu0 0.0
    %416 = vmatprep.subr.mxu0 0.0
    %417 = vmatpush1.msra.mxu0 0.0
    %418 = vmatprep.subr.mxu0 0.0
    %419 = vmatpush1.msra.mxu0 0.0
    %420 = vmatprep.subr.mxu0 0.0
    %421 = vmatpush1.msra.mxu0 0.0
    %422 = vmatprep.subr.mxu0 0.0
    %423 = vmatpush1.msra.mxu0 0.0
    %424 = vmatprep.subr.mxu0 0.0
    %425 = vmatpush1.msra.mxu0 0.0
    %426 = vmatprep.subr.mxu0 0.0
    %427 = vmatpush1.msra.mxu0 0.0
    %428 = vmatprep.subr.mxu0 0.0
    %429 = vmatpush1.msra.mxu0 0.0
    %430 = vmatprep.subr.mxu0 0.0
    %431 = vmatpush1.msra.mxu0 0.0
    %432 = vmatprep.subr.mxu0 0.0
    %433 = vmatpush1.msra.mxu0 0.0
    %434 = vmatprep.subr.mxu0 0.0
    %435 = vmatpush1.msra.mxu0 0.0
    %436 = vmatprep.subr.mxu0 0.0
    %437 = vmatpush1.msra.mxu0 0.0
    %438 = vmatprep.subr.mxu0 0.0
    %439 = vmatpush1.msra.mxu0 0.0
    %440 = vmatprep.subr.mxu0 0.0
    %441 = vmatpush1.msra.mxu0 0.0
    %442 = vmatprep.subr.mxu0 0.0
    %443 = vmatpush1.msra.mxu0 0.0
    %444 = vmatprep.subr.mxu0 0.0
    %445 = vmatpush1.msra.mxu0 0.0
    %446 = vmatprep.subr.mxu0 0.0
    %447 = vmatpush1.msra.mxu0 0.0
    %448 = vmatprep.subr.mxu0 0.0
    %449 = vmatpush1.msra.mxu0 0.0
    %450 = vmatprep.subr.mxu0 0.0
    %451 = vmatpush1.msra.mxu0 0.0
    %452 = vmatprep.subr.mxu0 0.0
    %453 = vmatpush1.msra.mxu0 0.0
    %454 = vmatprep.subr.mxu0 0.0
    %455 = vmatpush1.msra.mxu0 0.0
    %456 = vmatprep.subr.mxu0 0.0
    %457 = vmatpush1.msra.mxu0 0.0
    %458 = vmatprep.subr.mxu0 0.0
    %459 = vmatpush1.msra.mxu0 0.0
    %460 = vmatprep.subr.mxu0 0.0
    %461 = vmatpush1.msra.mxu0 0.0
    %462 = vmatprep.subr.mxu0 0.0
    %463 = vmatpush1.msra.mxu0 0.0
    %464 = vmatprep.mubr.f32.mxu0 0.0
    %465 = vmatmul.mubr.f32.gmra.mrb[0].mxu0 %v398
    %v466 = vpop.f32.mrb[0].mxu0
    %v467 = vadd.f32 0.0, %v466
    %v468 = vpop.f32.mrb[0].mxu0
    %469 = vdwg.mxu0
    %471 = vrot.lane.b32.xlu0 %v151, 32
    %v472 = vpop.permute.xlu0 %471
    %v476 = vrot.slane %v467, 7
    %v477 = vsel %vm216, %v476, %v387
    %478 = vrot.lane.b32.xlu0 %v477, 32
    %v479 = vpop.permute.xlu0 %478
    %v481 = vsel %vm53, %v472, %v479
    %vm482 = vcmask 779264
    %483 = vst.msk [vmem:[%s6] sm:$0x3] %vm482, %v481
    %v484 = vsel %vm216, %v397, %v316
    %486 = vst.msk [vmem:[%s7] sm:$0x3] %vm171, %v484
    %s487 = scalar_lea.vmem %s0, 2
    %v488 = vld [vmem:[%s487] sm:$0x3]
    %v489 = vsel %vm53, %v472, 0
    %491 = vmatprep.subr.mxu0 0.0
    %492 = vmatpush1.msra.mxu0 %v29
    %493 = vmatprep.subr.mxu0 0.0
    %494 = vmatpush1.msra.mxu0 %v30
    %495 = vmatprep.subr.mxu0 0.0
    %496 = vmatpush1.msra.mxu0 %v31
    %497 = vmatprep.subr.mxu0 0.0
    %498 = vmatpush1.msra.mxu0 %v32
    %499 = vmatprep.subr.mxu0 0.0
    %500 = vmatpush1.msra.mxu0 0.0
    %501 = vmatprep.subr.mxu0 0.0
    %502 = vmatpush1.msra.mxu0 0.0
    %503 = vmatprep.subr.mxu0 0.0
    %504 = vmatpush1.msra.mxu0 0.0
    %505 = vmatprep.subr.mxu0 0.0
    %506 = vmatpush1.msra.mxu0 0.0
    %507 = vmatprep.subr.mxu0 0.0
    %508 = vmatpush1.msra.mxu0 0.0
    %509 = vmatprep.subr.mxu0 0.0
    %510 = vmatpush1.msra.mxu0 0.0
    %511 = vmatprep.subr.mxu0 0.0
    %512 = vmatpush1.msra.mxu0 0.0
    %513 = vmatprep.subr.mxu0 0.0
    %514 = vmatpush1.msra.mxu0 0.0
    %515 = vmatprep.subr.mxu0 0.0
    %516 = vmatpush1.msra.mxu0 0.0
    %517 = vmatprep.subr.mxu0 0.0
    %518 = vmatpush1.msra.mxu0 0.0
    %519 = vmatprep.subr.mxu0 0.0
    %520 = vmatpush1.msra.mxu0 0.0
    %521 = vmatprep.subr.mxu0 0.0
    %522 = vmatpush1.msra.mxu0 0.0
    %523 = vmatprep.subr.mxu0 0.0
    %524 = vmatpush1.msra.mxu0 0.0
    %525 = vmatprep.subr.mxu0 0.0
    %526 = vmatpush1.msra.mxu0 0.0
    %527 = vmatprep.subr.mxu0 0.0
    %528 = vmatpush1.msra.mxu0 0.0
    %529 = vmatprep.subr.mxu0 0.0
    %530 = vmatpush1.msra.mxu0 0.0
    %531 = vmatprep.subr.mxu0 0.0
    %532 = vmatpush1.msra.mxu0 0.0
    %533 = vmatprep.subr.mxu0 0.0
    %534 = vmatpush1.msra.mxu0 0.0
    %535 = vmatprep.subr.mxu0 0.0
    %536 = vmatpush1.msra.mxu0 0.0
    %537 = vmatprep.subr.mxu0 0.0
    %538 = vmatpush1.msra.mxu0 0.0
    %539 = vmatprep.subr.mxu0 0.0
    %540 = vmatpush1.msra.mxu0 0.0
    %541 = vmatprep.subr.mxu0 0.0
    %542 = vmatpush1.msra.mxu0 0.0
    %543 = vmatprep.subr.mxu0 0.0
    %544 = vmatpush1.msra.mxu0 0.0
    %545 = vmatprep.subr.mxu0 0.0
    %546 = vmatpush1.msra.mxu0 0.0
    %547 = vmatprep.subr.mxu0 0.0
    %548 = vmatpush1.msra.mxu0 0.0
    %549 = vmatprep.subr.mxu0 0.0
    %550 = vmatpush1.msra.mxu0 0.0
    %551 = vmatprep.subr.mxu0 0.0
    %552 = vmatpush1.msra.mxu0 0.0
    %553 = vmatprep.subr.mxu0 0.0
    %554 = vmatpush1.msra.mxu0 0.0
    %555 = vmatprep.mubr.f32.mxu0 0.0
    %556 = vmatmul.mubr.f32.gmra.mrb[0].mxu0 %v489
    %v557 = vpop.f32.mrb[0].mxu0
    %v558 = vadd.f32 0.0, %v557
    %v559 = vpop.f32.mrb[0].mxu0
    %560 = vdwg.mxu0
    %v561 = vadd.f32 %v488, %v558
    %v562 = vxor.u32 %v561, 2147483648
    %v563 = vmul.f32 %v562, 1.442695
    %v564 = vpow.pop %v563
    %v565 = vadd.f32 %v564, 1.0
    %v566 = vrcp.pop %v565
    %v567 = vmul.f32 1.0, %v566
    %v568 = vtanh.pop %v561
    %v569 = vmul.f32 %v567, %v145
    %571 = vrot.lane.b32.xlu0 %v568, 64
    %v572 = vpop.permute.xlu0 %571
    %v574 = vmul.f32 %v567, %v572
    %576 = vrot.lane.b32.xlu0 %v574, 32
    %v577 = vpop.permute.xlu0 %576
    %v579 = vadd.f32 %v569, %v577
    %v580 = vtanh.pop %v579
    %582 = vrot.lane.b32.xlu0 %v580, 64
    %v583 = vpop.permute.xlu0 %582
    %v585 = vmul.f32 %v567, %v583
    %v586 = vmul.f32 %v585, %v158
    %588 = vrot.lane.b32.xlu0 %v586, 32
    %v589 = vpop.permute.xlu0 %588
    %v591 = vsel %vm165, %v589, 0.0
    %592 = vadd.xlane.f32.xlu0 %v591
    %v593 = vpop.xlane.xlu0 %592
    %v594 = vmul.f32 %v34, %v593
    %v595 = vmul.f32 %v35, %v593
    %v596 = vsel %vm171, %v594, 0.0
    %v597 = vrot.slane %v596, 4
    %v598 = vadd.f32 %v596, %v597
    %v599 = vrot.slane %v598, 2
    %v600 = vadd.f32 %v598, %v599
    %v601 = vrot.slane %v600, 1
    %v602 = vadd.f32 %v600, %v601
    %v603 = vsel %vm171, %v595, 0.0
    %v604 = vrot.slane %v603, 4
    %v605 = vadd.f32 %v603, %v604
    %v606 = vrot.slane %v605, 2
    %v607 = vadd.f32 %v605, %v606
    %v608 = vrot.slane %v607, 1
    %v609 = vadd.f32 %v607, %v608
    %613 = vbcast.lane.b32.xlu0 %v602, 256
    %v614 = vpop.permute.xlu0 %613
    %616 = vbcast.lane.b32.xlu0 %v609, 256
    %v617 = vpop.permute.xlu0 %616
    %v620 = vadd.f32 %v48, %v614
    %v621 = vadd.f32 %v51, %v617
    %624 = vset.pattern.permute.xlu0 0
    %625 = vperm.xlu0 %624, %v620
    %v626 = vpop.permute.xlu0 %625
    %627 = vset.pattern.permute.xlu0 0
    %628 = vperm.xlu0 %627, %v621
    %v629 = vpop.permute.xlu0 %628
    %v630 = vlaneseq
    %v631 = vshrl.u32 %v630, 7
    %v632 = vsub.s32 %v207, %v631
    %v633 = vrot.slane %v626, %v632
    %v634 = vlaneseq
    %v635 = vshrl.u32 %v634, 7
    %v636 = vsub.s32 %v207, %v635
    %v637 = vrot.slane %v629, %v636
    %v638 = vsel %vm216, %v637, %v633
    %v640 = vsel %vm171, %v638, -inf
    %641 = vmax.xlane.f32.xlu0 %v640
    %v642 = vpop.xlane.xlu0 %641
    %v644 = vlaneseq
    %v645 = vshrl.u32 %v644, 7
    %v646 = vsub.s32 0, %v645
    %v647 = vrot.slane %v642, %v646
    %v648 = vlaneseq
    %v649 = vshrl.u32 %v648, 7
    %v650 = vsub.s32 1, %v649
    %v651 = vrot.slane %v642, %v650
    %v654 = vsub.f32 %v620, %v647
    %v655 = vsub.f32 %v621, %v651
    %v656 = vmul.f32 %v654, 1.442695
    %v657 = vpow.pop %v656
    %v658 = vmul.f32 %v655, 1.442695
    %v659 = vpow.pop %v658
    %662 = vset.pattern.permute.xlu0 0
    %663 = vperm.xlu0 %662, %v657
    %v664 = vpop.permute.xlu0 %663
    %665 = vset.pattern.permute.xlu0 0
    %666 = vperm.xlu0 %665, %v659
    %v667 = vpop.permute.xlu0 %666
    %v668 = vlaneseq
    %v669 = vshrl.u32 %v668, 7
    %v670 = vsub.s32 %v207, %v669
    %v671 = vrot.slane %v664, %v670
    %v672 = vlaneseq
    %v673 = vshrl.u32 %v672, 7
    %v674 = vsub.s32 %v207, %v673
    %v675 = vrot.slane %v667, %v674
    %v676 = vsel %vm216, %v675, %v671
    %v678 = vsel %vm171, %v676, 0.0
    %679 = vadd.xlane.f32.xlu0 %v678
    %v680 = vpop.xlane.xlu0 %679
    %v682 = vlaneseq
    %v683 = vshrl.u32 %v682, 7
    %v684 = vsub.s32 0, %v683
    %v685 = vrot.slane %v680, %v684
    %v686 = vlaneseq
    %v687 = vshrl.u32 %v686, 7
    %v688 = vsub.s32 1, %v687
    %v689 = vrot.slane %v680, %v688
    %v692 = vrcp.pop %v685
    %v693 = vmul.f32 %v657, %v692
    %v694 = vrcp.pop %v689
    %v695 = vmul.f32 %v659, %v694
    %v696 = vmin.f32 %v693, %v307
    %v697 = vmin.f32 %v695, %v308
    %700 = vset.pattern.permute.xlu0 0
    %701 = vperm.xlu0 %700, %v696
    %v702 = vpop.permute.xlu0 %701
    %703 = vset.pattern.permute.xlu0 0
    %704 = vperm.xlu0 %703, %v697
    %v705 = vpop.permute.xlu0 %704
    %v706 = vlaneseq
    %v707 = vshrl.u32 %v706, 7
    %v708 = vsub.s32 %v207, %v707
    %v709 = vrot.slane %v702, %v708
    %v710 = vlaneseq
    %v711 = vshrl.u32 %v710, 7
    %v712 = vsub.s32 %v207, %v711
    %v713 = vrot.slane %v705, %v712
    %v714 = vsel %vm216, %v713, %v709
    %v716 = vsel %vm171, %v714, 0.0
    %717 = vadd.xlane.f32.xlu0 %v716
    %v718 = vpop.xlane.xlu0 %717
    %v719 = vrot.slane %v718, 4
    %v720 = vadd.f32 %v718, %v719
    %v721 = vrot.slane %v720, 2
    %v722 = vadd.f32 %v720, %v721
    %v723 = vrot.slane %v722, 1
    %v724 = vadd.f32 %v722, %v723
    %s725 = vtos %v724
    %v726 = vstv %s725
    %v727 = vadd.f32 %v306, %v726
    %v728 = vadd.f32 %v307, %v693
    %v729 = vadd.f32 %v308, %v695
    %731 = vset.pattern.permute.xlu0 0
    %732 = vperm.xlu0 %731, %v693
    %v733 = vpop.permute.xlu0 %732
    %v734 = vlaneseq
    %v735 = vshrl.u32 %v734, 7
    %v736 = vsub.s32 %v207, %v735
    %v737 = vrot.slane %v733, %v736
    %v738 = vsel %vm317, %v737, 0
    %740 = vmatprep.subr.mxu0 0.0
    %741 = vmatpush1.msra.mxu0 %v27
    %742 = vmatprep.subr.mxu0 0.0
    %743 = vmatpush1.msra.mxu0 0.0
    %744 = vmatprep.subr.mxu0 0.0
    %745 = vmatpush1.msra.mxu0 0.0
    %746 = vmatprep.subr.mxu0 0.0
    %747 = vmatpush1.msra.mxu0 0.0
    %748 = vmatprep.subr.mxu0 0.0
    %749 = vmatpush1.msra.mxu0 0.0
    %750 = vmatprep.subr.mxu0 0.0
    %751 = vmatpush1.msra.mxu0 0.0
    %752 = vmatprep.subr.mxu0 0.0
    %753 = vmatpush1.msra.mxu0 0.0
    %754 = vmatprep.subr.mxu0 0.0
    %755 = vmatpush1.msra.mxu0 0.0
    %756 = vmatprep.subr.mxu0 0.0
    %757 = vmatpush1.msra.mxu0 0.0
    %758 = vmatprep.subr.mxu0 0.0
    %759 = vmatpush1.msra.mxu0 0.0
    %760 = vmatprep.subr.mxu0 0.0
    %761 = vmatpush1.msra.mxu0 0.0
    %762 = vmatprep.subr.mxu0 0.0
    %763 = vmatpush1.msra.mxu0 0.0
    %764 = vmatprep.subr.mxu0 0.0
    %765 = vmatpush1.msra.mxu0 0.0
    %766 = vmatprep.subr.mxu0 0.0
    %767 = vmatpush1.msra.mxu0 0.0
    %768 = vmatprep.subr.mxu0 0.0
    %769 = vmatpush1.msra.mxu0 0.0
    %770 = vmatprep.subr.mxu0 0.0
    %771 = vmatpush1.msra.mxu0 0.0
    %772 = vmatprep.subr.mxu0 0.0
    %773 = vmatpush1.msra.mxu0 0.0
    %774 = vmatprep.subr.mxu0 0.0
    %775 = vmatpush1.msra.mxu0 0.0
    %776 = vmatprep.subr.mxu0 0.0
    %777 = vmatpush1.msra.mxu0 0.0
    %778 = vmatprep.subr.mxu0 0.0
    %779 = vmatpush1.msra.mxu0 0.0
    %780 = vmatprep.subr.mxu0 0.0
    %781 = vmatpush1.msra.mxu0 0.0
    %782 = vmatprep.subr.mxu0 0.0
    %783 = vmatpush1.msra.mxu0 0.0
    %784 = vmatprep.subr.mxu0 0.0
    %785 = vmatpush1.msra.mxu0 0.0
    %786 = vmatprep.subr.mxu0 0.0
    %787 = vmatpush1.msra.mxu0 0.0
    %788 = vmatprep.subr.mxu0 0.0
    %789 = vmatpush1.msra.mxu0 0.0
    %790 = vmatprep.subr.mxu0 0.0
    %791 = vmatpush1.msra.mxu0 0.0
    %792 = vmatprep.subr.mxu0 0.0
    %793 = vmatpush1.msra.mxu0 0.0
    %794 = vmatprep.subr.mxu0 0.0
    %795 = vmatpush1.msra.mxu0 0.0
    %796 = vmatprep.subr.mxu0 0.0
    %797 = vmatpush1.msra.mxu0 0.0
    %798 = vmatprep.subr.mxu0 0.0
    %799 = vmatpush1.msra.mxu0 0.0
    %800 = vmatprep.subr.mxu0 0.0
    %801 = vmatpush1.msra.mxu0 0.0
    %802 = vmatprep.subr.mxu0 0.0
    %803 = vmatpush1.msra.mxu0 0.0
    %804 = vmatprep.mubr.f32.mxu0 0.0
    %805 = vmatmul.mubr.f32.gmra.mrb[0].mxu0 %v738
    %v806 = vpop.f32.mrb[0].mxu0
    %v807 = vadd.f32 0.0, %v806
    %v808 = vpop.f32.mrb[0].mxu0
    %809 = vdwg.mxu0
    %811 = vset.pattern.permute.xlu0 0
    %812 = vperm.xlu0 %811, %v695
    %v813 = vpop.permute.xlu0 %812
    %v814 = vlaneseq
    %v815 = vshrl.u32 %v814, 7
    %v816 = vsub.s32 %v207, %v815
    %v817 = vrot.slane %v813, %v816
    %v818 = vsel %vm317, %v817, 0
    %820 = vmatprep.subr.mxu0 0.0
    %821 = vmatpush1.msra.mxu0 %v28
    %822 = vmatprep.subr.mxu0 0.0
    %823 = vmatpush1.msra.mxu0 0.0
    %824 = vmatprep.subr.mxu0 0.0
    %825 = vmatpush1.msra.mxu0 0.0
    %826 = vmatprep.subr.mxu0 0.0
    %827 = vmatpush1.msra.mxu0 0.0
    %828 = vmatprep.subr.mxu0 0.0
    %829 = vmatpush1.msra.mxu0 0.0
    %830 = vmatprep.subr.mxu0 0.0
    %831 = vmatpush1.msra.mxu0 0.0
    %832 = vmatprep.subr.mxu0 0.0
    %833 = vmatpush1.msra.mxu0 0.0
    %834 = vmatprep.subr.mxu0 0.0
    %835 = vmatpush1.msra.mxu0 0.0
    %836 = vmatprep.subr.mxu0 0.0
    %837 = vmatpush1.msra.mxu0 0.0
    %838 = vmatprep.subr.mxu0 0.0
    %839 = vmatpush1.msra.mxu0 0.0
    %840 = vmatprep.subr.mxu0 0.0
    %841 = vmatpush1.msra.mxu0 0.0
    %842 = vmatprep.subr.mxu0 0.0
    %843 = vmatpush1.msra.mxu0 0.0
    %844 = vmatprep.subr.mxu0 0.0
    %845 = vmatpush1.msra.mxu0 0.0
    %846 = vmatprep.subr.mxu0 0.0
    %847 = vmatpush1.msra.mxu0 0.0
    %848 = vmatprep.subr.mxu0 0.0
    %849 = vmatpush1.msra.mxu0 0.0
    %850 = vmatprep.subr.mxu0 0.0
    %851 = vmatpush1.msra.mxu0 0.0
    %852 = vmatprep.subr.mxu0 0.0
    %853 = vmatpush1.msra.mxu0 0.0
    %854 = vmatprep.subr.mxu0 0.0
    %855 = vmatpush1.msra.mxu0 0.0
    %856 = vmatprep.subr.mxu0 0.0
    %857 = vmatpush1.msra.mxu0 0.0
    %858 = vmatprep.subr.mxu0 0.0
    %859 = vmatpush1.msra.mxu0 0.0
    %860 = vmatprep.subr.mxu0 0.0
    %861 = vmatpush1.msra.mxu0 0.0
    %862 = vmatprep.subr.mxu0 0.0
    %863 = vmatpush1.msra.mxu0 0.0
    %864 = vmatprep.subr.mxu0 0.0
    %865 = vmatpush1.msra.mxu0 0.0
    %866 = vmatprep.subr.mxu0 0.0
    %867 = vmatpush1.msra.mxu0 0.0
    %868 = vmatprep.subr.mxu0 0.0
    %869 = vmatpush1.msra.mxu0 0.0
    %870 = vmatprep.subr.mxu0 0.0
    %871 = vmatpush1.msra.mxu0 0.0
    %872 = vmatprep.subr.mxu0 0.0
    %873 = vmatpush1.msra.mxu0 0.0
    %874 = vmatprep.subr.mxu0 0.0
    %875 = vmatpush1.msra.mxu0 0.0
    %876 = vmatprep.subr.mxu0 0.0
    %877 = vmatpush1.msra.mxu0 0.0
    %878 = vmatprep.subr.mxu0 0.0
    %879 = vmatpush1.msra.mxu0 0.0
    %880 = vmatprep.subr.mxu0 0.0
    %881 = vmatpush1.msra.mxu0 0.0
    %882 = vmatprep.subr.mxu0 0.0
    %883 = vmatpush1.msra.mxu0 0.0
    %884 = vmatprep.mubr.f32.mxu0 0.0
    %885 = vmatmul.mubr.f32.gmra.mrb[0].mxu0 %v818
    %v886 = vpop.f32.mrb[0].mxu0
    %v887 = vadd.f32 0.0, %v886
    %v888 = vpop.f32.mrb[0].mxu0
    %889 = vdwg.mxu0
    %891 = vrot.lane.b32.xlu0 %v585, 32
    %v892 = vpop.permute.xlu0 %891
    %v896 = vrot.slane %v887, 7
    %v897 = vsel %vm216, %v896, %v807
    %898 = vrot.lane.b32.xlu0 %v897, 32
    %v899 = vpop.permute.xlu0 %898
    %v901 = vsel %vm53, %v892, %v899
    %s902 = scalar_lea.vmem %s6, 2
    %903 = vst.msk [vmem:[%s902] sm:$0x3] %vm482, %v901
    %v904 = vsel %vm216, %v817, %v737
    %s906 = scalar_lea.vmem %s7, 2
    %907 = vst.msk [vmem:[%s906] sm:$0x3] %vm171, %v904
    %s908 = scalar_lea.vmem %s0, 4
    %v909 = vld [vmem:[%s908] sm:$0x3]
    %v910 = vsel %vm53, %v892, 0
    %912 = vmatprep.subr.mxu0 0.0
    %913 = vmatpush1.msra.mxu0 %v29
    %914 = vmatprep.subr.mxu0 0.0
    %915 = vmatpush1.msra.mxu0 %v30
    %916 = vmatprep.subr.mxu0 0.0
    %917 = vmatpush1.msra.mxu0 %v31
    %918 = vmatprep.subr.mxu0 0.0
    %919 = vmatpush1.msra.mxu0 %v32
    %920 = vmatprep.subr.mxu0 0.0
    %921 = vmatpush1.msra.mxu0 0.0
    %922 = vmatprep.subr.mxu0 0.0
    %923 = vmatpush1.msra.mxu0 0.0
    %924 = vmatprep.subr.mxu0 0.0
    %925 = vmatpush1.msra.mxu0 0.0
    %926 = vmatprep.subr.mxu0 0.0
    %927 = vmatpush1.msra.mxu0 0.0
    %928 = vmatprep.subr.mxu0 0.0
    %929 = vmatpush1.msra.mxu0 0.0
    %930 = vmatprep.subr.mxu0 0.0
    %931 = vmatpush1.msra.mxu0 0.0
    %932 = vmatprep.subr.mxu0 0.0
    %933 = vmatpush1.msra.mxu0 0.0
    %934 = vmatprep.subr.mxu0 0.0
    %935 = vmatpush1.msra.mxu0 0.0
    %936 = vmatprep.subr.mxu0 0.0
    %937 = vmatpush1.msra.mxu0 0.0
    %938 = vmatprep.subr.mxu0 0.0
    %939 = vmatpush1.msra.mxu0 0.0
    %940 = vmatprep.subr.mxu0 0.0
    %941 = vmatpush1.msra.mxu0 0.0
    %942 = vmatprep.subr.mxu0 0.0
    %943 = vmatpush1.msra.mxu0 0.0
    %944 = vmatprep.subr.mxu0 0.0
    %945 = vmatpush1.msra.mxu0 0.0
    %946 = vmatprep.subr.mxu0 0.0
    %947 = vmatpush1.msra.mxu0 0.0
    %948 = vmatprep.subr.mxu0 0.0
    %949 = vmatpush1.msra.mxu0 0.0
    %950 = vmatprep.subr.mxu0 0.0
    %951 = vmatpush1.msra.mxu0 0.0
    %952 = vmatprep.subr.mxu0 0.0
    %953 = vmatpush1.msra.mxu0 0.0
    %954 = vmatprep.subr.mxu0 0.0
    %955 = vmatpush1.msra.mxu0 0.0
    %956 = vmatprep.subr.mxu0 0.0
    %957 = vmatpush1.msra.mxu0 0.0
    %958 = vmatprep.subr.mxu0 0.0
    %959 = vmatpush1.msra.mxu0 0.0
    %960 = vmatprep.subr.mxu0 0.0
    %961 = vmatpush1.msra.mxu0 0.0
    %962 = vmatprep.subr.mxu0 0.0
    %963 = vmatpush1.msra.mxu0 0.0
    %964 = vmatprep.subr.mxu0 0.0
    %965 = vmatpush1.msra.mxu0 0.0
    %966 = vmatprep.subr.mxu0 0.0
    %967 = vmatpush1.msra.mxu0 0.0
    %968 = vmatprep.subr.mxu0 0.0
    %969 = vmatpush1.msra.mxu0 0.0
    %970 = vmatprep.subr.mxu0 0.0
    %971 = vmatpush1.msra.mxu0 0.0
    %972 = vmatprep.subr.mxu0 0.0
    %973 = vmatpush1.msra.mxu0 0.0
    %974 = vmatprep.subr.mxu0 0.0
    %975 = vmatpush1.msra.mxu0 0.0
    %976 = vmatprep.mubr.f32.mxu0 0.0
    %977 = vmatmul.mubr.f32.gmra.mrb[0].mxu0 %v910
    %v978 = vpop.f32.mrb[0].mxu0
    %v979 = vadd.f32 0.0, %v978
    %v980 = vpop.f32.mrb[0].mxu0
    %981 = vdwg.mxu0
    %v982 = vadd.f32 %v909, %v979
    %v983 = vxor.u32 %v982, 2147483648
    %v984 = vmul.f32 %v983, 1.442695
    %v985 = vpow.pop %v984
    %v986 = vadd.f32 %v985, 1.0
    %v987 = vrcp.pop %v986
    %v988 = vmul.f32 1.0, %v987
    %v989 = vtanh.pop %v982
    %v990 = vmul.f32 %v988, %v579
    %992 = vrot.lane.b32.xlu0 %v989, 64
    %v993 = vpop.permute.xlu0 %992
    %v995 = vmul.f32 %v988, %v993
    %997 = vrot.lane.b32.xlu0 %v995, 32
    %v998 = vpop.permute.xlu0 %997
    %v1000 = vadd.f32 %v990, %v998
    %v1001 = vtanh.pop %v1000
    %1003 = vrot.lane.b32.xlu0 %v1001, 64
    %v1004 = vpop.permute.xlu0 %1003
    %v1006 = vmul.f32 %v988, %v1004
    %v1007 = vmul.f32 %v1006, %v158
    %1009 = vrot.lane.b32.xlu0 %v1007, 32
    %v1010 = vpop.permute.xlu0 %1009
    %v1012 = vsel %vm165, %v1010, 0.0
    %1013 = vadd.xlane.f32.xlu0 %v1012
    %v1014 = vpop.xlane.xlu0 %1013
    %v1015 = vmul.f32 %v34, %v1014
    %v1016 = vmul.f32 %v35, %v1014
    %v1017 = vsel %vm171, %v1015, 0.0
    %v1018 = vrot.slane %v1017, 4
    %v1019 = vadd.f32 %v1017, %v1018
    %v1020 = vrot.slane %v1019, 2
    %v1021 = vadd.f32 %v1019, %v1020
    %v1022 = vrot.slane %v1021, 1
    %v1023 = vadd.f32 %v1021, %v1022
    %v1024 = vsel %vm171, %v1016, 0.0
    %v1025 = vrot.slane %v1024, 4
    %v1026 = vadd.f32 %v1024, %v1025
    %v1027 = vrot.slane %v1026, 2
    %v1028 = vadd.f32 %v1026, %v1027
    %v1029 = vrot.slane %v1028, 1
    %v1030 = vadd.f32 %v1028, %v1029
    %1034 = vbcast.lane.b32.xlu0 %v1023, 256
    %v1035 = vpop.permute.xlu0 %1034
    %1037 = vbcast.lane.b32.xlu0 %v1030, 256
    %v1038 = vpop.permute.xlu0 %1037
    %v1041 = vadd.f32 %v48, %v1035
    %v1042 = vadd.f32 %v51, %v1038
    %1045 = vset.pattern.permute.xlu0 0
    %1046 = vperm.xlu0 %1045, %v1041
    %v1047 = vpop.permute.xlu0 %1046
    %1048 = vset.pattern.permute.xlu0 0
    %1049 = vperm.xlu0 %1048, %v1042
    %v1050 = vpop.permute.xlu0 %1049
    %v1051 = vlaneseq
    %v1052 = vshrl.u32 %v1051, 7
    %v1053 = vsub.s32 %v207, %v1052
    %v1054 = vrot.slane %v1047, %v1053
    %v1055 = vlaneseq
    %v1056 = vshrl.u32 %v1055, 7
    %v1057 = vsub.s32 %v207, %v1056
    %v1058 = vrot.slane %v1050, %v1057
    %v1059 = vsel %vm216, %v1058, %v1054
    %v1061 = vsel %vm171, %v1059, -inf
    %1062 = vmax.xlane.f32.xlu0 %v1061
    %v1063 = vpop.xlane.xlu0 %1062
    %v1065 = vlaneseq
    %v1066 = vshrl.u32 %v1065, 7
    %v1067 = vsub.s32 0, %v1066
    %v1068 = vrot.slane %v1063, %v1067
    %v1069 = vlaneseq
    %v1070 = vshrl.u32 %v1069, 7
    %v1071 = vsub.s32 1, %v1070
    %v1072 = vrot.slane %v1063, %v1071
    %v1075 = vsub.f32 %v1041, %v1068
    %v1076 = vsub.f32 %v1042, %v1072
    %v1077 = vmul.f32 %v1075, 1.442695
    %v1078 = vpow.pop %v1077
    %v1079 = vmul.f32 %v1076, 1.442695
    %v1080 = vpow.pop %v1079
    %1083 = vset.pattern.permute.xlu0 0
    %1084 = vperm.xlu0 %1083, %v1078
    %v1085 = vpop.permute.xlu0 %1084
    %1086 = vset.pattern.permute.xlu0 0
    %1087 = vperm.xlu0 %1086, %v1080
    %v1088 = vpop.permute.xlu0 %1087
    %v1089 = vlaneseq
    %v1090 = vshrl.u32 %v1089, 7
    %v1091 = vsub.s32 %v207, %v1090
    %v1092 = vrot.slane %v1085, %v1091
    %v1093 = vlaneseq
    %v1094 = vshrl.u32 %v1093, 7
    %v1095 = vsub.s32 %v207, %v1094
    %v1096 = vrot.slane %v1088, %v1095
    %v1097 = vsel %vm216, %v1096, %v1092
    %v1099 = vsel %vm171, %v1097, 0.0
    %1100 = vadd.xlane.f32.xlu0 %v1099
    %v1101 = vpop.xlane.xlu0 %1100
    %v1103 = vlaneseq
    %v1104 = vshrl.u32 %v1103, 7
    %v1105 = vsub.s32 0, %v1104
    %v1106 = vrot.slane %v1101, %v1105
    %v1107 = vlaneseq
    %v1108 = vshrl.u32 %v1107, 7
    %v1109 = vsub.s32 1, %v1108
    %v1110 = vrot.slane %v1101, %v1109
    %v1113 = vrcp.pop %v1106
    %v1114 = vmul.f32 %v1078, %v1113
    %v1115 = vrcp.pop %v1110
    %v1116 = vmul.f32 %v1080, %v1115
    %v1117 = vmin.f32 %v1114, %v728
    %v1118 = vmin.f32 %v1116, %v729
    %1121 = vset.pattern.permute.xlu0 0
    %1122 = vperm.xlu0 %1121, %v1117
    %v1123 = vpop.permute.xlu0 %1122
    %1124 = vset.pattern.permute.xlu0 0
    %1125 = vperm.xlu0 %1124, %v1118
    %v1126 = vpop.permute.xlu0 %1125
    %v1127 = vlaneseq
    %v1128 = vshrl.u32 %v1127, 7
    %v1129 = vsub.s32 %v207, %v1128
    %v1130 = vrot.slane %v1123, %v1129
    %v1131 = vlaneseq
    %v1132 = vshrl.u32 %v1131, 7
    %v1133 = vsub.s32 %v207, %v1132
    %v1134 = vrot.slane %v1126, %v1133
    %v1135 = vsel %vm216, %v1134, %v1130
    %v1137 = vsel %vm171, %v1135, 0.0
    %1138 = vadd.xlane.f32.xlu0 %v1137
    %v1139 = vpop.xlane.xlu0 %1138
    %v1140 = vrot.slane %v1139, 4
    %v1141 = vadd.f32 %v1139, %v1140
    %v1142 = vrot.slane %v1141, 2
    %v1143 = vadd.f32 %v1141, %v1142
    %v1144 = vrot.slane %v1143, 1
    %v1145 = vadd.f32 %v1143, %v1144
    %s1146 = vtos %v1145
    %v1147 = vstv %s1146
    %v1148 = vadd.f32 %v727, %v1147
    %v1149 = vadd.f32 %v728, %v1114
    %v1150 = vadd.f32 %v729, %v1116
    %1152 = vset.pattern.permute.xlu0 0
    %1153 = vperm.xlu0 %1152, %v1114
    %v1154 = vpop.permute.xlu0 %1153
    %v1155 = vlaneseq
    %v1156 = vshrl.u32 %v1155, 7
    %v1157 = vsub.s32 %v207, %v1156
    %v1158 = vrot.slane %v1154, %v1157
    %v1159 = vsel %vm317, %v1158, 0
    %1161 = vmatprep.subr.mxu0 0.0
    %1162 = vmatpush1.msra.mxu0 %v27
    %1163 = vmatprep.subr.mxu0 0.0
    %1164 = vmatpush1.msra.mxu0 0.0
    %1165 = vmatprep.subr.mxu0 0.0
    %1166 = vmatpush1.msra.mxu0 0.0
    %1167 = vmatprep.subr.mxu0 0.0
    %1168 = vmatpush1.msra.mxu0 0.0
    %1169 = vmatprep.subr.mxu0 0.0
    %1170 = vmatpush1.msra.mxu0 0.0
    %1171 = vmatprep.subr.mxu0 0.0
    %1172 = vmatpush1.msra.mxu0 0.0
    %1173 = vmatprep.subr.mxu0 0.0
    %1174 = vmatpush1.msra.mxu0 0.0
    %1175 = vmatprep.subr.mxu0 0.0
    %1176 = vmatpush1.msra.mxu0 0.0
    %1177 = vmatprep.subr.mxu0 0.0
    %1178 = vmatpush1.msra.mxu0 0.0
    %1179 = vmatprep.subr.mxu0 0.0
    %1180 = vmatpush1.msra.mxu0 0.0
    %1181 = vmatprep.subr.mxu0 0.0
    %1182 = vmatpush1.msra.mxu0 0.0
    %1183 = vmatprep.subr.mxu0 0.0
    %1184 = vmatpush1.msra.mxu0 0.0
    %1185 = vmatprep.subr.mxu0 0.0
    %1186 = vmatpush1.msra.mxu0 0.0
    %1187 = vmatprep.subr.mxu0 0.0
    %1188 = vmatpush1.msra.mxu0 0.0
    %1189 = vmatprep.subr.mxu0 0.0
    %1190 = vmatpush1.msra.mxu0 0.0
    %1191 = vmatprep.subr.mxu0 0.0
    %1192 = vmatpush1.msra.mxu0 0.0
    %1193 = vmatprep.subr.mxu0 0.0
    %1194 = vmatpush1.msra.mxu0 0.0
    %1195 = vmatprep.subr.mxu0 0.0
    %1196 = vmatpush1.msra.mxu0 0.0
    %1197 = vmatprep.subr.mxu0 0.0
    %1198 = vmatpush1.msra.mxu0 0.0
    %1199 = vmatprep.subr.mxu0 0.0
    %1200 = vmatpush1.msra.mxu0 0.0
    %1201 = vmatprep.subr.mxu0 0.0
    %1202 = vmatpush1.msra.mxu0 0.0
    %1203 = vmatprep.subr.mxu0 0.0
    %1204 = vmatpush1.msra.mxu0 0.0
    %1205 = vmatprep.subr.mxu0 0.0
    %1206 = vmatpush1.msra.mxu0 0.0
    %1207 = vmatprep.subr.mxu0 0.0
    %1208 = vmatpush1.msra.mxu0 0.0
    %1209 = vmatprep.subr.mxu0 0.0
    %1210 = vmatpush1.msra.mxu0 0.0
    %1211 = vmatprep.subr.mxu0 0.0
    %1212 = vmatpush1.msra.mxu0 0.0
    %1213 = vmatprep.subr.mxu0 0.0
    %1214 = vmatpush1.msra.mxu0 0.0
    %1215 = vmatprep.subr.mxu0 0.0
    %1216 = vmatpush1.msra.mxu0 0.0
    %1217 = vmatprep.subr.mxu0 0.0
    %1218 = vmatpush1.msra.mxu0 0.0
    %1219 = vmatprep.subr.mxu0 0.0
    %1220 = vmatpush1.msra.mxu0 0.0
    %1221 = vmatprep.subr.mxu0 0.0
    %1222 = vmatpush1.msra.mxu0 0.0
    %1223 = vmatprep.subr.mxu0 0.0
    %1224 = vmatpush1.msra.mxu0 0.0
    %1225 = vmatprep.mubr.f32.mxu0 0.0
    %1226 = vmatmul.mubr.f32.gmra.mrb[0].mxu0 %v1159
    %v1227 = vpop.f32.mrb[0].mxu0
    %v1228 = vadd.f32 0.0, %v1227
    %v1229 = vpop.f32.mrb[0].mxu0
    %1230 = vdwg.mxu0
    %1232 = vset.pattern.permute.xlu0 0
    %1233 = vperm.xlu0 %1232, %v1116
    %v1234 = vpop.permute.xlu0 %1233
    %v1235 = vlaneseq
    %v1236 = vshrl.u32 %v1235, 7
    %v1237 = vsub.s32 %v207, %v1236
    %v1238 = vrot.slane %v1234, %v1237
    %v1239 = vsel %vm317, %v1238, 0
    %1241 = vmatprep.subr.mxu0 0.0
    %1242 = vmatpush1.msra.mxu0 %v28
    %1243 = vmatprep.subr.mxu0 0.0
    %1244 = vmatpush1.msra.mxu0 0.0
    %1245 = vmatprep.subr.mxu0 0.0
    %1246 = vmatpush1.msra.mxu0 0.0
    %1247 = vmatprep.subr.mxu0 0.0
    %1248 = vmatpush1.msra.mxu0 0.0
    %1249 = vmatprep.subr.mxu0 0.0
    %1250 = vmatpush1.msra.mxu0 0.0
    %1251 = vmatprep.subr.mxu0 0.0
    %1252 = vmatpush1.msra.mxu0 0.0
    %1253 = vmatprep.subr.mxu0 0.0
    %1254 = vmatpush1.msra.mxu0 0.0
    %1255 = vmatprep.subr.mxu0 0.0
    %1256 = vmatpush1.msra.mxu0 0.0
    %1257 = vmatprep.subr.mxu0 0.0
    %1258 = vmatpush1.msra.mxu0 0.0
    %1259 = vmatprep.subr.mxu0 0.0
    %1260 = vmatpush1.msra.mxu0 0.0
    %1261 = vmatprep.subr.mxu0 0.0
    %1262 = vmatpush1.msra.mxu0 0.0
    %1263 = vmatprep.subr.mxu0 0.0
    %1264 = vmatpush1.msra.mxu0 0.0
    %1265 = vmatprep.subr.mxu0 0.0
    %1266 = vmatpush1.msra.mxu0 0.0
    %1267 = vmatprep.subr.mxu0 0.0
    %1268 = vmatpush1.msra.mxu0 0.0
    %1269 = vmatprep.subr.mxu0 0.0
    %1270 = vmatpush1.msra.mxu0 0.0
    %1271 = vmatprep.subr.mxu0 0.0
    %1272 = vmatpush1.msra.mxu0 0.0
    %1273 = vmatprep.subr.mxu0 0.0
    %1274 = vmatpush1.msra.mxu0 0.0
    %1275 = vmatprep.subr.mxu0 0.0
    %1276 = vmatpush1.msra.mxu0 0.0
    %1277 = vmatprep.subr.mxu0 0.0
    %1278 = vmatpush1.msra.mxu0 0.0
    %1279 = vmatprep.subr.mxu0 0.0
    %1280 = vmatpush1.msra.mxu0 0.0
    %1281 = vmatprep.subr.mxu0 0.0
    %1282 = vmatpush1.msra.mxu0 0.0
    %1283 = vmatprep.subr.mxu0 0.0
    %1284 = vmatpush1.msra.mxu0 0.0
    %1285 = vmatprep.subr.mxu0 0.0
    %1286 = vmatpush1.msra.mxu0 0.0
    %1287 = vmatprep.subr.mxu0 0.0
    %1288 = vmatpush1.msra.mxu0 0.0
    %1289 = vmatprep.subr.mxu0 0.0
    %1290 = vmatpush1.msra.mxu0 0.0
    %1291 = vmatprep.subr.mxu0 0.0
    %1292 = vmatpush1.msra.mxu0 0.0
    %1293 = vmatprep.subr.mxu0 0.0
    %1294 = vmatpush1.msra.mxu0 0.0
    %1295 = vmatprep.subr.mxu0 0.0
    %1296 = vmatpush1.msra.mxu0 0.0
    %1297 = vmatprep.subr.mxu0 0.0
    %1298 = vmatpush1.msra.mxu0 0.0
    %1299 = vmatprep.subr.mxu0 0.0
    %1300 = vmatpush1.msra.mxu0 0.0
    %1301 = vmatprep.subr.mxu0 0.0
    %1302 = vmatpush1.msra.mxu0 0.0
    %1303 = vmatprep.subr.mxu0 0.0
    %1304 = vmatpush1.msra.mxu0 0.0
    %1305 = vmatprep.mubr.f32.mxu0 0.0
    %1306 = vmatmul.mubr.f32.gmra.mrb[0].mxu0 %v1239
    %v1307 = vpop.f32.mrb[0].mxu0
    %v1308 = vadd.f32 0.0, %v1307
    %v1309 = vpop.f32.mrb[0].mxu0
    %1310 = vdwg.mxu0
    %1312 = vrot.lane.b32.xlu0 %v1006, 32
    %v1313 = vpop.permute.xlu0 %1312
    %v1317 = vrot.slane %v1308, 7
    %v1318 = vsel %vm216, %v1317, %v1228
    %1319 = vrot.lane.b32.xlu0 %v1318, 32
    %v1320 = vpop.permute.xlu0 %1319
    %v1322 = vsel %vm53, %v1313, %v1320
    %s1323 = scalar_lea.vmem %s6, 4
    %1324 = vst.msk [vmem:[%s1323] sm:$0x3] %vm482, %v1322
    %v1325 = vsel %vm216, %v1238, %v1158
    %s1327 = scalar_lea.vmem %s7, 4
    %1328 = vst.msk [vmem:[%s1327] sm:$0x3] %vm171, %v1325
    %s1329 = scalar_lea.vmem %s0, 6
    %v1330 = vld [vmem:[%s1329] sm:$0x3]
    %v1331 = vsel %vm53, %v1313, 0
    %1333 = vmatprep.subr.mxu0 0.0
    %1334 = vmatpush1.msra.mxu0 %v29
    %1335 = vmatprep.subr.mxu0 0.0
    %1336 = vmatpush1.msra.mxu0 %v30
    %1337 = vmatprep.subr.mxu0 0.0
    %1338 = vmatpush1.msra.mxu0 %v31
    %1339 = vmatprep.subr.mxu0 0.0
    %1340 = vmatpush1.msra.mxu0 %v32
    %1341 = vmatprep.subr.mxu0 0.0
    %1342 = vmatpush1.msra.mxu0 0.0
    %1343 = vmatprep.subr.mxu0 0.0
    %1344 = vmatpush1.msra.mxu0 0.0
    %1345 = vmatprep.subr.mxu0 0.0
    %1346 = vmatpush1.msra.mxu0 0.0
    %1347 = vmatprep.subr.mxu0 0.0
    %1348 = vmatpush1.msra.mxu0 0.0
    %1349 = vmatprep.subr.mxu0 0.0
    %1350 = vmatpush1.msra.mxu0 0.0
    %1351 = vmatprep.subr.mxu0 0.0
    %1352 = vmatpush1.msra.mxu0 0.0
    %1353 = vmatprep.subr.mxu0 0.0
    %1354 = vmatpush1.msra.mxu0 0.0
    %1355 = vmatprep.subr.mxu0 0.0
    %1356 = vmatpush1.msra.mxu0 0.0
    %1357 = vmatprep.subr.mxu0 0.0
    %1358 = vmatpush1.msra.mxu0 0.0
    %1359 = vmatprep.subr.mxu0 0.0
    %1360 = vmatpush1.msra.mxu0 0.0
    %1361 = vmatprep.subr.mxu0 0.0
    %1362 = vmatpush1.msra.mxu0 0.0
    %1363 = vmatprep.subr.mxu0 0.0
    %1364 = vmatpush1.msra.mxu0 0.0
    %1365 = vmatprep.subr.mxu0 0.0
    %1366 = vmatpush1.msra.mxu0 0.0
    %1367 = vmatprep.subr.mxu0 0.0
    %1368 = vmatpush1.msra.mxu0 0.0
    %1369 = vmatprep.subr.mxu0 0.0
    %1370 = vmatpush1.msra.mxu0 0.0
    %1371 = vmatprep.subr.mxu0 0.0
    %1372 = vmatpush1.msra.mxu0 0.0
    %1373 = vmatprep.subr.mxu0 0.0
    %1374 = vmatpush1.msra.mxu0 0.0
    %1375 = vmatprep.subr.mxu0 0.0
    %1376 = vmatpush1.msra.mxu0 0.0
    %1377 = vmatprep.subr.mxu0 0.0
    %1378 = vmatpush1.msra.mxu0 0.0
    %1379 = vmatprep.subr.mxu0 0.0
    %1380 = vmatpush1.msra.mxu0 0.0
    %1381 = vmatprep.subr.mxu0 0.0
    %1382 = vmatpush1.msra.mxu0 0.0
    %1383 = vmatprep.subr.mxu0 0.0
    %1384 = vmatpush1.msra.mxu0 0.0
    %1385 = vmatprep.subr.mxu0 0.0
    %1386 = vmatpush1.msra.mxu0 0.0
    %1387 = vmatprep.subr.mxu0 0.0
    %1388 = vmatpush1.msra.mxu0 0.0
    %1389 = vmatprep.subr.mxu0 0.0
    %1390 = vmatpush1.msra.mxu0 0.0
    %1391 = vmatprep.subr.mxu0 0.0
    %1392 = vmatpush1.msra.mxu0 0.0
    %1393 = vmatprep.subr.mxu0 0.0
    %1394 = vmatpush1.msra.mxu0 0.0
    %1395 = vmatprep.subr.mxu0 0.0
    %1396 = vmatpush1.msra.mxu0 0.0
    %1397 = vmatprep.mubr.f32.mxu0 0.0
    %1398 = vmatmul.mubr.f32.gmra.mrb[0].mxu0 %v1331
    %v1399 = vpop.f32.mrb[0].mxu0
    %v1400 = vadd.f32 0.0, %v1399
    %v1401 = vpop.f32.mrb[0].mxu0
    %1402 = vdwg.mxu0
    %v1403 = vadd.f32 %v1330, %v1400
    %v1404 = vxor.u32 %v1403, 2147483648
    %v1405 = vmul.f32 %v1404, 1.442695
    %v1406 = vpow.pop %v1405
    %v1407 = vadd.f32 %v1406, 1.0
    %v1408 = vrcp.pop %v1407
    %v1409 = vmul.f32 1.0, %v1408
    %v1410 = vtanh.pop %v1403
    %v1411 = vmul.f32 %v1409, %v1000
    %1413 = vrot.lane.b32.xlu0 %v1410, 64
    %v1414 = vpop.permute.xlu0 %1413
    %v1416 = vmul.f32 %v1409, %v1414
    %1418 = vrot.lane.b32.xlu0 %v1416, 32
    %v1419 = vpop.permute.xlu0 %1418
    %v1421 = vadd.f32 %v1411, %v1419
    %v1422 = vtanh.pop %v1421
    %1424 = vrot.lane.b32.xlu0 %v1422, 64
    %v1425 = vpop.permute.xlu0 %1424
    %v1427 = vmul.f32 %v1409, %v1425
    %v1428 = vmul.f32 %v1427, %v158
    %1430 = vrot.lane.b32.xlu0 %v1428, 32
    %v1431 = vpop.permute.xlu0 %1430
    %v1433 = vsel %vm165, %v1431, 0.0
    %1434 = vadd.xlane.f32.xlu0 %v1433
    %v1435 = vpop.xlane.xlu0 %1434
    %v1436 = vmul.f32 %v34, %v1435
    %v1437 = vmul.f32 %v35, %v1435
    %v1438 = vsel %vm171, %v1436, 0.0
    %v1439 = vrot.slane %v1438, 4
    %v1440 = vadd.f32 %v1438, %v1439
    %v1441 = vrot.slane %v1440, 2
    %v1442 = vadd.f32 %v1440, %v1441
    %v1443 = vrot.slane %v1442, 1
    %v1444 = vadd.f32 %v1442, %v1443
    %v1445 = vsel %vm171, %v1437, 0.0
    %v1446 = vrot.slane %v1445, 4
    %v1447 = vadd.f32 %v1445, %v1446
    %v1448 = vrot.slane %v1447, 2
    %v1449 = vadd.f32 %v1447, %v1448
    %v1450 = vrot.slane %v1449, 1
    %v1451 = vadd.f32 %v1449, %v1450
    %1455 = vbcast.lane.b32.xlu0 %v1444, 256
    %v1456 = vpop.permute.xlu0 %1455
    %1458 = vbcast.lane.b32.xlu0 %v1451, 256
    %v1459 = vpop.permute.xlu0 %1458
    %v1462 = vadd.f32 %v48, %v1456
    %v1463 = vadd.f32 %v51, %v1459
    %1466 = vset.pattern.permute.xlu0 0
    %1467 = vperm.xlu0 %1466, %v1462
    %v1468 = vpop.permute.xlu0 %1467
    %1469 = vset.pattern.permute.xlu0 0
    %1470 = vperm.xlu0 %1469, %v1463
    %v1471 = vpop.permute.xlu0 %1470
    %v1472 = vlaneseq
    %v1473 = vshrl.u32 %v1472, 7
    %v1474 = vsub.s32 %v207, %v1473
    %v1475 = vrot.slane %v1468, %v1474
    %v1476 = vlaneseq
    %v1477 = vshrl.u32 %v1476, 7
    %v1478 = vsub.s32 %v207, %v1477
    %v1479 = vrot.slane %v1471, %v1478
    %v1480 = vsel %vm216, %v1479, %v1475
    %v1482 = vsel %vm171, %v1480, -inf
    %1483 = vmax.xlane.f32.xlu0 %v1482
    %v1484 = vpop.xlane.xlu0 %1483
    %v1486 = vlaneseq
    %v1487 = vshrl.u32 %v1486, 7
    %v1488 = vsub.s32 0, %v1487
    %v1489 = vrot.slane %v1484, %v1488
    %v1490 = vlaneseq
    %v1491 = vshrl.u32 %v1490, 7
    %v1492 = vsub.s32 1, %v1491
    %v1493 = vrot.slane %v1484, %v1492
    %v1496 = vsub.f32 %v1462, %v1489
    %v1497 = vsub.f32 %v1463, %v1493
    %v1498 = vmul.f32 %v1496, 1.442695
    %v1499 = vpow.pop %v1498
    %v1500 = vmul.f32 %v1497, 1.442695
    %v1501 = vpow.pop %v1500
    %1504 = vset.pattern.permute.xlu0 0
    %1505 = vperm.xlu0 %1504, %v1499
    %v1506 = vpop.permute.xlu0 %1505
    %1507 = vset.pattern.permute.xlu0 0
    %1508 = vperm.xlu0 %1507, %v1501
    %v1509 = vpop.permute.xlu0 %1508
    %v1510 = vlaneseq
    %v1511 = vshrl.u32 %v1510, 7
    %v1512 = vsub.s32 %v207, %v1511
    %v1513 = vrot.slane %v1506, %v1512
    %v1514 = vlaneseq
    %v1515 = vshrl.u32 %v1514, 7
    %v1516 = vsub.s32 %v207, %v1515
    %v1517 = vrot.slane %v1509, %v1516
    %v1518 = vsel %vm216, %v1517, %v1513
    %v1520 = vsel %vm171, %v1518, 0.0
    %1521 = vadd.xlane.f32.xlu0 %v1520
    %v1522 = vpop.xlane.xlu0 %1521
    %v1524 = vlaneseq
    %v1525 = vshrl.u32 %v1524, 7
    %v1526 = vsub.s32 0, %v1525
    %v1527 = vrot.slane %v1522, %v1526
    %v1528 = vlaneseq
    %v1529 = vshrl.u32 %v1528, 7
    %v1530 = vsub.s32 1, %v1529
    %v1531 = vrot.slane %v1522, %v1530
    %v1534 = vrcp.pop %v1527
    %v1535 = vmul.f32 %v1499, %v1534
    %v1536 = vrcp.pop %v1531
    %v1537 = vmul.f32 %v1501, %v1536
    %v1538 = vmin.f32 %v1535, %v1149
    %v1539 = vmin.f32 %v1537, %v1150
    %1542 = vset.pattern.permute.xlu0 0
    %1543 = vperm.xlu0 %1542, %v1538
    %v1544 = vpop.permute.xlu0 %1543
    %1545 = vset.pattern.permute.xlu0 0
    %1546 = vperm.xlu0 %1545, %v1539
    %v1547 = vpop.permute.xlu0 %1546
    %v1548 = vlaneseq
    %v1549 = vshrl.u32 %v1548, 7
    %v1550 = vsub.s32 %v207, %v1549
    %v1551 = vrot.slane %v1544, %v1550
    %v1552 = vlaneseq
    %v1553 = vshrl.u32 %v1552, 7
    %v1554 = vsub.s32 %v207, %v1553
    %v1555 = vrot.slane %v1547, %v1554
    %v1556 = vsel %vm216, %v1555, %v1551
    %v1558 = vsel %vm171, %v1556, 0.0
    %1559 = vadd.xlane.f32.xlu0 %v1558
    %v1560 = vpop.xlane.xlu0 %1559
    %v1561 = vrot.slane %v1560, 4
    %v1562 = vadd.f32 %v1560, %v1561
    %v1563 = vrot.slane %v1562, 2
    %v1564 = vadd.f32 %v1562, %v1563
    %v1565 = vrot.slane %v1564, 1
    %v1566 = vadd.f32 %v1564, %v1565
    %s1567 = vtos %v1566
    %v1568 = vstv %s1567
    %v1569 = vadd.f32 %v1148, %v1568
    %v1570 = vadd.f32 %v1149, %v1535
    %v1571 = vadd.f32 %v1150, %v1537
    %1573 = vset.pattern.permute.xlu0 0
    %1574 = vperm.xlu0 %1573, %v1535
    %v1575 = vpop.permute.xlu0 %1574
    %v1576 = vlaneseq
    %v1577 = vshrl.u32 %v1576, 7
    %v1578 = vsub.s32 %v207, %v1577
    %v1579 = vrot.slane %v1575, %v1578
    %v1580 = vsel %vm317, %v1579, 0
    %1582 = vmatprep.subr.mxu0 0.0
    %1583 = vmatpush1.msra.mxu0 %v27
    %1584 = vmatprep.subr.mxu0 0.0
    %1585 = vmatpush1.msra.mxu0 0.0
    %1586 = vmatprep.subr.mxu0 0.0
    %1587 = vmatpush1.msra.mxu0 0.0
    %1588 = vmatprep.subr.mxu0 0.0
    %1589 = vmatpush1.msra.mxu0 0.0
    %1590 = vmatprep.subr.mxu0 0.0
    %1591 = vmatpush1.msra.mxu0 0.0
    %1592 = vmatprep.subr.mxu0 0.0
    %1593 = vmatpush1.msra.mxu0 0.0
    %1594 = vmatprep.subr.mxu0 0.0
    %1595 = vmatpush1.msra.mxu0 0.0
    %1596 = vmatprep.subr.mxu0 0.0
    %1597 = vmatpush1.msra.mxu0 0.0
    %1598 = vmatprep.subr.mxu0 0.0
    %1599 = vmatpush1.msra.mxu0 0.0
    %1600 = vmatprep.subr.mxu0 0.0
    %1601 = vmatpush1.msra.mxu0 0.0
    %1602 = vmatprep.subr.mxu0 0.0
    %1603 = vmatpush1.msra.mxu0 0.0
    %1604 = vmatprep.subr.mxu0 0.0
    %1605 = vmatpush1.msra.mxu0 0.0
    %1606 = vmatprep.subr.mxu0 0.0
    %1607 = vmatpush1.msra.mxu0 0.0
    %1608 = vmatprep.subr.mxu0 0.0
    %1609 = vmatpush1.msra.mxu0 0.0
    %1610 = vmatprep.subr.mxu0 0.0
    %1611 = vmatpush1.msra.mxu0 0.0
    %1612 = vmatprep.subr.mxu0 0.0
    %1613 = vmatpush1.msra.mxu0 0.0
    %1614 = vmatprep.subr.mxu0 0.0
    %1615 = vmatpush1.msra.mxu0 0.0
    %1616 = vmatprep.subr.mxu0 0.0
    %1617 = vmatpush1.msra.mxu0 0.0
    %1618 = vmatprep.subr.mxu0 0.0
    %1619 = vmatpush1.msra.mxu0 0.0
    %1620 = vmatprep.subr.mxu0 0.0
    %1621 = vmatpush1.msra.mxu0 0.0
    %1622 = vmatprep.subr.mxu0 0.0
    %1623 = vmatpush1.msra.mxu0 0.0
    %1624 = vmatprep.subr.mxu0 0.0
    %1625 = vmatpush1.msra.mxu0 0.0
    %1626 = vmatprep.subr.mxu0 0.0
    %1627 = vmatpush1.msra.mxu0 0.0
    %1628 = vmatprep.subr.mxu0 0.0
    %1629 = vmatpush1.msra.mxu0 0.0
    %1630 = vmatprep.subr.mxu0 0.0
    %1631 = vmatpush1.msra.mxu0 0.0
    %1632 = vmatprep.subr.mxu0 0.0
    %1633 = vmatpush1.msra.mxu0 0.0
    %1634 = vmatprep.subr.mxu0 0.0
    %1635 = vmatpush1.msra.mxu0 0.0
    %1636 = vmatprep.subr.mxu0 0.0
    %1637 = vmatpush1.msra.mxu0 0.0
    %1638 = vmatprep.subr.mxu0 0.0
    %1639 = vmatpush1.msra.mxu0 0.0
    %1640 = vmatprep.subr.mxu0 0.0
    %1641 = vmatpush1.msra.mxu0 0.0
    %1642 = vmatprep.subr.mxu0 0.0
    %1643 = vmatpush1.msra.mxu0 0.0
    %1644 = vmatprep.subr.mxu0 0.0
    %1645 = vmatpush1.msra.mxu0 0.0
    %1646 = vmatprep.mubr.f32.mxu0 0.0
    %1647 = vmatmul.mubr.f32.gmra.mrb[0].mxu0 %v1580
    %v1648 = vpop.f32.mrb[0].mxu0
    %v1649 = vadd.f32 0.0, %v1648
    %v1650 = vpop.f32.mrb[0].mxu0
    %1651 = vdwg.mxu0
    %1653 = vset.pattern.permute.xlu0 0
    %1654 = vperm.xlu0 %1653, %v1537
    %v1655 = vpop.permute.xlu0 %1654
    %v1656 = vlaneseq
    %v1657 = vshrl.u32 %v1656, 7
    %v1658 = vsub.s32 %v207, %v1657
    %v1659 = vrot.slane %v1655, %v1658
    %v1660 = vsel %vm317, %v1659, 0
    %1662 = vmatprep.subr.mxu0 0.0
    %1663 = vmatpush1.msra.mxu0 %v28
    %1664 = vmatprep.subr.mxu0 0.0
    %1665 = vmatpush1.msra.mxu0 0.0
    %1666 = vmatprep.subr.mxu0 0.0
    %1667 = vmatpush1.msra.mxu0 0.0
    %1668 = vmatprep.subr.mxu0 0.0
    %1669 = vmatpush1.msra.mxu0 0.0
    %1670 = vmatprep.subr.mxu0 0.0
    %1671 = vmatpush1.msra.mxu0 0.0
    %1672 = vmatprep.subr.mxu0 0.0
    %1673 = vmatpush1.msra.mxu0 0.0
    %1674 = vmatprep.subr.mxu0 0.0
    %1675 = vmatpush1.msra.mxu0 0.0
    %1676 = vmatprep.subr.mxu0 0.0
    %1677 = vmatpush1.msra.mxu0 0.0
    %1678 = vmatprep.subr.mxu0 0.0
    %1679 = vmatpush1.msra.mxu0 0.0
    %1680 = vmatprep.subr.mxu0 0.0
    %1681 = vmatpush1.msra.mxu0 0.0
    %1682 = vmatprep.subr.mxu0 0.0
    %1683 = vmatpush1.msra.mxu0 0.0
    %1684 = vmatprep.subr.mxu0 0.0
    %1685 = vmatpush1.msra.mxu0 0.0
    %1686 = vmatprep.subr.mxu0 0.0
    %1687 = vmatpush1.msra.mxu0 0.0
    %1688 = vmatprep.subr.mxu0 0.0
    %1689 = vmatpush1.msra.mxu0 0.0
    %1690 = vmatprep.subr.mxu0 0.0
    %1691 = vmatpush1.msra.mxu0 0.0
    %1692 = vmatprep.subr.mxu0 0.0
    %1693 = vmatpush1.msra.mxu0 0.0
    %1694 = vmatprep.subr.mxu0 0.0
    %1695 = vmatpush1.msra.mxu0 0.0
    %1696 = vmatprep.subr.mxu0 0.0
    %1697 = vmatpush1.msra.mxu0 0.0
    %1698 = vmatprep.subr.mxu0 0.0
    %1699 = vmatpush1.msra.mxu0 0.0
    %1700 = vmatprep.subr.mxu0 0.0
    %1701 = vmatpush1.msra.mxu0 0.0
    %1702 = vmatprep.subr.mxu0 0.0
    %1703 = vmatpush1.msra.mxu0 0.0
    %1704 = vmatprep.subr.mxu0 0.0
    %1705 = vmatpush1.msra.mxu0 0.0
    %1706 = vmatprep.subr.mxu0 0.0
    %1707 = vmatpush1.msra.mxu0 0.0
    %1708 = vmatprep.subr.mxu0 0.0
    %1709 = vmatpush1.msra.mxu0 0.0
    %1710 = vmatprep.subr.mxu0 0.0
    %1711 = vmatpush1.msra.mxu0 0.0
    %1712 = vmatprep.subr.mxu0 0.0
    %1713 = vmatpush1.msra.mxu0 0.0
    %1714 = vmatprep.subr.mxu0 0.0
    %1715 = vmatpush1.msra.mxu0 0.0
    %1716 = vmatprep.subr.mxu0 0.0
    %1717 = vmatpush1.msra.mxu0 0.0
    %1718 = vmatprep.subr.mxu0 0.0
    %1719 = vmatpush1.msra.mxu0 0.0
    %1720 = vmatprep.subr.mxu0 0.0
    %1721 = vmatpush1.msra.mxu0 0.0
    %1722 = vmatprep.subr.mxu0 0.0
    %1723 = vmatpush1.msra.mxu0 0.0
    %1724 = vmatprep.subr.mxu0 0.0
    %1725 = vmatpush1.msra.mxu0 0.0
    %1726 = vmatprep.mubr.f32.mxu0 0.0
    %1727 = vmatmul.mubr.f32.gmra.mrb[0].mxu0 %v1660
    %v1728 = vpop.f32.mrb[0].mxu0
    %v1729 = vadd.f32 0.0, %v1728
    %v1730 = vpop.f32.mrb[0].mxu0
    %1731 = vdwg.mxu0
    %1733 = vrot.lane.b32.xlu0 %v1427, 32
    %v1734 = vpop.permute.xlu0 %1733
    %v1738 = vrot.slane %v1729, 7
    %v1739 = vsel %vm216, %v1738, %v1649
    %1740 = vrot.lane.b32.xlu0 %v1739, 32
    %v1741 = vpop.permute.xlu0 %1740
    %v1743 = vsel %vm53, %v1734, %v1741
    %s1744 = scalar_lea.vmem %s6, 6
    %1745 = vst.msk [vmem:[%s1744] sm:$0x3] %vm482, %v1743
    %v1746 = vsel %vm216, %v1659, %v1579
    %s1748 = scalar_lea.vmem %s7, 6
    %1749 = vst.msk [vmem:[%s1748] sm:$0x3] %vm171, %v1746
    %s1750 = scalar_lea.vmem %s0, 8
    %v1751 = vld [vmem:[%s1750] sm:$0x3]
    %v1752 = vsel %vm53, %v1734, 0
    %1754 = vmatprep.subr.mxu0 0.0
    %1755 = vmatpush1.msra.mxu0 %v29
    %1756 = vmatprep.subr.mxu0 0.0
    %1757 = vmatpush1.msra.mxu0 %v30
    %1758 = vmatprep.subr.mxu0 0.0
    %1759 = vmatpush1.msra.mxu0 %v31
    %1760 = vmatprep.subr.mxu0 0.0
    %1761 = vmatpush1.msra.mxu0 %v32
    %1762 = vmatprep.subr.mxu0 0.0
    %1763 = vmatpush1.msra.mxu0 0.0
    %1764 = vmatprep.subr.mxu0 0.0
    %1765 = vmatpush1.msra.mxu0 0.0
    %1766 = vmatprep.subr.mxu0 0.0
    %1767 = vmatpush1.msra.mxu0 0.0
    %1768 = vmatprep.subr.mxu0 0.0
    %1769 = vmatpush1.msra.mxu0 0.0
    %1770 = vmatprep.subr.mxu0 0.0
    %1771 = vmatpush1.msra.mxu0 0.0
    %1772 = vmatprep.subr.mxu0 0.0
    %1773 = vmatpush1.msra.mxu0 0.0
    %1774 = vmatprep.subr.mxu0 0.0
    %1775 = vmatpush1.msra.mxu0 0.0
    %1776 = vmatprep.subr.mxu0 0.0
    %1777 = vmatpush1.msra.mxu0 0.0
    %1778 = vmatprep.subr.mxu0 0.0
    %1779 = vmatpush1.msra.mxu0 0.0
    %1780 = vmatprep.subr.mxu0 0.0
    %1781 = vmatpush1.msra.mxu0 0.0
    %1782 = vmatprep.subr.mxu0 0.0
    %1783 = vmatpush1.msra.mxu0 0.0
    %1784 = vmatprep.subr.mxu0 0.0
    %1785 = vmatpush1.msra.mxu0 0.0
    %1786 = vmatprep.subr.mxu0 0.0
    %1787 = vmatpush1.msra.mxu0 0.0
    %1788 = vmatprep.subr.mxu0 0.0
    %1789 = vmatpush1.msra.mxu0 0.0
    %1790 = vmatprep.subr.mxu0 0.0
    %1791 = vmatpush1.msra.mxu0 0.0
    %1792 = vmatprep.subr.mxu0 0.0
    %1793 = vmatpush1.msra.mxu0 0.0
    %1794 = vmatprep.subr.mxu0 0.0
    %1795 = vmatpush1.msra.mxu0 0.0
    %1796 = vmatprep.subr.mxu0 0.0
    %1797 = vmatpush1.msra.mxu0 0.0
    %1798 = vmatprep.subr.mxu0 0.0
    %1799 = vmatpush1.msra.mxu0 0.0
    %1800 = vmatprep.subr.mxu0 0.0
    %1801 = vmatpush1.msra.mxu0 0.0
    %1802 = vmatprep.subr.mxu0 0.0
    %1803 = vmatpush1.msra.mxu0 0.0
    %1804 = vmatprep.subr.mxu0 0.0
    %1805 = vmatpush1.msra.mxu0 0.0
    %1806 = vmatprep.subr.mxu0 0.0
    %1807 = vmatpush1.msra.mxu0 0.0
    %1808 = vmatprep.subr.mxu0 0.0
    %1809 = vmatpush1.msra.mxu0 0.0
    %1810 = vmatprep.subr.mxu0 0.0
    %1811 = vmatpush1.msra.mxu0 0.0
    %1812 = vmatprep.subr.mxu0 0.0
    %1813 = vmatpush1.msra.mxu0 0.0
    %1814 = vmatprep.subr.mxu0 0.0
    %1815 = vmatpush1.msra.mxu0 0.0
    %1816 = vmatprep.subr.mxu0 0.0
    %1817 = vmatpush1.msra.mxu0 0.0
    %1818 = vmatprep.mubr.f32.mxu0 0.0
    %1819 = vmatmul.mubr.f32.gmra.mrb[0].mxu0 %v1752
    %v1820 = vpop.f32.mrb[0].mxu0
    %v1821 = vadd.f32 0.0, %v1820
    %v1822 = vpop.f32.mrb[0].mxu0
    %1823 = vdwg.mxu0
    %v1824 = vadd.f32 %v1751, %v1821
    %v1825 = vxor.u32 %v1824, 2147483648
    %v1826 = vmul.f32 %v1825, 1.442695
    %v1827 = vpow.pop %v1826
    %v1828 = vadd.f32 %v1827, 1.0
    %v1829 = vrcp.pop %v1828
    %v1830 = vmul.f32 1.0, %v1829
    %v1831 = vtanh.pop %v1824
    %v1832 = vmul.f32 %v1830, %v1421
    %1834 = vrot.lane.b32.xlu0 %v1831, 64
    %v1835 = vpop.permute.xlu0 %1834
    %v1837 = vmul.f32 %v1830, %v1835
    %1839 = vrot.lane.b32.xlu0 %v1837, 32
    %v1840 = vpop.permute.xlu0 %1839
    %v1842 = vadd.f32 %v1832, %v1840
    %v1843 = vtanh.pop %v1842
    %1845 = vrot.lane.b32.xlu0 %v1843, 64
    %v1846 = vpop.permute.xlu0 %1845
    %v1848 = vmul.f32 %v1830, %v1846
    %v1849 = vmul.f32 %v1848, %v158
    %1851 = vrot.lane.b32.xlu0 %v1849, 32
    %v1852 = vpop.permute.xlu0 %1851
    %v1854 = vsel %vm165, %v1852, 0.0
    %1855 = vadd.xlane.f32.xlu0 %v1854
    %v1856 = vpop.xlane.xlu0 %1855
    %v1857 = vmul.f32 %v34, %v1856
    %v1858 = vmul.f32 %v35, %v1856
    %v1859 = vsel %vm171, %v1857, 0.0
    %v1860 = vrot.slane %v1859, 4
    %v1861 = vadd.f32 %v1859, %v1860
    %v1862 = vrot.slane %v1861, 2
    %v1863 = vadd.f32 %v1861, %v1862
    %v1864 = vrot.slane %v1863, 1
    %v1865 = vadd.f32 %v1863, %v1864
    %v1866 = vsel %vm171, %v1858, 0.0
    %v1867 = vrot.slane %v1866, 4
    %v1868 = vadd.f32 %v1866, %v1867
    %v1869 = vrot.slane %v1868, 2
    %v1870 = vadd.f32 %v1868, %v1869
    %v1871 = vrot.slane %v1870, 1
    %v1872 = vadd.f32 %v1870, %v1871
    %1876 = vbcast.lane.b32.xlu0 %v1865, 256
    %v1877 = vpop.permute.xlu0 %1876
    %1879 = vbcast.lane.b32.xlu0 %v1872, 256
    %v1880 = vpop.permute.xlu0 %1879
    %v1883 = vadd.f32 %v48, %v1877
    %v1884 = vadd.f32 %v51, %v1880
    %1887 = vset.pattern.permute.xlu0 0
    %1888 = vperm.xlu0 %1887, %v1883
    %v1889 = vpop.permute.xlu0 %1888
    %1890 = vset.pattern.permute.xlu0 0
    %1891 = vperm.xlu0 %1890, %v1884
    %v1892 = vpop.permute.xlu0 %1891
    %v1893 = vlaneseq
    %v1894 = vshrl.u32 %v1893, 7
    %v1895 = vsub.s32 %v207, %v1894
    %v1896 = vrot.slane %v1889, %v1895
    %v1897 = vlaneseq
    %v1898 = vshrl.u32 %v1897, 7
    %v1899 = vsub.s32 %v207, %v1898
    %v1900 = vrot.slane %v1892, %v1899
    %v1901 = vsel %vm216, %v1900, %v1896
    %v1903 = vsel %vm171, %v1901, -inf
    %1904 = vmax.xlane.f32.xlu0 %v1903
    %v1905 = vpop.xlane.xlu0 %1904
    %v1907 = vlaneseq
    %v1908 = vshrl.u32 %v1907, 7
    %v1909 = vsub.s32 0, %v1908
    %v1910 = vrot.slane %v1905, %v1909
    %v1911 = vlaneseq
    %v1912 = vshrl.u32 %v1911, 7
    %v1913 = vsub.s32 1, %v1912
    %v1914 = vrot.slane %v1905, %v1913
    %v1917 = vsub.f32 %v1883, %v1910
    %v1918 = vsub.f32 %v1884, %v1914
    %v1919 = vmul.f32 %v1917, 1.442695
    %v1920 = vpow.pop %v1919
    %v1921 = vmul.f32 %v1918, 1.442695
    %v1922 = vpow.pop %v1921
    %1925 = vset.pattern.permute.xlu0 0
    %1926 = vperm.xlu0 %1925, %v1920
    %v1927 = vpop.permute.xlu0 %1926
    %1928 = vset.pattern.permute.xlu0 0
    %1929 = vperm.xlu0 %1928, %v1922
    %v1930 = vpop.permute.xlu0 %1929
    %v1931 = vlaneseq
    %v1932 = vshrl.u32 %v1931, 7
    %v1933 = vsub.s32 %v207, %v1932
    %v1934 = vrot.slane %v1927, %v1933
    %v1935 = vlaneseq
    %v1936 = vshrl.u32 %v1935, 7
    %v1937 = vsub.s32 %v207, %v1936
    %v1938 = vrot.slane %v1930, %v1937
    %v1939 = vsel %vm216, %v1938, %v1934
    %v1941 = vsel %vm171, %v1939, 0.0
    %1942 = vadd.xlane.f32.xlu0 %v1941
    %v1943 = vpop.xlane.xlu0 %1942
    %v1945 = vlaneseq
    %v1946 = vshrl.u32 %v1945, 7
    %v1947 = vsub.s32 0, %v1946
    %v1948 = vrot.slane %v1943, %v1947
    %v1949 = vlaneseq
    %v1950 = vshrl.u32 %v1949, 7
    %v1951 = vsub.s32 1, %v1950
    %v1952 = vrot.slane %v1943, %v1951
    %v1955 = vrcp.pop %v1948
    %v1956 = vmul.f32 %v1920, %v1955
    %v1957 = vrcp.pop %v1952
    %v1958 = vmul.f32 %v1922, %v1957
    %v1959 = vmin.f32 %v1956, %v1570
    %v1960 = vmin.f32 %v1958, %v1571
    %1963 = vset.pattern.permute.xlu0 0
    %1964 = vperm.xlu0 %1963, %v1959
    %v1965 = vpop.permute.xlu0 %1964
    %1966 = vset.pattern.permute.xlu0 0
    %1967 = vperm.xlu0 %1966, %v1960
    %v1968 = vpop.permute.xlu0 %1967
    %v1969 = vlaneseq
    %v1970 = vshrl.u32 %v1969, 7
    %v1971 = vsub.s32 %v207, %v1970
    %v1972 = vrot.slane %v1965, %v1971
    %v1973 = vlaneseq
    %v1974 = vshrl.u32 %v1973, 7
    %v1975 = vsub.s32 %v207, %v1974
    %v1976 = vrot.slane %v1968, %v1975
    %v1977 = vsel %vm216, %v1976, %v1972
    %v1979 = vsel %vm171, %v1977, 0.0
    %1980 = vadd.xlane.f32.xlu0 %v1979
    %v1981 = vpop.xlane.xlu0 %1980
    %v1982 = vrot.slane %v1981, 4
    %v1983 = vadd.f32 %v1981, %v1982
    %v1984 = vrot.slane %v1983, 2
    %v1985 = vadd.f32 %v1983, %v1984
    %v1986 = vrot.slane %v1985, 1
    %v1987 = vadd.f32 %v1985, %v1986
    %s1988 = vtos %v1987
    %v1989 = vstv %s1988
    %v1990 = vadd.f32 %v1569, %v1989
    %1992 = vset.pattern.permute.xlu0 0
    %1993 = vperm.xlu0 %1992, %v1956
    %v1994 = vpop.permute.xlu0 %1993
    %v1995 = vlaneseq
    %v1996 = vshrl.u32 %v1995, 7
    %v1997 = vsub.s32 %v207, %v1996
    %v1998 = vrot.slane %v1994, %v1997
    %v1999 = vsel %vm317, %v1998, 0
    %2001 = vmatprep.subr.mxu0 0.0
    %2002 = vmatpush1.msra.mxu0 %v27
    %2003 = vmatprep.subr.mxu0 0.0
    %2004 = vmatpush1.msra.mxu0 0.0
    %2005 = vmatprep.subr.mxu0 0.0
    %2006 = vmatpush1.msra.mxu0 0.0
    %2007 = vmatprep.subr.mxu0 0.0
    %2008 = vmatpush1.msra.mxu0 0.0
    %2009 = vmatprep.subr.mxu0 0.0
    %2010 = vmatpush1.msra.mxu0 0.0
    %2011 = vmatprep.subr.mxu0 0.0
    %2012 = vmatpush1.msra.mxu0 0.0
    %2013 = vmatprep.subr.mxu0 0.0
    %2014 = vmatpush1.msra.mxu0 0.0
    %2015 = vmatprep.subr.mxu0 0.0
    %2016 = vmatpush1.msra.mxu0 0.0
    %2017 = vmatprep.subr.mxu0 0.0
    %2018 = vmatpush1.msra.mxu0 0.0
    %2019 = vmatprep.subr.mxu0 0.0
    %2020 = vmatpush1.msra.mxu0 0.0
    %2021 = vmatprep.subr.mxu0 0.0
    %2022 = vmatpush1.msra.mxu0 0.0
    %2023 = vmatprep.subr.mxu0 0.0
    %2024 = vmatpush1.msra.mxu0 0.0
    %2025 = vmatprep.subr.mxu0 0.0
    %2026 = vmatpush1.msra.mxu0 0.0
    %2027 = vmatprep.subr.mxu0 0.0
    %2028 = vmatpush1.msra.mxu0 0.0
    %2029 = vmatprep.subr.mxu0 0.0
    %2030 = vmatpush1.msra.mxu0 0.0
    %2031 = vmatprep.subr.mxu0 0.0
    %2032 = vmatpush1.msra.mxu0 0.0
    %2033 = vmatprep.subr.mxu0 0.0
    %2034 = vmatpush1.msra.mxu0 0.0
    %2035 = vmatprep.subr.mxu0 0.0
    %2036 = vmatpush1.msra.mxu0 0.0
    %2037 = vmatprep.subr.mxu0 0.0
    %2038 = vmatpush1.msra.mxu0 0.0
    %2039 = vmatprep.subr.mxu0 0.0
    %2040 = vmatpush1.msra.mxu0 0.0
    %2041 = vmatprep.subr.mxu0 0.0
    %2042 = vmatpush1.msra.mxu0 0.0
    %2043 = vmatprep.subr.mxu0 0.0
    %2044 = vmatpush1.msra.mxu0 0.0
    %2045 = vmatprep.subr.mxu0 0.0
    %2046 = vmatpush1.msra.mxu0 0.0
    %2047 = vmatprep.subr.mxu0 0.0
    %2048 = vmatpush1.msra.mxu0 0.0
    %2049 = vmatprep.subr.mxu0 0.0
    %2050 = vmatpush1.msra.mxu0 0.0
    %2051 = vmatprep.subr.mxu0 0.0
    %2052 = vmatpush1.msra.mxu0 0.0
    %2053 = vmatprep.subr.mxu0 0.0
    %2054 = vmatpush1.msra.mxu0 0.0
    %2055 = vmatprep.subr.mxu0 0.0
    %2056 = vmatpush1.msra.mxu0 0.0
    %2057 = vmatprep.subr.mxu0 0.0
    %2058 = vmatpush1.msra.mxu0 0.0
    %2059 = vmatprep.subr.mxu0 0.0
    %2060 = vmatpush1.msra.mxu0 0.0
    %2061 = vmatprep.subr.mxu0 0.0
    %2062 = vmatpush1.msra.mxu0 0.0
    %2063 = vmatprep.subr.mxu0 0.0
    %2064 = vmatpush1.msra.mxu0 0.0
    %2065 = vmatprep.mubr.f32.mxu0 0.0
    %2066 = vmatmul.mubr.f32.gmra.mrb[0].mxu0 %v1999
    %v2067 = vpop.f32.mrb[0].mxu0
    %v2068 = vadd.f32 0.0, %v2067
    %v2069 = vpop.f32.mrb[0].mxu0
    %2070 = vdwg.mxu0
    %2072 = vset.pattern.permute.xlu0 0
    %2073 = vperm.xlu0 %2072, %v1958
    %v2074 = vpop.permute.xlu0 %2073
    %v2075 = vlaneseq
    %v2076 = vshrl.u32 %v2075, 7
    %v2077 = vsub.s32 %v207, %v2076
    %v2078 = vrot.slane %v2074, %v2077
    %v2079 = vsel %vm317, %v2078, 0
    %2081 = vmatprep.subr.mxu0 0.0
    %2082 = vmatpush1.msra.mxu0 %v28
    %2083 = vmatprep.subr.mxu0 0.0
    %2084 = vmatpush1.msra.mxu0 0.0
    %2085 = vmatprep.subr.mxu0 0.0
    %2086 = vmatpush1.msra.mxu0 0.0
    %2087 = vmatprep.subr.mxu0 0.0
    %2088 = vmatpush1.msra.mxu0 0.0
    %2089 = vmatprep.subr.mxu0 0.0
    %2090 = vmatpush1.msra.mxu0 0.0
    %2091 = vmatprep.subr.mxu0 0.0
    %2092 = vmatpush1.msra.mxu0 0.0
    %2093 = vmatprep.subr.mxu0 0.0
    %2094 = vmatpush1.msra.mxu0 0.0
    %2095 = vmatprep.subr.mxu0 0.0
    %2096 = vmatpush1.msra.mxu0 0.0
    %2097 = vmatprep.subr.mxu0 0.0
    %2098 = vmatpush1.msra.mxu0 0.0
    %2099 = vmatprep.subr.mxu0 0.0
    %2100 = vmatpush1.msra.mxu0 0.0
    %2101 = vmatprep.subr.mxu0 0.0
    %2102 = vmatpush1.msra.mxu0 0.0
    %2103 = vmatprep.subr.mxu0 0.0
    %2104 = vmatpush1.msra.mxu0 0.0
    %2105 = vmatprep.subr.mxu0 0.0
    %2106 = vmatpush1.msra.mxu0 0.0
    %2107 = vmatprep.subr.mxu0 0.0
    %2108 = vmatpush1.msra.mxu0 0.0
    %2109 = vmatprep.subr.mxu0 0.0
    %2110 = vmatpush1.msra.mxu0 0.0
    %2111 = vmatprep.subr.mxu0 0.0
    %2112 = vmatpush1.msra.mxu0 0.0
    %2113 = vmatprep.subr.mxu0 0.0
    %2114 = vmatpush1.msra.mxu0 0.0
    %2115 = vmatprep.subr.mxu0 0.0
    %2116 = vmatpush1.msra.mxu0 0.0
    %2117 = vmatprep.subr.mxu0 0.0
    %2118 = vmatpush1.msra.mxu0 0.0
    %2119 = vmatprep.subr.mxu0 0.0
    %2120 = vmatpush1.msra.mxu0 0.0
    %2121 = vmatprep.subr.mxu0 0.0
    %2122 = vmatpush1.msra.mxu0 0.0
    %2123 = vmatprep.subr.mxu0 0.0
    %2124 = vmatpush1.msra.mxu0 0.0
    %2125 = vmatprep.subr.mxu0 0.0
    %2126 = vmatpush1.msra.mxu0 0.0
    %2127 = vmatprep.subr.mxu0 0.0
    %2128 = vmatpush1.msra.mxu0 0.0
    %2129 = vmatprep.subr.mxu0 0.0
    %2130 = vmatpush1.msra.mxu0 0.0
    %2131 = vmatprep.subr.mxu0 0.0
    %2132 = vmatpush1.msra.mxu0 0.0
    %2133 = vmatprep.subr.mxu0 0.0
    %2134 = vmatpush1.msra.mxu0 0.0
    %2135 = vmatprep.subr.mxu0 0.0
    %2136 = vmatpush1.msra.mxu0 0.0
    %2137 = vmatprep.subr.mxu0 0.0
    %2138 = vmatpush1.msra.mxu0 0.0
    %2139 = vmatprep.subr.mxu0 0.0
    %2140 = vmatpush1.msra.mxu0 0.0
    %2141 = vmatprep.subr.mxu0 0.0
    %2142 = vmatpush1.msra.mxu0 0.0
    %2143 = vmatprep.subr.mxu0 0.0
    %2144 = vmatpush1.msra.mxu0 0.0
    %2145 = vmatprep.mubr.f32.mxu0 0.0
    %2146 = vmatmul.mubr.f32.gmra.mrb[0].mxu0 %v2079
    %v2147 = vpop.f32.mrb[0].mxu0
    %v2148 = vadd.f32 0.0, %v2147
    %v2149 = vpop.f32.mrb[0].mxu0
    %2150 = vdwg.mxu0
    %2152 = vrot.lane.b32.xlu0 %v1848, 32
    %v2153 = vpop.permute.xlu0 %2152
    %v2157 = vrot.slane %v2148, 7
    %v2158 = vsel %vm216, %v2157, %v2068
    %2159 = vrot.lane.b32.xlu0 %v2158, 32
    %v2160 = vpop.permute.xlu0 %2159
    %v2162 = vsel %vm53, %v2153, %v2160
    %s2163 = scalar_lea.vmem %s6, 8
    %2164 = vst.msk [vmem:[%s2163] sm:$0x3] %vm482, %v2162
    %v2165 = vsel %vm216, %v2078, %v1998
    %s2167 = scalar_lea.vmem %s7, 8
    %2168 = vst.msk [vmem:[%s2167] sm:$0x3] %vm171, %v2165
    %vm2169 = vcmask 0
    %2170 = vst.msk [vmem:[#allocation2] sm:$0x1] %vm2169, %v1990
    // Predicated region
    $region26: #{forward.8} parent=1 // pred_check
      _
    $region27: #{forward.8} parent=1 // pred_check_branch
      %2172 = sbr.rel (0) target = $region29
    $region28: #{forward.8} parent=1 // pred_region
      _
    $region29: #{forward.8} parent=1 // pred_fallthru
      _
    // Predicated region
    $region30: #{forward.8} parent=1 // pred_check
      _
    $region31: #{forward.8} parent=1 // pred_check_branch
      %2174 = sbr.rel (0) target = $region33
    $region32: #{forward.8} parent=1 // pred_region
      _
    $region33: #{forward.8} parent=1 // pred_fallthru
      _
    // Predicated region
    $region34: #{forward.8} parent=1 // pred_check
      _
    $region35: #{forward.8} parent=1 // pred_check_branch
      %2176 = sbr.rel (0) target = $region37
    $region36: #{forward.8} parent=1 // pred_region
      %s2178 = ssub.s32 16, 16
      %2179 = vsyncadd [#allocation3], %s2178
      %s2181 = sshll.u32 [#allocation2], 4
      %s2182 = int_to_ptr.vmem [resolvable:$true] %s2181
      %2184 = dma.vmem_to_hbm [thread:$0]  %s2182, 16, %s8, [#allocation3]
    $region37: #{forward.8} parent=1 // pred_fallthru
      _
    // Predicated region
    $region38: #{forward.8} parent=1 // pred_check
      _
    $region39: #{forward.8} parent=1 // pred_check_branch
      %2186 = sbr.rel (0) target = $region41
    $region40: #{forward.8} parent=1 // pred_region
      _
    $region41: #{forward.8} parent=1 // pred_fallthru
      _
    // Predicated region
    $region42: #{forward.8} parent=1 // pred_check
      _
    $region43: #{forward.8} parent=1 // pred_check_branch
      %2188 = sbr.rel (0) target = $region45
    $region44: #{forward.8} parent=1 // pred_region
      _
    $region45: #{forward.8} parent=1 // pred_fallthru
      _
    // Predicated region
    $region46: #{forward.8} parent=1 // pred_check
      _
    $region47: #{forward.8} parent=1 // pred_check_branch
      %2190 = sbr.rel (0) target = $region49
    $region48: #{forward.8} parent=1 // pred_region
      %2191 = dma.done [#allocation3], 16
    $region49: #{forward.8} parent=1 // pred_fallthru
      _
    %2192 = vsyncpa [#allocation3], 1

// kernel: forward.9
$region0: #{forward.9}
  #allocation0 [shape = 'u32[]', space=smem, size = 0x4, offset = 0x4, fixed_abs, tag = 'smem constant byte address 0x4 - core index']
  #allocation1 [shape = 'u32[144,128]{1,0:T(1,128)}', space=vmem, size = 0x12000, scoped, tag = 'internal scratch']
  %s0 = inlined_call_operand.vmem [shape: f32[2,5,96], index: 0, kind: input, shape index: {}]
  %s1 = inlined_call_operand.vmem [shape: f32[2,5,16], index: 1, kind: input, shape index: {}]
  %s2 = inlined_call_operand.vmem [shape: f32[2,5,8], index: 2, kind: input, shape index: {}]
  %s3 = inlined_call_operand.vmem [shape: f32[2,8,64], index: 3, kind: input, shape index: {}]
  %s4 = inlined_call_operand.vmem [shape: f32[112,97], index: 4, kind: input, shape index: {}]
  %s5 = inlined_call_operand.vmem [shape: f32[1,97], index: 5, kind: input, shape index: {}]
  %s6 = inlined_call_operand.vmem [shape: f32[96,64], index: 6, kind: input, shape index: {}]
  %s7 = inlined_call_operand.vmem [shape: f32[1,64], index: 7, kind: input, shape index: {}]
  %s8 = inlined_call_operand.vmem [shape: f32[2,5,64], index: 8, kind: output, shape index: {}]
  %s9 = sld [smem:[#allocation0]]
  $region65: #{forward.9} parent=0
    _
  %s11 = ssub.s32 1, %s9
  %s12 = scalar_select 0, %s11, %s9
  loop: start=0, step=1, limit=4
  $region2: #{forward.9} parent=0 // loop_pre_header
    _
  $region3: #{forward.9} parent=0 // loop_header
    %s14 = sphi 0, %s18
    %p15 = scmp.ge.s32.totalorder %s14, 4
    %s24 = sphi 0, %s26
    %s27 = sphi 0, %s24
    %s28 = sphi 0, %s27
    %s44 = sphi 0, %s28
    %s50 = sphi 0, %s52
    %s53 = sphi 0, %s50
    %s54 = sphi 0, %s53
    %s70 = sphi 0, %s54
    %s76 = sphi 0, %s78
    %s79 = sphi 0, %s76
    %s80 = sphi 0, %s79
    %s96 = sphi 0, %s80
    %s102 = sphi 0, %s104
    %s105 = sphi 0, %s102
    %s106 = sphi 0, %s105
    %s122 = sphi 0, %s106
    %s126 = sphi 0, %s126
    %s128 = sphi 0, %s126
    %s129 = sphi 0, %s128
    %s143 = sphi 0, %s129
    %s147 = sphi 0, %s147
    %s149 = sphi 0, %s147
    %s150 = sphi 0, %s149
    %s164 = sphi 0, %s150
    %s168 = sphi 0, %s168
    %s170 = sphi 0, %s168
    %s171 = sphi 0, %s170
    %s185 = sphi 0, %s171
    %s189 = sphi 0, %s189
    %s191 = sphi 0, %s189
    %s192 = sphi 0, %s191
    %s206 = sphi 0, %s192
    %s212 = sphi 0, %s214
    %s215 = sphi 0, %s212
    %s216 = sphi 0, %s215
    %s232 = sphi 0, %s216
  $region4: #{forward.9} parent=0 // loop_header_branch
    %17 = sbr.rel (%p15) target = $region8
  $region5: #{forward.9} parent=0 // loop_body
    %s19 = ssub.s32 %s14, 1
    %s20 = ssub.s32 %s14, 2
    %s21 = sadd.s32 %s14, 1
    %s22 = ssub.s32 %s14, %s21
    %p23 = scmp.eq.s32.totalorder %s22, 0
    %s25 = sadd.s32 %s24, 1
    %s26 = scalar_select %p23, %s24, %s25
    %p29 = pneg %p23
    %p30 = scmp.eq.s32.totalorder %s14, 1
    %p31 = por %p29, %p30
    %p32 = scmp.ne.s32.totalorder %s24, %s27
    %p33 = scmp.eq.s32.totalorder %s14, 0
    %p34 = por %p32, %p33
    %p35 = scmp.ne.s32.totalorder %s24, %s27
    %p36 = scmp.eq.s32.totalorder %s19, 1
    %p37 = por %p35, %p36
    %p38 = scmp.ne.s32.totalorder %s27, %s28
    %p39 = scmp.eq.s32.totalorder %s19, 0
    %p40 = por %p38, %p39
    %p41 = scmp.ne.s32.totalorder %s27, %s28
    %p42 = scmp.eq.s32.totalorder %s20, 1
    %p43 = por %p41, %p42
    %p45 = scmp.ne.s32.totalorder %s28, %s44
    %p46 = scmp.eq.s32.totalorder %s20, 0
    %p47 = por %p45, %p46
    %s48 = ssub.s32 %s14, %s21
    %p49 = scmp.eq.s32.totalorder %s48, 0
    %s51 = sadd.s32 %s50, 1
    %s52 = scalar_select %p49, %s50, %s51
    %p55 = pneg %p49
    %p56 = scmp.eq.s32.totalorder %s14, 1
    %p57 = por %p55, %p56
    %p58 = scmp.ne.s32.totalorder %s50, %s53
    %p59 = scmp.eq.s32.totalorder %s14, 0
    %p60 = por %p58, %p59
    %p61 = scmp.ne.s32.totalorder %s50, %s53
    %p62 = scmp.eq.s32.totalorder %s19, 1
    %p63 = por %p61, %p62
    %p64 = scmp.ne.s32.totalorder %s53, %s54
    %p65 = scmp.eq.s32.totalorder %s19, 0
    %p66 = por %p64, %p65
    %p67 = scmp.ne.s32.totalorder %s53, %s54
    %p68 = scmp.eq.s32.totalorder %s20, 1
    %p69 = por %p67, %p68
    %p71 = scmp.ne.s32.totalorder %s54, %s70
    %p72 = scmp.eq.s32.totalorder %s20, 0
    %p73 = por %p71, %p72
    %s74 = ssub.s32 %s14, %s21
    %p75 = scmp.eq.s32.totalorder %s74, 0
    %s77 = sadd.s32 %s76, 1
    %s78 = scalar_select %p75, %s76, %s77
    %p81 = pneg %p75
    %p82 = scmp.eq.s32.totalorder %s14, 1
    %p83 = por %p81, %p82
    %p84 = scmp.ne.s32.totalorder %s76, %s79
    %p85 = scmp.eq.s32.totalorder %s14, 0
    %p86 = por %p84, %p85
    %p87 = scmp.ne.s32.totalorder %s76, %s79
    %p88 = scmp.eq.s32.totalorder %s19, 1
    %p89 = por %p87, %p88
    %p90 = scmp.ne.s32.totalorder %s79, %s80
    %p91 = scmp.eq.s32.totalorder %s19, 0
    %p92 = por %p90, %p91
    %p93 = scmp.ne.s32.totalorder %s79, %s80
    %p94 = scmp.eq.s32.totalorder %s20, 1
    %p95 = por %p93, %p94
    %p97 = scmp.ne.s32.totalorder %s80, %s96
    %p98 = scmp.eq.s32.totalorder %s20, 0
    %p99 = por %p97, %p98
    %s100 = ssub.s32 %s14, %s21
    %p101 = scmp.eq.s32.totalorder %s100, 0
    %s103 = sadd.s32 %s102, 1
    %s104 = scalar_select %p101, %s102, %s103
    %p107 = pneg %p101
    %p108 = scmp.eq.s32.totalorder %s14, 1
    %p109 = por %p107, %p108
    %p110 = scmp.ne.s32.totalorder %s102, %s105
    %p111 = scmp.eq.s32.totalorder %s14, 0
    %p112 = por %p110, %p111
    %p113 = scmp.ne.s32.totalorder %s102, %s105
    %p114 = scmp.eq.s32.totalorder %s19, 1
    %p115 = por %p113, %p114
    %p116 = scmp.ne.s32.totalorder %s105, %s106
    %p117 = scmp.eq.s32.totalorder %s19, 0
    %p118 = por %p116, %p117
    %p119 = scmp.ne.s32.totalorder %s105, %s106
    %p120 = scmp.eq.s32.totalorder %s20, 1
    %p121 = por %p119, %p120
    %p123 = scmp.ne.s32.totalorder %s106, %s122
    %p124 = scmp.eq.s32.totalorder %s20, 0
    %p125 = por %p123, %p124
    %s127 = sadd.s32 %s126, 1
    %p130 = scmp.eq.s32.totalorder %s14, 1
    %p131 = scmp.ne.s32.totalorder %s126, %s128
    %p132 = scmp.eq.s32.totalorder %s14, 0
    %p133 = por %p131, %p132
    %p134 = scmp.ne.s32.totalorder %s126, %s128
    %p135 = scmp.eq.s32.totalorder %s19, 1
    %p136 = por %p134, %p135
    %p137 = scmp.ne.s32.totalorder %s128, %s129
    %p138 = scmp.eq.s32.totalorder %s19, 0
    %p139 = por %p137, %p138
    %p140 = scmp.ne.s32.totalorder %s128, %s129
    %p141 = scmp.eq.s32.totalorder %s20, 1
    %p142 = por %p140, %p141
    %p144 = scmp.ne.s32.totalorder %s129, %s143
    %p145 = scmp.eq.s32.totalorder %s20, 0
    %p146 = por %p144, %p145
    %s148 = sadd.s32 %s147, 1
    %p151 = scmp.eq.s32.totalorder %s14, 1
    %p152 = scmp.ne.s32.totalorder %s147, %s149
    %p153 = scmp.eq.s32.totalorder %s14, 0
    %p154 = por %p152, %p153
    %p155 = scmp.ne.s32.totalorder %s147, %s149
    %p156 = scmp.eq.s32.totalorder %s19, 1
    %p157 = por %p155, %p156
    %p158 = scmp.ne.s32.totalorder %s149, %s150
    %p159 = scmp.eq.s32.totalorder %s19, 0
    %p160 = por %p158, %p159
    %p161 = scmp.ne.s32.totalorder %s149, %s150
    %p162 = scmp.eq.s32.totalorder %s20, 1
    %p163 = por %p161, %p162
    %p165 = scmp.ne.s32.totalorder %s150, %s164
    %p166 = scmp.eq.s32.totalorder %s20, 0
    %p167 = por %p165, %p166
    %s169 = sadd.s32 %s168, 1
    %p172 = scmp.eq.s32.totalorder %s14, 1
    %p173 = scmp.ne.s32.totalorder %s168, %s170
    %p174 = scmp.eq.s32.totalorder %s14, 0
    %p175 = por %p173, %p174
    %p176 = scmp.ne.s32.totalorder %s168, %s170
    %p177 = scmp.eq.s32.totalorder %s19, 1
    %p178 = por %p176, %p177
    %p179 = scmp.ne.s32.totalorder %s170, %s171
    %p180 = scmp.eq.s32.totalorder %s19, 0
    %p181 = por %p179, %p180
    %p182 = scmp.ne.s32.totalorder %s170, %s171
    %p183 = scmp.eq.s32.totalorder %s20, 1
    %p184 = por %p182, %p183
    %p186 = scmp.ne.s32.totalorder %s171, %s185
    %p187 = scmp.eq.s32.totalorder %s20, 0
    %p188 = por %p186, %p187
    %s190 = sadd.s32 %s189, 1
    %p193 = scmp.eq.s32.totalorder %s14, 1
    %p194 = scmp.ne.s32.totalorder %s189, %s191
    %p195 = scmp.eq.s32.totalorder %s14, 0
    %p196 = por %p194, %p195
    %p197 = scmp.ne.s32.totalorder %s189, %s191
    %p198 = scmp.eq.s32.totalorder %s19, 1
    %p199 = por %p197, %p198
    %p200 = scmp.ne.s32.totalorder %s191, %s192
    %p201 = scmp.eq.s32.totalorder %s19, 0
    %p202 = por %p200, %p201
    %p203 = scmp.ne.s32.totalorder %s191, %s192
    %p204 = scmp.eq.s32.totalorder %s20, 1
    %p205 = por %p203, %p204
    %p207 = scmp.ne.s32.totalorder %s192, %s206
    %p208 = scmp.eq.s32.totalorder %s20, 0
    %p209 = por %p207, %p208
    %s210 = ssub.s32 %s14, %s21
    %p211 = scmp.eq.s32.totalorder %s210, 0
    %s213 = sadd.s32 %s212, 1
    %s214 = scalar_select %p211, %s212, %s213
    %p217 = pneg %p211
    %p218 = scmp.eq.s32.totalorder %s14, 1
    %p219 = por %p217, %p218
    %p220 = scmp.ne.s32.totalorder %s212, %s215
    %p221 = scmp.eq.s32.totalorder %s14, 0
    %p222 = por %p220, %p221
    %p223 = scmp.ne.s32.totalorder %s212, %s215
    %p224 = scmp.eq.s32.totalorder %s19, 1
    %p225 = por %p223, %p224
    %p226 = scmp.ne.s32.totalorder %s215, %s216
    %p227 = scmp.eq.s32.totalorder %s19, 0
    %p228 = por %p226, %p227
    %p229 = scmp.ne.s32.totalorder %s215, %s216
    %p230 = scmp.eq.s32.totalorder %s20, 1
    %p231 = por %p229, %p230
    %p233 = scmp.ne.s32.totalorder %s216, %s232
    %p234 = scmp.eq.s32.totalorder %s20, 0
    %p235 = por %p233, %p234
    %p236 = scmp.le.s32.totalorder 1, %s14
    %p237 = scmp.lt.s32.totalorder %s14, 3
    %p238 = pnand %p236, %p237
    %p239 = pneg %p238
    // Predicated region
    $region9: #{forward.9} parent=5 // pred_check
      _
    $region10: #{forward.9} parent=5 // pred_check_branch
      %241 = sbr.rel (%p238) target = $region12
    $region11: #{forward.9} parent=5 // pred_region
      %s242 = ssub.s32 %s14, 1
      // Predicated region
      $region13: #{forward.9} parent=11 // pred_check
        %p243 = pneg %p139
      $region14: #{forward.9} parent=11 // pred_check_branch
        %245 = sbr.rel (%p243) target = $region16
      $region15: #{forward.9} parent=11 // pred_region
        _
      $region16: #{forward.9} parent=11 // pred_fallthru
        _
      // Predicated region
      $region17: #{forward.9} parent=11 // pred_check
        %p246 = pneg %p160
      $region18: #{forward.9} parent=11 // pred_check_branch
        %248 = sbr.rel (%p246) target = $region20
      $region19: #{forward.9} parent=11 // pred_region
        _
      $region20: #{forward.9} parent=11 // pred_fallthru
        _
      // Predicated region
      $region21: #{forward.9} parent=11 // pred_check
        %p249 = pneg %p181
      $region22: #{forward.9} parent=11 // pred_check_branch
        %251 = sbr.rel (%p249) target = $region24
      $region23: #{forward.9} parent=11 // pred_region
        _
      $region24: #{forward.9} parent=11 // pred_fallthru
        _
      // Predicated region
      $region25: #{forward.9} parent=11 // pred_check
        %p252 = pneg %p202
      $region26: #{forward.9} parent=11 // pred_check_branch
        %254 = sbr.rel (%p252) target = $region28
      $region27: #{forward.9} parent=11 // pred_region
        _
      $region28: #{forward.9} parent=11 // pred_fallthru
        _
    $region12: #{forward.9} parent=5 // pred_fallthru
      _
    %p255 = scmp.lt.s32.totalorder %s14, 2
    // Predicated region
    $region29: #{forward.9} parent=5 // pred_check
      %p256 = pneg %p255
    $region30: #{forward.9} parent=5 // pred_check_branch
      %258 = sbr.rel (%p256) target = $region32
    $region31: #{forward.9} parent=5 // pred_region
      // Predicated region
      $region33: #{forward.9} parent=31 // pred_check
        %p259 = pneg %p34
      $region34: #{forward.9} parent=31 // pred_check_branch
        %261 = sbr.rel (%p259) target = $region36
      $region35: #{forward.9} parent=31 // pred_region
        %p262 = scmp.lt.s32.totalorder %s14, 1
        %s263 = scalar_select %p262, %s14, 1
        %s264 = smul.addr %s263, 8
        %s265 = scalar_lea.vmem %s0, %s264
      $region36: #{forward.9} parent=31 // pred_fallthru
        _
      // Predicated region
      $region37: #{forward.9} parent=31 // pred_check
        %p266 = pneg %p60
      $region38: #{forward.9} parent=31 // pred_check_branch
        %268 = sbr.rel (%p266) target = $region40
      $region39: #{forward.9} parent=31 // pred_region
        %p269 = scmp.lt.s32.totalorder %s14, 1
        %s270 = scalar_select %p269, %s14, 1
        %s271 = smul.addr %s270, 8
        %s272 = scalar_lea.vmem %s1, %s271
      $region40: #{forward.9} parent=31 // pred_fallthru
        _
      // Predicated region
      $region41: #{forward.9} parent=31 // pred_check
        %p273 = pneg %p86
      $region42: #{forward.9} parent=31 // pred_check_branch
        %275 = sbr.rel (%p273) target = $region44
      $region43: #{forward.9} parent=31 // pred_region
        %p276 = scmp.lt.s32.totalorder %s14, 1
        %s277 = scalar_select %p276, %s14, 1
        %s278 = smul.addr %s277, 8
        %s279 = scalar_lea.vmem %s2, %s278
      $region44: #{forward.9} parent=31 // pred_fallthru
        _
      // Predicated region
      $region45: #{forward.9} parent=31 // pred_check
        %p280 = pneg %p112
      $region46: #{forward.9} parent=31 // pred_check_branch
        %282 = sbr.rel (%p280) target = $region48
      $region47: #{forward.9} parent=31 // pred_region
        %p283 = scmp.lt.s32.totalorder %s14, 1
        %s284 = scalar_select %p283, %s14, 1
        %s285 = smul.addr %s284, 8
        %s286 = scalar_lea.vmem %s3, %s285
      $region48: #{forward.9} parent=31 // pred_fallthru
        _
    $region32: #{forward.9} parent=5 // pred_fallthru
      _
    %p287 = scmp.le.s32.totalorder 1, %s14
    %p288 = scmp.lt.s32.totalorder %s14, 3
    %p289 = pnand %p287, %p288
    %p290 = pneg %p289
    // Predicated region
    $region49: #{forward.9} parent=5 // pred_check
      _
    $region50: #{forward.9} parent=5 // pred_check_branch
      %292 = sbr.rel (%p289) target = $region52
    $region51: #{forward.9} parent=5 // pred_region
      %s293 = ssub.s32 %s14, 1
      %p294 = scmp.lt.s32.totalorder %s19, 1
      %s295 = scalar_select %p294, %s19, 1
      %s296 = smul.addr %s295, 8
      %s297 = scalar_lea.vmem %s0, %s296
      %p298 = pneg %p40
      %p299 = pneg %p37
      %p300 = scmp.lt.s32.totalorder %s19, 1
      %s301 = scalar_select %p300, %s19, 1
      %s302 = smul.addr %s301, 8
      %s303 = scalar_lea.vmem %s1, %s302
      %p304 = pneg %p66
      %p305 = pneg %p63
      %p306 = scmp.lt.s32.totalorder %s19, 1
      %s307 = scalar_select %p306, %s19, 1
      %s308 = smul.addr %s307, 8
      %s309 = scalar_lea.vmem %s2, %s308
      %p310 = pneg %p92
      %p311 = pneg %p89
      %p312 = scmp.lt.s32.totalorder %s19, 1
      %s313 = scalar_select %p312, %s19, 1
      %s314 = smul.addr %s313, 8
      %s315 = scalar_lea.vmem %s3, %s314
      %p316 = pneg %p118
      %p317 = pneg %p115
      %p318 = pneg %p139
      %p319 = pneg %p136
      %p320 = pneg %p160
      %p321 = pneg %p157
      %p322 = pneg %p181
      %p323 = pneg %p178
      %p324 = pneg %p202
      %p325 = pneg %p199
      %p326 = pneg %p228
      %p327 = pneg %p225
      %p328 = scmp.lt.s32.totalorder %s19, 1
      %s329 = scalar_select %p328, %s19, 1
      %s330 = smul.addr %s329, 8
      %s331 = scalar_lea.vmem %s8, %s330
      %p332 = scmp.lt.s32.totalorder %s19, 1
      %s333 = scalar_select %p332, %s19, 1
      %s334 = smul.addr %s333, 8
      %s335 = scalar_lea.vmem %s0, %s334
      %p336 = scmp.lt.s32.totalorder %s19, 1
      %s337 = scalar_select %p336, %s19, 1
      %s338 = smul.addr %s337, 8
      %s339 = scalar_lea.vmem %s1, %s338
      %p340 = scmp.lt.s32.totalorder %s19, 1
      %s341 = scalar_select %p340, %s19, 1
      %s342 = smul.addr %s341, 8
      %s343 = scalar_lea.vmem %s2, %s342
      %p344 = scmp.lt.s32.totalorder %s19, 1
      %s345 = scalar_select %p344, %s19, 1
      %s346 = smul.addr %s345, 8
      %s347 = scalar_lea.vmem %s3, %s346
      %p348 = scmp.lt.s32.totalorder %s19, 1
      %s349 = scalar_select %p348, %s19, 1
      %s350 = smul.addr %s349, 8
      %s351 = scalar_lea.vmem %s8, %s350
      %v352 = vld [vmem:[%s335] sm:$0x1f]
      %v353 = vld [vmem:[%s339] sm:$0x1f]
      %355 = vrot.lane.b32.xlu0 %v353, 96
      %v356 = vpop.permute.xlu0 %355
      %vm358 = vcmask 785408
      %v359 = vsel %vm358, %v352, %v356
      %v360 = vld [vmem:[%s4] sm:$0xff]
      %v361 = vld [vmem:[%s4 + $0x8] sm:$0xff]
      %v362 = vld [vmem:[%s4 + $0x10] sm:$0xff]
      %v363 = vld [vmem:[%s4 + $0x18] sm:$0xff]
      %v364 = vld [vmem:[%s4 + $0x20] sm:$0xff]
      %v365 = vld [vmem:[%s4 + $0x28] sm:$0xff]
      %v366 = vld [vmem:[%s4 + $0x30] sm:$0xff]
      %v367 = vld [vmem:[%s4 + $0x38] sm:$0xff]
      %v368 = vld [vmem:[%s4 + $0x40] sm:$0xff]
      %v369 = vld [vmem:[%s4 + $0x48] sm:$0xff]
      %v370 = vld [vmem:[%s4 + $0x50] sm:$0xff]
      %v371 = vld [vmem:[%s4 + $0x58] sm:$0xff]
      %v372 = vld [vmem:[%s4 + $0x60] sm:$0xff]
      %v373 = vld [vmem:[%s4 + $0x68] sm:$0xff]
      %v374 = vld [vmem:[%s5] sm:$0x1]
      %v376 = vlaneseq
      %v377 = vshrl.u32 %v376, 7
      %v378 = vsub.s32 0, %v377
      %v379 = vrot.slane %v374, %v378
      %vm381 = vcmask 916480
      %v383 = vsel %vm381, %v359, 0
      %385 = vmatprep.subr.mxu0 0.0
      %386 = vmatpush1.msra.mxu0 %v360
      %387 = vmatprep.subr.mxu0 0.0
      %388 = vmatpush1.msra.mxu0 %v361
      %389 = vmatprep.subr.mxu0 0.0
      %390 = vmatpush1.msra.mxu0 %v362
      %391 = vmatprep.subr.mxu0 0.0
      %392 = vmatpush1.msra.mxu0 %v363
      %393 = vmatprep.subr.mxu0 0.0
      %394 = vmatpush1.msra.mxu0 %v364
      %395 = vmatprep.subr.mxu0 0.0
      %396 = vmatpush1.msra.mxu0 %v365
      %397 = vmatprep.subr.mxu0 0.0
      %398 = vmatpush1.msra.mxu0 %v366
      %399 = vmatprep.subr.mxu0 0.0
      %400 = vmatpush1.msra.mxu0 %v367
      %401 = vmatprep.subr.mxu0 0.0
      %402 = vmatpush1.msra.mxu0 %v368
      %403 = vmatprep.subr.mxu0 0.0
      %404 = vmatpush1.msra.mxu0 %v369
      %405 = vmatprep.subr.mxu0 0.0
      %406 = vmatpush1.msra.mxu0 %v370
      %407 = vmatprep.subr.mxu0 0.0
      %408 = vmatpush1.msra.mxu0 %v371
      %409 = vmatprep.subr.mxu0 0.0
      %410 = vmatpush1.msra.mxu0 %v372
      %411 = vmatprep.subr.mxu0 0.0
      %412 = vmatpush1.msra.mxu0 %v373
      %413 = vmatprep.subr.mxu0 0.0
      %414 = vmatpush1.msra.mxu0 0.0
      %415 = vmatprep.subr.mxu0 0.0
      %416 = vmatpush1.msra.mxu0 0.0
      %417 = vmatprep.subr.mxu0 0.0
      %418 = vmatpush1.msra.mxu0 0.0
      %419 = vmatprep.subr.mxu0 0.0
      %420 = vmatpush1.msra.mxu0 0.0
      %421 = vmatprep.subr.mxu0 0.0
      %422 = vmatpush1.msra.mxu0 0.0
      %423 = vmatprep.subr.mxu0 0.0
      %424 = vmatpush1.msra.mxu0 0.0
      %425 = vmatprep.subr.mxu0 0.0
      %426 = vmatpush1.msra.mxu0 0.0
      %427 = vmatprep.subr.mxu0 0.0
      %428 = vmatpush1.msra.mxu0 0.0
      %429 = vmatprep.subr.mxu0 0.0
      %430 = vmatpush1.msra.mxu0 0.0
      %431 = vmatprep.subr.mxu0 0.0
      %432 = vmatpush1.msra.mxu0 0.0
      %433 = vmatprep.subr.mxu0 0.0
      %434 = vmatpush1.msra.mxu0 0.0
      %435 = vmatprep.subr.mxu0 0.0
      %436 = vmatpush1.msra.mxu0 0.0
      %437 = vmatprep.subr.mxu0 0.0
      %438 = vmatpush1.msra.mxu0 0.0
      %439 = vmatprep.subr.mxu0 0.0
      %440 = vmatpush1.msra.mxu0 0.0
      %441 = vmatprep.subr.mxu0 0.0
      %442 = vmatpush1.msra.mxu0 0.0
      %443 = vmatprep.subr.mxu0 0.0
      %444 = vmatpush1.msra.mxu0 0.0
      %445 = vmatprep.subr.mxu0 0.0
      %446 = vmatpush1.msra.mxu0 0.0
      %447 = vmatprep.subr.mxu0 0.0
      %448 = vmatpush1.msra.mxu0 0.0
      %449 = vmatprep.mubr.f32.mxu0 0.0
      %450 = vmatmul.mubr.f32.gmra.mrb[0].mxu0 %v383
      %v451 = vpop.f32.mrb[0].mxu0
      %v452 = vadd.f32 %v379, %v451
      %v453 = vpop.f32.mrb[0].mxu0
      %454 = vdwg.mxu0
      %v455 = vld [vmem:[%s6] sm:$0xff]
      %v456 = vld [vmem:[%s6 + $0x8] sm:$0xff]
      %v457 = vld [vmem:[%s6 + $0x10] sm:$0xff]
      %v458 = vld [vmem:[%s6 + $0x18] sm:$0xff]
      %v459 = vld [vmem:[%s6 + $0x20] sm:$0xff]
      %v460 = vld [vmem:[%s6 + $0x28] sm:$0xff]
      %v461 = vld [vmem:[%s6 + $0x30] sm:$0xff]
      %v462 = vld [vmem:[%s6 + $0x38] sm:$0xff]
      %v463 = vld [vmem:[%s6 + $0x40] sm:$0xff]
      %v464 = vld [vmem:[%s6 + $0x48] sm:$0xff]
      %v465 = vld [vmem:[%s6 + $0x50] sm:$0xff]
      %v466 = vld [vmem:[%s6 + $0x58] sm:$0xff]
      %v467 = vld [vmem:[%s7] sm:$0x1]
      %v469 = vlaneseq
      %v470 = vshrl.u32 %v469, 7
      %v471 = vsub.s32 0, %v470
      %v472 = vrot.slane %v467, %v471
      %v475 = vsel %vm358, %v452, 0
      %477 = vmatprep.subr.mxu0 0.0
      %478 = vmatpush1.msra.mxu0 %v455
      %479 = vmatprep.subr.mxu0 0.0
      %480 = vmatpush1.msra.mxu0 %v456
      %481 = vmatprep.subr.mxu0 0.0
      %482 = vmatpush1.msra.mxu0 %v457
      %483 = vmatprep.subr.mxu0 0.0
      %484 = vmatpush1.msra.mxu0 %v458
      %485 = vmatprep.subr.mxu0 0.0
      %486 = vmatpush1.msra.mxu0 %v459
      %487 = vmatprep.subr.mxu0 0.0
      %488 = vmatpush1.msra.mxu0 %v460
      %489 = vmatprep.subr.mxu0 0.0
      %490 = vmatpush1.msra.mxu0 %v461
      %491 = vmatprep.subr.mxu0 0.0
      %492 = vmatpush1.msra.mxu0 %v462
      %493 = vmatprep.subr.mxu0 0.0
      %494 = vmatpush1.msra.mxu0 %v463
      %495 = vmatprep.subr.mxu0 0.0
      %496 = vmatpush1.msra.mxu0 %v464
      %497 = vmatprep.subr.mxu0 0.0
      %498 = vmatpush1.msra.mxu0 %v465
      %499 = vmatprep.subr.mxu0 0.0
      %500 = vmatpush1.msra.mxu0 %v466
      %501 = vmatprep.subr.mxu0 0.0
      %502 = vmatpush1.msra.mxu0 0.0
      %503 = vmatprep.subr.mxu0 0.0
      %504 = vmatpush1.msra.mxu0 0.0
      %505 = vmatprep.subr.mxu0 0.0
      %506 = vmatpush1.msra.mxu0 0.0
      %507 = vmatprep.subr.mxu0 0.0
      %508 = vmatpush1.msra.mxu0 0.0
      %509 = vmatprep.subr.mxu0 0.0
      %510 = vmatpush1.msra.mxu0 0.0
      %511 = vmatprep.subr.mxu0 0.0
      %512 = vmatpush1.msra.mxu0 0.0
      %513 = vmatprep.subr.mxu0 0.0
      %514 = vmatpush1.msra.mxu0 0.0
      %515 = vmatprep.subr.mxu0 0.0
      %516 = vmatpush1.msra.mxu0 0.0
      %517 = vmatprep.subr.mxu0 0.0
      %518 = vmatpush1.msra.mxu0 0.0
      %519 = vmatprep.subr.mxu0 0.0
      %520 = vmatpush1.msra.mxu0 0.0
      %521 = vmatprep.subr.mxu0 0.0
      %522 = vmatpush1.msra.mxu0 0.0
      %523 = vmatprep.subr.mxu0 0.0
      %524 = vmatpush1.msra.mxu0 0.0
      %525 = vmatprep.subr.mxu0 0.0
      %526 = vmatpush1.msra.mxu0 0.0
      %527 = vmatprep.subr.mxu0 0.0
      %528 = vmatpush1.msra.mxu0 0.0
      %529 = vmatprep.subr.mxu0 0.0
      %530 = vmatpush1.msra.mxu0 0.0
      %531 = vmatprep.subr.mxu0 0.0
      %532 = vmatpush1.msra.mxu0 0.0
      %533 = vmatprep.subr.mxu0 0.0
      %534 = vmatpush1.msra.mxu0 0.0
      %535 = vmatprep.subr.mxu0 0.0
      %536 = vmatpush1.msra.mxu0 0.0
      %537 = vmatprep.subr.mxu0 0.0
      %538 = vmatpush1.msra.mxu0 0.0
      %539 = vmatprep.subr.mxu0 0.0
      %540 = vmatpush1.msra.mxu0 0.0
      %541 = vmatprep.mubr.f32.mxu0 0.0
      %542 = vmatmul.mubr.f32.gmra.mrb[0].mxu0 %v475
      %v543 = vpop.f32.mrb[0].mxu0
      %v544 = vadd.f32 %v472, %v543
      %v545 = vpop.f32.mrb[0].mxu0
      %546 = vdwg.mxu0
      %vm547 = vcmask 520192
      %v548 = vsel %vm547, %v544, -inf
      %549 = vmax.xlane.f32.xlu0 %v548
      %v550 = vpop.xlane.xlu0 %549
      %v551 = vsub.f32 %v544, %v550
      %v552 = vmul.f32 %v551, 1.442695
      %v553 = vpow.pop %v552
      %v554 = vsel %vm547, %v553, 0.0
      %555 = vadd.xlane.f32.xlu0 %v554
      %v556 = vpop.xlane.xlu0 %555
      %v557 = vrcp.pop %v556
      %v558 = vmul.f32 %v553, %v557
      %v559 = vld [vmem:[%s343] sm:$0x1f]
      %v560 = vld [vmem:[%s347] sm:$0xff]
      %vm561 = vcmask 64512
      %v563 = vsel %vm561, %v559, 0
      %565 = vmatprep.subr.mxu0 0.0
      %566 = vmatpush1.msra.mxu0 %v560
      %567 = vmatprep.subr.mxu0 0.0
      %568 = vmatpush1.msra.mxu0 0.0
      %569 = vmatprep.subr.mxu0 0.0
      %570 = vmatpush1.msra.mxu0 0.0
      %571 = vmatprep.subr.mxu0 0.0
      %572 = vmatpush1.msra.mxu0 0.0
      %573 = vmatprep.subr.mxu0 0.0
      %574 = vmatpush1.msra.mxu0 0.0
      %575 = vmatprep.subr.mxu0 0.0
      %576 = vmatpush1.msra.mxu0 0.0
      %577 = vmatprep.subr.mxu0 0.0
      %578 = vmatpush1.msra.mxu0 0.0
      %579 = vmatprep.subr.mxu0 0.0
      %580 = vmatpush1.msra.mxu0 0.0
      %581 = vmatprep.subr.mxu0 0.0
      %582 = vmatpush1.msra.mxu0 0.0
      %583 = vmatprep.subr.mxu0 0.0
      %584 = vmatpush1.msra.mxu0 0.0
      %585 = vmatprep.subr.mxu0 0.0
      %586 = vmatpush1.msra.mxu0 0.0
      %587 = vmatprep.subr.mxu0 0.0
      %588 = vmatpush1.msra.mxu0 0.0
      %589 = vmatprep.subr.mxu0 0.0
      %590 = vmatpush1.msra.mxu0 0.0
      %591 = vmatprep.subr.mxu0 0.0
      %592 = vmatpush1.msra.mxu0 0.0
      %593 = vmatprep.subr.mxu0 0.0
      %594 = vmatpush1.msra.mxu0 0.0
      %595 = vmatprep.subr.mxu0 0.0
      %596 = vmatpush1.msra.mxu0 0.0
      %597 = vmatprep.subr.mxu0 0.0
      %598 = vmatpush1.msra.mxu0 0.0
      %599 = vmatprep.subr.mxu0 0.0
      %600 = vmatpush1.msra.mxu0 0.0
      %601 = vmatprep.subr.mxu0 0.0
      %602 = vmatpush1.msra.mxu0 0.0
      %603 = vmatprep.subr.mxu0 0.0
      %604 = vmatpush1.msra.mxu0 0.0
      %605 = vmatprep.subr.mxu0 0.0
      %606 = vmatpush1.msra.mxu0 0.0
      %607 = vmatprep.subr.mxu0 0.0
      %608 = vmatpush1.msra.mxu0 0.0
      %609 = vmatprep.subr.mxu0 0.0
      %610 = vmatpush1.msra.mxu0 0.0
      %611 = vmatprep.subr.mxu0 0.0
      %612 = vmatpush1.msra.mxu0 0.0
      %613 = vmatprep.subr.mxu0 0.0
      %614 = vmatpush1.msra.mxu0 0.0
      %615 = vmatprep.subr.mxu0 0.0
      %616 = vmatpush1.msra.mxu0 0.0
      %617 = vmatprep.subr.mxu0 0.0
      %618 = vmatpush1.msra.mxu0 0.0
      %619 = vmatprep.subr.mxu0 0.0
      %620 = vmatpush1.msra.mxu0 0.0
      %621 = vmatprep.subr.mxu0 0.0
      %622 = vmatpush1.msra.mxu0 0.0
      %623 = vmatprep.subr.mxu0 0.0
      %624 = vmatpush1.msra.mxu0 0.0
      %625 = vmatprep.subr.mxu0 0.0
      %626 = vmatpush1.msra.mxu0 0.0
      %627 = vmatprep.subr.mxu0 0.0
      %628 = vmatpush1.msra.mxu0 0.0
      %629 = vmatprep.mubr.f32.mxu0 0.0
      %630 = vmatmul.mubr.f32.gmra.mrb[0].mxu0 %v563
      %v631 = vpop.f32.mrb[0].mxu0
      %v632 = vadd.f32 0.0, %v631
      %v633 = vpop.f32.mrb[0].mxu0
      %634 = vdwg.mxu0
      %v635 = vxor.u32 %v452, 2147483648
      %v636 = vmul.f32 %v635, 1.442695
      %v637 = vpow.pop %v636
      %v638 = vadd.f32 %v637, 1.0
      %v639 = vrcp.pop %v638
      %v640 = vmul.f32 1.0, %v639
      %642 = vset.pattern.permute.xlu0 96
      %643 = vperm.xlu0 %642, %v640
      %v644 = vpop.permute.xlu0 %643
      %v646 = vmul.f32 %v644, %v558
      %v647 = vsub.f32 1.0, %v640
      %649 = vset.pattern.permute.xlu0 96
      %650 = vperm.xlu0 %649, %v647
      %v651 = vpop.permute.xlu0 %650
      %v653 = vmul.f32 %v651, %v632
      %v654 = vadd.f32 %v646, %v653
      %v655 = vadd.f32 %v654, 0.015625
      %656 = vst.msk [vmem:[%s351] sm:$0x1f] %vm547, %v655
      %p657 = scmp.lt.s32.totalorder %s19, 1
      %s658 = scalar_select %p657, %s19, 1
      %s659 = smul.addr %s658, 8
      %s660 = scalar_lea.vmem %s8, %s659
      // Predicated region
      $region53: #{forward.9} parent=51 // pred_check
        %p661 = pneg %p225
      $region54: #{forward.9} parent=51 // pred_check_branch
        %663 = sbr.rel (%p661) target = $region56
      $region55: #{forward.9} parent=51 // pred_region
        _
      $region56: #{forward.9} parent=51 // pred_fallthru
        _
    $region52: #{forward.9} parent=5 // pred_fallthru
      _
    %p664 = scmp.le.s32.totalorder 2, %s14
    // Predicated region
    $region57: #{forward.9} parent=5 // pred_check
      %p665 = pneg %p664
    $region58: #{forward.9} parent=5 // pred_check_branch
      %667 = sbr.rel (%p665) target = $region60
    $region59: #{forward.9} parent=5 // pred_region
      %s668 = ssub.s32 %s14, 2
      // Predicated region
      $region61: #{forward.9} parent=59 // pred_check
        %p669 = pneg %p231
      $region62: #{forward.9} parent=59 // pred_check_branch
        %671 = sbr.rel (%p669) target = $region64
      $region63: #{forward.9} parent=59 // pred_region
        %p672 = scmp.lt.s32.totalorder %s20, 1
        %s673 = scalar_select %p672, %s20, 1
        %s674 = smul.addr %s673, 8
        %s675 = scalar_lea.vmem %s8, %s674
      $region64: #{forward.9} parent=59 // pred_fallthru
        _
    $region60: #{forward.9} parent=5 // pred_fallthru
      _
  $region6: #{forward.9} parent=0 // loop_footer
    %s18 = sadd.s32 1, %s14
  $region7: #{forward.9} parent=0 // loop_footer_branch
    %13 = sbr.rel target = $region3
  $region8: #{forward.9} parent=0 // loop_exit
    _

</llo_original>
